<compile_context>
chip_gen: v5e
topology: v5e:2x2
jax: 0.10.0
libtpu: 0.0.40
codegen_flags: <defaults>
</compile_context>

<pallas_src>
import functools

import jax
import jax.numpy as jnp
from jax.experimental import pallas as pl
from jax.experimental.pallas import tpu as pltpu


# ------------------------------ in-kernel helpers ------------------------------

def _ln(x, g, b, eps):
    mean = jnp.mean(x, axis=-1, keepdims=True)
    var = jnp.mean(jnp.square(x - mean), axis=-1, keepdims=True)
    return (x - mean) * jax.lax.rsqrt(var + eps) * g + b


def _gelu(y):
    # TODO(synk): tanh-approx GELU; PyTorch nn.GELU default is the exact erf form (~1e-3 diff).
    c = 0.7978845608028654  # sqrt(2/pi)
    return 0.5 * y * (1.0 + jnp.tanh(c * (y + 0.044715 * y * y * y)))


# ------------------------------ fused Pallas kernels ------------------------------

def _patch_embed_kernel(p_ref, g1_ref, b1_ref, w_ref, bp_ref, g2_ref, b2_ref,
                        pe_ref, cls_ref, o_ref, *, eps):
    x = p_ref[0].astype(jnp.float32)                                   # (NP, patch_dim)
    x = _ln(x, g1_ref[...], b1_ref[...], eps).astype(jnp.bfloat16)
    y = jnp.dot(x, w_ref[...], preferred_element_type=jnp.float32) + bp_ref[...]
    y = _ln(y, g2_ref[...], b2_ref[...], eps)
    # row 0 = cls_token + pos_emb[0]; rows 1: = embedded patches + pos_emb[1:]
    # (sublane-axis concat, single lane-dense (N, D) store — no separate HBM concat)
    out = jnp.concatenate([cls_ref[0], y + pe_ref[0]], axis=0)         # (N, D)
    o_ref[0] = out.astype(o_ref.dtype)


def patch_embed(patches, pp, eps=1e-5):
    B, NP, PD = patches.shape
    D = pp["w_patch"].shape[1]
    N = NP + 1
    blk = lambda i: (i, 0, 0)
    f2 = lambda i: (0, 0)
    f3 = lambda i: (0, 0, 0)
    return pl.pallas_call(
        functools.partial(_patch_embed_kernel, eps=eps),
        out_shape=jax.ShapeDtypeStruct((B, N, D), jnp.float32),
        grid=(B,),
        in_specs=[pl.BlockSpec((1, NP, PD), blk),
                  pl.BlockSpec((1, PD), f2), pl.BlockSpec((1, PD), f2),
                  pl.BlockSpec((PD, D), f2), pl.BlockSpec((1, D), f2),
                  pl.BlockSpec((1, D), f2), pl.BlockSpec((1, D), f2),
                  pl.BlockSpec((1, NP, D), f3), pl.BlockSpec((1, 1, D), f3)],
        out_specs=pl.BlockSpec((1, N, D), blk),
        compiler_params=pltpu.CompilerParams(dimension_semantics=("parallel",)),
    )(patches, pp["patch_ln1"][0], pp["patch_ln1"][1], pp["w_patch"], pp["b_patch"],
      pp["patch_ln2"][0], pp["patch_ln2"][1], pp["pos_patches"], pp["cls_row"])


def _layer_kernel(h_ref, ag_ref, ab_ref, wqkv_ref, wout_ref, bout_ref,
                  fg_ref, fb_ref, w1_ref, b1_ref, w2_ref, b2_ref, o_ref,
                  *, heads, dim_head, eps):
    h = h_ref[0].astype(jnp.float32)                                   # (N, D)

    # ---------------- attention (softmax scale pre-folded into w_qkv Q columns) ----
    xn = _ln(h, ag_ref[...], ab_ref[...], eps).astype(jnp.bfloat16)
    qkv = jnp.dot(xn, wqkv_ref[...], preferred_element_type=jnp.float32)  # (N, 3*inner)
    inner = heads * dim_head

    acc = h + bout_ref[...]                  # residual + out-proj bias folded in
    for hh in range(heads):                  # static unroll; all heads in one grid step
        lo = hh * dim_head
        q = qkv[:, lo:lo + dim_head]
        k = qkv[:, inner + lo:inner + lo + dim_head]
        v = qkv[:, 2 * inner + lo:2 * inner + lo + dim_head]
        s = jax.lax.dot_general(q.astype(jnp.bfloat16), k.astype(jnp.bfloat16),
                                (((1,), (1,)), ((), ())),
                                preferred_element_type=jnp.float32)     # (N, N)
        s = s - jnp.max(s, axis=-1, keepdims=True)
        p = jnp.exp(s)
        p = p * pl.reciprocal(jnp.sum(p, axis=-1, keepdims=True), approx=True)
        # push this head straight through the out-projection: outputs stay (N, D)
        vw = jnp.dot(v.astype(jnp.bfloat16), wout_ref[hh],
                     preferred_element_type=jnp.float32)                # (N, D)
        acc = acc + jnp.dot(p.astype(jnp.bfloat16), vw.astype(jnp.bfloat16),
                            preferred_element_type=jnp.float32)         # (N, D)

    # ---------------- MLP ----------------------------------------------------------
    yn = _ln(acc, fg_ref[...], fb_ref[...], eps).astype(jnp.bfloat16)
    y = jnp.dot(yn, w1_ref[...], preferred_element_type=jnp.float32) + b1_ref[...]
    y = _gelu(y).astype(jnp.bfloat16)
    y = jnp.dot(y, w2_ref[...], preferred_element_type=jnp.float32) + b2_ref[...]
    o_ref[0] = (acc + y).astype(o_ref.dtype)                            # second residual


def transformer_layer(h, L, *, heads, dim_head, eps=1e-5):
    B, N, D = h.shape
    inner = heads * dim_head
    F = L["w_ff1"].shape[1]
    blk = lambda i: (i, 0, 0)
    f2 = lambda i: (0, 0)
    f3 = lambda i: (0, 0, 0)
    return pl.pallas_call(
        functools.partial(_layer_kernel, heads=heads, dim_head=dim_head, eps=eps),
        out_shape=jax.ShapeDtypeStruct((B, N, D), jnp.float32),
        grid=(B,),
        in_specs=[pl.BlockSpec((1, N, D), blk),
                  pl.BlockSpec((1, D), f2), pl.BlockSpec((1, D), f2),
                  pl.BlockSpec((D, 3 * inner), f2),
                  pl.BlockSpec((heads, dim_head, D), f3),
                  pl.BlockSpec((1, D), f2),
                  pl.BlockSpec((1, D), f2), pl.BlockSpec((1, D), f2),
                  pl.BlockSpec((D, F), f2), pl.BlockSpec((1, F), f2),
                  pl.BlockSpec((F, D), f2), pl.BlockSpec((1, D), f2)],
        out_specs=pl.BlockSpec((1, N, D), blk),
        input_output_aliases={0: 0},            # residual stream updated in place
        compiler_params=pltpu.CompilerParams(dimension_semantics=("parallel",)),
    )(h, L["attn_ln"][0], L["attn_ln"][1], L["w_qkv"], L["w_out"], L["b_out"],
      L["ff_ln"][0], L["ff_ln"][1], L["w_ff1"], L["b_ff1"], L["w_ff2"], L["b_ff2"])


def _head_kernel(x_ref, g_ref, b_ref, w_ref, bh_ref, o_ref, *, eps, out_scale):
    x = x_ref[...].astype(jnp.float32)                                  # (B, D) cls tokens
    xn = _ln(x, g_ref[...], b_ref[...], eps).astype(jnp.bfloat16)
    y = jnp.dot(xn, w_ref[...], preferred_element_type=jnp.float32) + bh_ref[...]
    # sigmoid(y) = 0.5 * (1 + tanh(y/2)) — exact, uses the EUP tanh slot
    o_ref[...] = (out_scale * 0.5 * (1.0 + jnp.tanh(0.5 * y))).astype(o_ref.dtype)


def head(x, pp, *, eps=1e-5, out_scale=312.0):
    B, D = x.shape
    NC = pp["w_head"].shape[1]
    f = lambda: (0, 0)
    return pl.pallas_call(
        functools.partial(_head_kernel, eps=eps, out_scale=out_scale),
        out_shape=jax.ShapeDtypeStruct((B, NC), jnp.float32),
        in_specs=[pl.BlockSpec((B, D), f),
                  pl.BlockSpec((1, D), f), pl.BlockSpec((1, D), f),
                  pl.BlockSpec((D, NC), f), pl.BlockSpec((1, NC), f)],
        out_specs=pl.BlockSpec((B, NC), f),
    )(x, pp["final_ln"][0], pp["final_ln"][1], pp["w_head"], pp["b_head"])


# ------------------------- parameters (deterministic) -------------------------

def init_params(key, *, channels, patch_size, num_patches, dim, depth, heads,
                dim_head, mlp_dim, num_classes):
    patch_dim = channels * patch_size * patch_size
    inner = heads * dim_head
    keys = iter(jax.random.split(key, 64))

    def nrm(shape, std=0.02):
        return (std * jax.random.normal(next(keys), shape)).astype(jnp.float32)

    def ln(d):
        return (jnp.ones((d,), jnp.float32), jnp.zeros((d,), jnp.float32))

    params = {
        "patch_ln1": ln(patch_dim),
        "patch_proj": (nrm((patch_dim, dim)), jnp.zeros((dim,), jnp.float32)),
        "patch_ln2": ln(dim),
        "cls_token": nrm((1, 1, dim)),
        "pos_emb": nrm((1, num_patches + 1, dim)),
        "layers": [],
        "final_ln": ln(dim),
        "w_head": nrm((dim, num_classes)),
        "b_head": jnp.zeros((num_classes,), jnp.float32),
    }
    for _ in range(depth):
        params["layers"].append({
            "attn_ln": ln(dim),
            "w_qkv": nrm((dim, 3 * inner)),           # bias=False in ViT
            "w_out": nrm((inner, dim)),
            "b_out": jnp.zeros((dim,), jnp.float32),
            "ff_ln": ln(dim),
            "w_ff1": nrm((dim, mlp_dim)),
            "b_ff1": jnp.zeros((mlp_dim,), jnp.float32),
            "w_ff2": nrm((mlp_dim, dim)),
            "b_ff2": jnp.zeros((dim,), jnp.float32),
        })
    return params


def prepare_params(params, *, heads, dim_head):
    """One-time prep: bf16 MXU weights, fold softmax scale into Q columns,
    per-head out-proj layout, precomputed cls row. Epilogue params stay f32."""
    inner = heads * dim_head
    scale = dim_head ** -0.5
    bf16 = lambda w: w.astype(jnp.bfloat16)
    r2 = lambda v: v.reshape(1, -1)
    ln2 = lambda gb: (r2(gb[0]), r2(gb[1]))

    pp = {
        "patch_ln1": ln2(params["patch_ln1"]),
        "w_patch": bf16(params["patch_proj"][0]),
        "b_patch": r2(params["patch_proj"][1]),
        "patch_ln2": ln2(params["patch_ln2"]),
        "cls_row": params["cls_token"] + params["pos_emb"][:, :1],   # (1, 1, D) f32
        "pos_patches": params["pos_emb"][:, 1:],                      # (1, NP, D) f32
        "final_ln": ln2(params["final_ln"]),
        "w_head": bf16(params["w_head"]),
        "b_head": r2(params["b_head"]),
        "layers": [],
    }
    for L in params["layers"]:
        w_qkv = L["w_qkv"].at[:, :inner].multiply(scale)   # fold q-scale into weights
        pp["layers"].append({
            "attn_ln": ln2(L["attn_ln"]),
            "w_qkv": bf16(w_qkv),
            "w_out": bf16(L["w_out"].reshape(heads, dim_head, -1)),  # (H, dh, D)
            "b_out": r2(L["b_out"]),
            "ff_ln": ln2(L["ff_ln"]),
            "w_ff1": bf16(L["w_ff1"]),
            "b_ff1": r2(L["b_ff1"]),
            "w_ff2": bf16(L["w_ff2"]),
            "b_ff2": r2(L["b_ff2"]),
        })
    return pp


# ------------------------------- forward pass -------------------------------

def vitnet_forward(pp, x, *, patch_size, heads, dim_head):
    B, C, H, W = x.shape
    p = patch_size
    nh, nw = H // p, W // p
    n_patches = nh * nw

    # 'b c (h p1) (w p2) -> b (h w) (p1 p2 c)'  (layout glue, not hot path)
    patches = x.reshape(B, C, nh, p, nw, p).transpose(0, 2, 4, 3, 5, 1)
    patches = patches.reshape(B, n_patches, p * p * C)

    # fused: LN -> Linear -> LN -> +pos_emb, with cls row written in-kernel
    h = patch_embed(patches, pp)                               # (B, N, D)

    # fused per-layer: attn + MLP in one pallas_call, residual aliased in place
    for L in pp["layers"]:
        h = transformer_layer(h, L, heads=heads, dim_head=dim_head)

    # final LN + cls pooling + Linear head + sigmoid * 312 (fused)
    return head(h[:, 0], pp)


# ----------------------------------- main -----------------------------------

if __name__ == "__main__":
    # Small shapes consistent with the module's forward (ViT hyper-params scaled
    # down but lane-dense: img 16, patch 4, dim 128, depth 2, heads 4, dim_head 32,
    # mlp 256, classes 128).
    B, C, IMG, P = 2, 3, 16, 4
    DIM, DEPTH, HEADS, DIM_HEAD, MLP, NCLS = 128, 2, 4, 32, 256, 128

    key = jax.random.PRNGKey(0)
    kp, kx = jax.random.split(key)
    params = init_params(kp, channels=C, patch_size=P,
                         num_patches=(IMG // P) ** 2, dim=DIM, depth=DEPTH,
                         heads=HEADS, dim_head=DIM_HEAD, mlp_dim=MLP,
                         num_classes=NCLS)
    pparams = prepare_params(params, heads=HEADS, dim_head=DIM_HEAD)
    x = jax.random.uniform(kx, (B, C, IMG, IMG), dtype=jnp.float32)

    forward = jax.jit(functools.partial(vitnet_forward, patch_size=P,
                                        heads=HEADS, dim_head=DIM_HEAD))
    out = forward(pparams, x)
    out = jax.block_until_ready(out)

    assert out.shape == (B, NCLS), out.shape
    assert bool(jnp.all(jnp.isfinite(out)))
    assert bool(jnp.all((out >= 0.0) & (out <= 312.0)))
    print("KERNEL_OK")
</pallas_src>

<mosaic_0001>
module attributes {stable_mosaic.version = 11 : i64} {
  func.func @_head_kernel(%arg0: memref<2x128xf32, #tpu.memory_space<vmem>>, %arg1: memref<1x128xf32, #tpu.memory_space<vmem>>, %arg2: memref<1x128xf32, #tpu.memory_space<vmem>>, %arg3: memref<128x128xbf16, #tpu.memory_space<vmem>>, %arg4: memref<1x128xf32, #tpu.memory_space<vmem>>, %arg5: memref<2x128xf32, #tpu.memory_space<vmem>>) attributes {dimension_semantics = [], scalar_prefetch = 0 : i64, scratch_operands = 0 : i64, tpu.core_type = #tpu.core_type<tc>} {
    %c0 = arith.constant 0 : index
    %c0_0 = arith.constant 0 : index
    %0 = vector.load %arg0[%c0, %c0_0] : memref<2x128xf32, #tpu.memory_space<vmem>>, vector<2x128xf32>
    %c0_1 = arith.constant 0 : index
    %c0_2 = arith.constant 0 : index
    %1 = vector.load %arg1[%c0_1, %c0_2] : memref<1x128xf32, #tpu.memory_space<vmem>>, vector<1x128xf32>
    %c0_3 = arith.constant 0 : index
    %c0_4 = arith.constant 0 : index
    %2 = vector.load %arg2[%c0_3, %c0_4] : memref<1x128xf32, #tpu.memory_space<vmem>>, vector<1x128xf32>
    %cst = arith.constant dense<0.000000e+00> : vector<2xf32>
    %3 = vector.multi_reduction <add>, %0, %cst [1] : vector<2x128xf32> to vector<2xf32>
    %4 = vector.shape_cast %3 : vector<2xf32> to vector<2x1xf32>
    %cst_5 = arith.constant 1.280000e+02 : f32
    %5 = vector.broadcast %cst_5 : f32 to vector<2x1xf32>
    %6 = arith.divf %4, %5 : vector<2x1xf32>
    %7 = vector.broadcast %6 : vector<2x1xf32> to vector<2x128xf32>
    %8 = arith.subf %0, %7 : vector<2x128xf32>
    %9 = arith.mulf %8, %8 : vector<2x128xf32>
    %cst_6 = arith.constant dense<0.000000e+00> : vector<2xf32>
    %10 = vector.multi_reduction <add>, %9, %cst_6 [1] : vector<2x128xf32> to vector<2xf32>
    %11 = vector.shape_cast %10 : vector<2xf32> to vector<2x1xf32>
    %cst_7 = arith.constant 1.280000e+02 : f32
    %12 = vector.broadcast %cst_7 : f32 to vector<2x1xf32>
    %13 = arith.divf %11, %12 : vector<2x1xf32>
    %14 = vector.broadcast %6 : vector<2x1xf32> to vector<2x128xf32>
    %15 = arith.subf %0, %14 : vector<2x128xf32>
    %cst_8 = arith.constant 9.99999974E-6 : f32
    %16 = vector.broadcast %cst_8 : f32 to vector<2x1xf32>
    %17 = arith.addf %13, %16 : vector<2x1xf32>
    %18 = math.rsqrt %17 : vector<2x1xf32>
    %19 = vector.broadcast %18 : vector<2x1xf32> to vector<2x128xf32>
    %20 = arith.mulf %15, %19 : vector<2x128xf32>
    %21 = vector.broadcast %1 : vector<1x128xf32> to vector<2x128xf32>
    %22 = arith.mulf %20, %21 : vector<2x128xf32>
    %23 = vector.broadcast %2 : vector<1x128xf32> to vector<2x128xf32>
    %24 = arith.addf %22, %23 : vector<2x128xf32>
    %25 = arith.truncf %24 : vector<2x128xf32> to vector<2x128xbf16>
    %c0_9 = arith.constant 0 : index
    %c0_10 = arith.constant 0 : index
    %26 = vector.load %arg3[%c0_9, %c0_10] : memref<128x128xbf16, #tpu.memory_space<vmem>>, vector<128x128xbf16>
    %cst_11 = arith.constant dense<0.000000e+00> : vector<2x128xf32>
    %27 = tpu.matmul %25, %26, %cst_11 {dimension_numbers = #tpu.dot_dimension_numbers<[1], [0], [0], [1], [0, 0, 1, 1], [], []>} : vector<2x128xbf16>, vector<128x128xbf16>, vector<2x128xf32> -> vector<2x128xf32>
    %c0_12 = arith.constant 0 : index
    %c0_13 = arith.constant 0 : index
    %28 = vector.load %arg4[%c0_12, %c0_13] : memref<1x128xf32, #tpu.memory_space<vmem>>, vector<1x128xf32>
    %29 = vector.broadcast %28 : vector<1x128xf32> to vector<2x128xf32>
    %30 = arith.addf %27, %29 : vector<2x128xf32>
    %cst_14 = arith.constant 5.000000e-01 : f32
    %31 = vector.broadcast %cst_14 : f32 to vector<2x128xf32>
    %32 = arith.mulf %31, %30 : vector<2x128xf32>
    %33 = math.tanh %32 : vector<2x128xf32>
    %cst_15 = arith.constant 1.000000e+00 : f32
    %34 = vector.broadcast %cst_15 : f32 to vector<2x128xf32>
    %35 = arith.addf %34, %33 : vector<2x128xf32>
    %cst_16 = arith.constant 1.560000e+02 : f32
    %36 = vector.broadcast %cst_16 : f32 to vector<2x128xf32>
    %37 = arith.mulf %36, %35 : vector<2x128xf32>
    %c0_17 = arith.constant 0 : index
    %c0_18 = arith.constant 0 : index
    %38 = vector.load %arg5[%c0_17, %c0_18] : memref<2x128xf32, #tpu.memory_space<vmem>>, vector<2x128xf32>
    tpu.vector_store %arg5[%c0_17, %c0_18], %37 {strides = array<i32>} : memref<2x128xf32, #tpu.memory_space<vmem>>, vector<2x128xf32>,
    return
  }
}

module attributes {stable_mosaic.version = 11 : i64} {
  func.func @_layer_kernel(%arg0: i32, %arg1: memref<1x17x128xf32, #tpu.memory_space<vmem>>, %arg2: memref<1x128xf32, #tpu.memory_space<vmem>>, %arg3: memref<1x128xf32, #tpu.memory_space<vmem>>, %arg4: memref<128x384xbf16, #tpu.memory_space<vmem>>, %arg5: memref<4x32x128xbf16, #tpu.memory_space<vmem>>, %arg6: memref<1x128xf32, #tpu.memory_space<vmem>>, %arg7: memref<1x128xf32, #tpu.memory_space<vmem>>, %arg8: memref<1x128xf32, #tpu.memory_space<vmem>>, %arg9: memref<128x256xbf16, #tpu.memory_space<vmem>>, %arg10: memref<1x256xf32, #tpu.memory_space<vmem>>, %arg11: memref<256x128xbf16, #tpu.memory_space<vmem>>, %arg12: memref<1x128xf32, #tpu.memory_space<vmem>>, %arg13: memref<1x17x128xf32, #tpu.memory_space<vmem>>) attributes {dimension_semantics = [#tpu.dimension_semantics<parallel>], iteration_bounds = array<i64: 2>, scalar_prefetch = 0 : i64, scratch_operands = 0 : i64, tpu.core_type = #tpu.core_type<tc>, window_params = [{transform_indices = @transform_0, window_bounds = array<i64: 1, 17, 128>}, {pipeline_mode = #tpu.pipeline_mode<synchronous>, transform_indices = @transform_1, window_bounds = array<i64: 1, 128>}, {pipeline_mode = #tpu.pipeline_mode<synchronous>, transform_indices = @transform_2, window_bounds = array<i64: 1, 128>}, {pipeline_mode = #tpu.pipeline_mode<synchronous>, transform_indices = @transform_3, window_bounds = array<i64: 128, 384>}, {pipeline_mode = #tpu.pipeline_mode<synchronous>, transform_indices = @transform_4, window_bounds = array<i64: 4, 32, 128>}, {pipeline_mode = #tpu.pipeline_mode<synchronous>, transform_indices = @transform_5, window_bounds = array<i64: 1, 128>}, {pipeline_mode = #tpu.pipeline_mode<synchronous>, transform_indices = @transform_6, window_bounds = array<i64: 1, 128>}, {pipeline_mode = #tpu.pipeline_mode<synchronous>, transform_indices = @transform_7, window_bounds = array<i64: 1, 128>}, {pipeline_mode = #tpu.pipeline_mode<synchronous>, transform_indices = @transform_8, window_bounds = array<i64: 128, 256>}, {pipeline_mode = #tpu.pipeline_mode<synchronous>, transform_indices = @transform_9, window_bounds = array<i64: 1, 256>}, {pipeline_mode = #tpu.pipeline_mode<synchronous>, transform_indices = @transform_10, window_bounds = array<i64: 256, 128>}, {pipeline_mode = #tpu.pipeline_mode<synchronous>, transform_indices = @transform_11, window_bounds = array<i64: 1, 128>}, {transform_indices = @transform_12, window_bounds = array<i64: 1, 17, 128>}]} {
    %c0 = arith.constant 0 : index
    %c0_0 = arith.constant 0 : index
    %c0_1 = arith.constant 0 : index
    %0 = vector.load %arg1[%c0, %c0_0, %c0_1] : memref<1x17x128xf32, #tpu.memory_space<vmem>>, vector<1x17x128xf32>
    %1 = vector.shape_cast %0 : vector<1x17x128xf32> to vector<17x128xf32>
    %c0_2 = arith.constant 0 : index
    %c0_3 = arith.constant 0 : index
    %2 = vector.load %arg2[%c0_2, %c0_3] : memref<1x128xf32, #tpu.memory_space<vmem>>, vector<1x128xf32>
    %c0_4 = arith.constant 0 : index
    %c0_5 = arith.constant 0 : index
    %3 = vector.load %arg3[%c0_4, %c0_5] : memref<1x128xf32, #tpu.memory_space<vmem>>, vector<1x128xf32>
    %cst = arith.constant dense<0.000000e+00> : vector<17xf32>
    %4 = vector.multi_reduction <add>, %1, %cst [1] : vector<17x128xf32> to vector<17xf32>
    %5 = vector.shape_cast %4 : vector<17xf32> to vector<17x1xf32>
    %cst_6 = arith.constant 1.280000e+02 : f32
    %6 = vector.broadcast %cst_6 : f32 to vector<17x1xf32>
    %7 = arith.divf %5, %6 : vector<17x1xf32>
    %8 = vector.broadcast %7 : vector<17x1xf32> to vector<17x128xf32>
    %9 = arith.subf %1, %8 : vector<17x128xf32>
    %10 = arith.mulf %9, %9 : vector<17x128xf32>
    %cst_7 = arith.constant dense<0.000000e+00> : vector<17xf32>
    %11 = vector.multi_reduction <add>, %10, %cst_7 [1] : vector<17x128xf32> to vector<17xf32>
    %12 = vector.shape_cast %11 : vector<17xf32> to vector<17x1xf32>
    %cst_8 = arith.constant 1.280000e+02 : f32
    %13 = vector.broadcast %cst_8 : f32 to vector<17x1xf32>
    %14 = arith.divf %12, %13 : vector<17x1xf32>
    %15 = vector.broadcast %7 : vector<17x1xf32> to vector<17x128xf32>
    %16 = arith.subf %1, %15 : vector<17x128xf32>
    %cst_9 = arith.constant 9.99999974E-6 : f32
    %17 = vector.broadcast %cst_9 : f32 to vector<17x1xf32>
    %18 = arith.addf %14, %17 : vector<17x1xf32>
    %19 = math.rsqrt %18 : vector<17x1xf32>
    %20 = vector.broadcast %19 : vector<17x1xf32> to vector<17x128xf32>
    %21 = arith.mulf %16, %20 : vector<17x128xf32>
    %22 = vector.broadcast %2 : vector<1x128xf32> to vector<17x128xf32>
    %23 = arith.mulf %21, %22 : vector<17x128xf32>
    %24 = vector.broadcast %3 : vector<1x128xf32> to vector<17x128xf32>
    %25 = arith.addf %23, %24 : vector<17x128xf32>
    %26 = arith.truncf %25 : vector<17x128xf32> to vector<17x128xbf16>
    %c0_10 = arith.constant 0 : index
    %c0_11 = arith.constant 0 : index
    %27 = vector.load %arg4[%c0_10, %c0_11] : memref<128x384xbf16, #tpu.memory_space<vmem>>, vector<128x384xbf16>
    %cst_12 = arith.constant dense<0.000000e+00> : vector<17x384xf32>
    %28 = tpu.matmul %26, %27, %cst_12 {dimension_numbers = #tpu.dot_dimension_numbers<[1], [0], [0], [1], [0, 0, 1, 1], [], []>} : vector<17x128xbf16>, vector<128x384xbf16>, vector<17x384xf32> -> vector<17x384xf32>
    %c0_13 = arith.constant 0 : index
    %c0_14 = arith.constant 0 : index
    %29 = vector.load %arg6[%c0_13, %c0_14] : memref<1x128xf32, #tpu.memory_space<vmem>>, vector<1x128xf32>
    %30 = vector.broadcast %29 : vector<1x128xf32> to vector<17x128xf32>
    %31 = arith.addf %1, %30 : vector<17x128xf32>
    %32 = vector.extract_strided_slice %28 {offsets = [0, 0], sizes = [17, 32], strides = [1, 1]} : vector<17x384xf32> to vector<17x32xf32>
    %33 = vector.extract_strided_slice %28 {offsets = [0, 128], sizes = [17, 32], strides = [1, 1]} : vector<17x384xf32> to vector<17x32xf32>
    %34 = vector.extract_strided_slice %28 {offsets = [0, 256], sizes = [17, 32], strides = [1, 1]} : vector<17x384xf32> to vector<17x32xf32>
    %35 = arith.truncf %32 : vector<17x32xf32> to vector<17x32xbf16>
    %36 = arith.truncf %33 : vector<17x32xf32> to vector<17x32xbf16>
    %cst_15 = arith.constant dense<0.000000e+00> : vector<17x17xf32>
    %37 = tpu.matmul %35, %36, %cst_15 {dimension_numbers = #tpu.dot_dimension_numbers<[1], [1], [0], [0], [0, 0, 1, 0], [], []>} : vector<17x32xbf16>, vector<17x32xbf16>, vector<17x17xf32> -> vector<17x17xf32>
    %cst_16 = arith.constant dense<0xFF800000> : vector<17xf32>
    %38 = vector.multi_reduction <maximumf>, %37, %cst_16 [1] : vector<17x17xf32> to vector<17xf32>
    %39 = vector.shape_cast %38 : vector<17xf32> to vector<17x1xf32>
    %40 = vector.broadcast %39 : vector<17x1xf32> to vector<17x17xf32>
    %41 = arith.subf %37, %40 : vector<17x17xf32>
    %42 = math.exp %41 : vector<17x17xf32>
    %cst_17 = arith.constant dense<0.000000e+00> : vector<17xf32>
    %43 = vector.multi_reduction <add>, %42, %cst_17 [1] : vector<17x17xf32> to vector<17xf32>
    %44 = vector.shape_cast %43 : vector<17xf32> to vector<17x1xf32>
    %45 = tpu.reciprocal %44 {approx = true} : vector<17x1xf32> -> vector<17x1xf32>
    %46 = vector.broadcast %45 : vector<17x1xf32> to vector<17x17xf32>
    %47 = arith.mulf %42, %46 : vector<17x17xf32>
    %48 = arith.truncf %34 : vector<17x32xf32> to vector<17x32xbf16>
    %c0_18 = arith.constant 0 : index
    %c0_19 = arith.constant 0 : index
    %c0_20 = arith.constant 0 : index
    %49 = vector.load %arg5[%c0_18, %c0_19, %c0_20] : memref<4x32x128xbf16, #tpu.memory_space<vmem>>, vector<1x32x128xbf16>
    %50 = vector.shape_cast %49 : vector<1x32x128xbf16> to vector<32x128xbf16>
    %cst_21 = arith.constant dense<0.000000e+00> : vector<17x128xf32>
    %51 = tpu.matmul %48, %50, %cst_21 {dimension_numbers = #tpu.dot_dimension_numbers<[1], [0], [0], [1], [0, 0, 1, 1], [], []>} : vector<17x32xbf16>, vector<32x128xbf16>, vector<17x128xf32> -> vector<17x128xf32>
    %52 = arith.truncf %47 : vector<17x17xf32> to vector<17x17xbf16>
    %53 = arith.truncf %51 : vector<17x128xf32> to vector<17x128xbf16>
    %cst_22 = arith.constant dense<0.000000e+00> : vector<17x128xf32>
    %54 = tpu.matmul %52, %53, %cst_22 {dimension_numbers = #tpu.dot_dimension_numbers<[1], [0], [0], [1], [0, 0, 1, 1], [], []>} : vector<17x17xbf16>, vector<17x128xbf16>, vector<17x128xf32> -> vector<17x128xf32>
    %55 = arith.addf %31, %54 : vector<17x128xf32>
    %56 = vector.extract_strided_slice %28 {offsets = [0, 32], sizes = [17, 32], strides = [1, 1]} : vector<17x384xf32> to vector<17x32xf32>
    %57 = vector.extract_strided_slice %28 {offsets = [0, 160], sizes = [17, 32], strides = [1, 1]} : vector<17x384xf32> to vector<17x32xf32>
    %58 = vector.extract_strided_slice %28 {offsets = [0, 288], sizes = [17, 32], strides = [1, 1]} : vector<17x384xf32> to vector<17x32xf32>
    %59 = arith.truncf %56 : vector<17x32xf32> to vector<17x32xbf16>
    %60 = arith.truncf %57 : vector<17x32xf32> to vector<17x32xbf16>
    %cst_23 = arith.constant dense<0.000000e+00> : vector<17x17xf32>
    %61 = tpu.matmul %59, %60, %cst_23 {dimension_numbers = #tpu.dot_dimension_numbers<[1], [1], [0], [0], [0, 0, 1, 0], [], []>} : vector<17x32xbf16>, vector<17x32xbf16>, vector<17x17xf32> -> vector<17x17xf32>
    %cst_24 = arith.constant dense<0xFF800000> : vector<17xf32>
    %62 = vector.multi_reduction <maximumf>, %61, %cst_24 [1] : vector<17x17xf32> to vector<17xf32>
    %63 = vector.shape_cast %62 : vector<17xf32> to vector<17x1xf32>
    %64 = vector.broadcast %63 : vector<17x1xf32> to vector<17x17xf32>
    %65 = arith.subf %61, %64 : vector<17x17xf32>
    %66 = math.exp %65 : vector<17x17xf32>
    %cst_25 = arith.constant dense<0.000000e+00> : vector<17xf32>
    %67 = vector.multi_reduction <add>, %66, %cst_25 [1] : vector<17x17xf32> to vector<17xf32>
    %68 = vector.shape_cast %67 : vector<17xf32> to vector<17x1xf32>
    %69 = tpu.reciprocal %68 {approx = true} : vector<17x1xf32> -> vector<17x1xf32>
    %70 = vector.broadcast %69 : vector<17x1xf32> to vector<17x17xf32>
    %71 = arith.mulf %66, %70 : vector<17x17xf32>
    %72 = arith.truncf %58 : vector<17x32xf32> to vector<17x32xbf16>
    %c1 = arith.constant 1 : index
    %c0_26 = arith.constant 0 : index
    %c0_27 = arith.constant 0 : index
    %73 = vector.load %arg5[%c1, %c0_26, %c0_27] : memref<4x32x128xbf16, #tpu.memory_space<vmem>>, vector<1x32x128xbf16>
    %74 = vector.shape_cast %73 : vector<1x32x128xbf16> to vector<32x128xbf16>
    %cst_28 = arith.constant dense<0.000000e+00> : vector<17x128xf32>
    %75 = tpu.matmul %72, %74, %cst_28 {dimension_numbers = #tpu.dot_dimension_numbers<[1], [0], [0], [1], [0, 0, 1, 1], [], []>} : vector<17x32xbf16>, vector<32x128xbf16>, vector<17x128xf32> -> vector<17x128xf32>
    %76 = arith.truncf %71 : vector<17x17xf32> to vector<17x17xbf16>
    %77 = arith.truncf %75 : vector<17x128xf32> to vector<17x128xbf16>
    %cst_29 = arith.constant dense<0.000000e+00> : vector<17x128xf32>
    %78 = tpu.matmul %76, %77, %cst_29 {dimension_numbers = #tpu.dot_dimension_numbers<[1], [0], [0], [1], [0, 0, 1, 1], [], []>} : vector<17x17xbf16>, vector<17x128xbf16>, vector<17x128xf32> -> vector<17x128xf32>
    %79 = arith.addf %55, %78 : vector<17x128xf32>
    %80 = vector.extract_strided_slice %28 {offsets = [0, 64], sizes = [17, 32], strides = [1, 1]} : vector<17x384xf32> to vector<17x32xf32>
    %81 = vector.extract_strided_slice %28 {offsets = [0, 192], sizes = [17, 32], strides = [1, 1]} : vector<17x384xf32> to vector<17x32xf32>
    %82 = vector.extract_strided_slice %28 {offsets = [0, 320], sizes = [17, 32], strides = [1, 1]} : vector<17x384xf32> to vector<17x32xf32>
    %83 = arith.truncf %80 : vector<17x32xf32> to vector<17x32xbf16>
    %84 = arith.truncf %81 : vector<17x32xf32> to vector<17x32xbf16>
    %cst_30 = arith.constant dense<0.000000e+00> : vector<17x17xf32>
    %85 = tpu.matmul %83, %84, %cst_30 {dimension_numbers = #tpu.dot_dimension_numbers<[1], [1], [0], [0], [0, 0, 1, 0], [], []>} : vector<17x32xbf16>, vector<17x32xbf16>, vector<17x17xf32> -> vector<17x17xf32>
    %cst_31 = arith.constant dense<0xFF800000> : vector<17xf32>
    %86 = vector.multi_reduction <maximumf>, %85, %cst_31 [1] : vector<17x17xf32> to vector<17xf32>
    %87 = vector.shape_cast %86 : vector<17xf32> to vector<17x1xf32>
    %88 = vector.broadcast %87 : vector<17x1xf32> to vector<17x17xf32>
    %89 = arith.subf %85, %88 : vector<17x17xf32>
    %90 = math.exp %89 : vector<17x17xf32>
    %cst_32 = arith.constant dense<0.000000e+00> : vector<17xf32>
    %91 = vector.multi_reduction <add>, %90, %cst_32 [1] : vector<17x17xf32> to vector<17xf32>
    %92 = vector.shape_cast %91 : vector<17xf32> to vector<17x1xf32>
    %93 = tpu.reciprocal %92 {approx = true} : vector<17x1xf32> -> vector<17x1xf32>
    %94 = vector.broadcast %93 : vector<17x1xf32> to vector<17x17xf32>
    %95 = arith.mulf %90, %94 : vector<17x17xf32>
    %96 = arith.truncf %82 : vector<17x32xf32> to vector<17x32xbf16>
    %c2 = arith.constant 2 : index
    %c0_33 = arith.constant 0 : index
    %c0_34 = arith.constant 0 : index
    %97 = vector.load %arg5[%c2, %c0_33, %c0_34] : memref<4x32x128xbf16, #tpu.memory_space<vmem>>, vector<1x32x128xbf16>
    %98 = vector.shape_cast %97 : vector<1x32x128xbf16> to vector<32x128xbf16>
    %cst_35 = arith.constant dense<0.000000e+00> : vector<17x128xf32>
    %99 = tpu.matmul %96, %98, %cst_35 {dimension_numbers = #tpu.dot_dimension_numbers<[1], [0], [0], [1], [0, 0, 1, 1], [], []>} : vector<17x32xbf16>, vector<32x128xbf16>, vector<17x128xf32> -> vector<17x128xf32>
    %100 = arith.truncf %95 : vector<17x17xf32> to vector<17x17xbf16>
    %101 = arith.truncf %99 : vector<17x128xf32> to vector<17x128xbf16>
    %cst_36 = arith.constant dense<0.000000e+00> : vector<17x128xf32>
    %102 = tpu.matmul %100, %101, %cst_36 {dimension_numbers = #tpu.dot_dimension_numbers<[1], [0], [0], [1], [0, 0, 1, 1], [], []>} : vector<17x17xbf16>, vector<17x128xbf16>, vector<17x128xf32> -> vector<17x128xf32>
    %103 = arith.addf %79, %102 : vector<17x128xf32>
    %104 = vector.extract_strided_slice %28 {offsets = [0, 96], sizes = [17, 32], strides = [1, 1]} : vector<17x384xf32> to vector<17x32xf32>
    %105 = vector.extract_strided_slice %28 {offsets = [0, 224], sizes = [17, 32], strides = [1, 1]} : vector<17x384xf32> to vector<17x32xf32>
    %106 = vector.extract_strided_slice %28 {offsets = [0, 352], sizes = [17, 32], strides = [1, 1]} : vector<17x384xf32> to vector<17x32xf32>
    %107 = arith.truncf %104 : vector<17x32xf32> to vector<17x32xbf16>
    %108 = arith.truncf %105 : vector<17x32xf32> to vector<17x32xbf16>
    %cst_37 = arith.constant dense<0.000000e+00> : vector<17x17xf32>
    %109 = tpu.matmul %107, %108, %cst_37 {dimension_numbers = #tpu.dot_dimension_numbers<[1], [1], [0], [0], [0, 0, 1, 0], [], []>} : vector<17x32xbf16>, vector<17x32xbf16>, vector<17x17xf32> -> vector<17x17xf32>
    %cst_38 = arith.constant dense<0xFF800000> : vector<17xf32>
    %110 = vector.multi_reduction <maximumf>, %109, %cst_38 [1] : vector<17x17xf32> to vector<17xf32>
    %111 = vector.shape_cast %110 : vector<17xf32> to vector<17x1xf32>
    %112 = vector.broadcast %111 : vector<17x1xf32> to vector<17x17xf32>
    %113 = arith.subf %109, %112 : vector<17x17xf32>
    %114 = math.exp %113 : vector<17x17xf32>
    %cst_39 = arith.constant dense<0.000000e+00> : vector<17xf32>
    %115 = vector.multi_reduction <add>, %114, %cst_39 [1] : vector<17x17xf32> to vector<17xf32>
    %116 = vector.shape_cast %115 : vector<17xf32> to vector<17x1xf32>
    %117 = tpu.reciprocal %116 {approx = true} : vector<17x1xf32> -> vector<17x1xf32>
    %118 = vector.broadcast %117 : vector<17x1xf32> to vector<17x17xf32>
    %119 = arith.mulf %114, %118 : vector<17x17xf32>
    %120 = arith.truncf %106 : vector<17x32xf32> to vector<17x32xbf16>
    %c3 = arith.constant 3 : index
    %c0_40 = arith.constant 0 : index
    %c0_41 = arith.constant 0 : index
    %121 = vector.load %arg5[%c3, %c0_40, %c0_41] : memref<4x32x128xbf16, #tpu.memory_space<vmem>>, vector<1x32x128xbf16>
    %122 = vector.shape_cast %121 : vector<1x32x128xbf16> to vector<32x128xbf16>
    %cst_42 = arith.constant dense<0.000000e+00> : vector<17x128xf32>
    %123 = tpu.matmul %120, %122, %cst_42 {dimension_numbers = #tpu.dot_dimension_numbers<[1], [0], [0], [1], [0, 0, 1, 1], [], []>} : vector<17x32xbf16>, vector<32x128xbf16>, vector<17x128xf32> -> vector<17x128xf32>
    %124 = arith.truncf %119 : vector<17x17xf32> to vector<17x17xbf16>
    %125 = arith.truncf %123 : vector<17x128xf32> to vector<17x128xbf16>
    %cst_43 = arith.constant dense<0.000000e+00> : vector<17x128xf32>
    %126 = tpu.matmul %124, %125, %cst_43 {dimension_numbers = #tpu.dot_dimension_numbers<[1], [0], [0], [1], [0, 0, 1, 1], [], []>} : vector<17x17xbf16>, vector<17x128xbf16>, vector<17x128xf32> -> vector<17x128xf32>
    %127 = arith.addf %103, %126 : vector<17x128xf32>
    %c0_44 = arith.constant 0 : index
    %c0_45 = arith.constant 0 : index
    %128 = vector.load %arg7[%c0_44, %c0_45] : memref<1x128xf32, #tpu.memory_space<vmem>>, vector<1x128xf32>
    %c0_46 = arith.constant 0 : index
    %c0_47 = arith.constant 0 : index
    %129 = vector.load %arg8[%c0_46, %c0_47] : memref<1x128xf32, #tpu.memory_space<vmem>>, vector<1x128xf32>
    %cst_48 = arith.constant dense<0.000000e+00> : vector<17xf32>
    %130 = vector.multi_reduction <add>, %127, %cst_48 [1] : vector<17x128xf32> to vector<17xf32>
    %131 = vector.shape_cast %130 : vector<17xf32> to vector<17x1xf32>
    %cst_49 = arith.constant 1.280000e+02 : f32
    %132 = vector.broadcast %cst_49 : f32 to vector<17x1xf32>
    %133 = arith.divf %131, %132 : vector<17x1xf32>
    %134 = vector.broadcast %133 : vector<17x1xf32> to vector<17x128xf32>
    %135 = arith.subf %127, %134 : vector<17x128xf32>
    %136 = arith.mulf %135, %135 : vector<17x128xf32>
    %cst_50 = arith.constant dense<0.000000e+00> : vector<17xf32>
    %137 = vector.multi_reduction <add>, %136, %cst_50 [1] : vector<17x128xf32> to vector<17xf32>
    %138 = vector.shape_cast %137 : vector<17xf32> to vector<17x1xf32>
    %cst_51 = arith.constant 1.280000e+02 : f32
    %139 = vector.broadcast %cst_51 : f32 to vector<17x1xf32>
    %140 = arith.divf %138, %139 : vector<17x1xf32>
    %141 = vector.broadcast %133 : vector<17x1xf32> to vector<17x128xf32>
    %142 = arith.subf %127, %141 : vector<17x128xf32>
    %cst_52 = arith.constant 9.99999974E-6 : f32
    %143 = vector.broadcast %cst_52 : f32 to vector<17x1xf32>
    %144 = arith.addf %140, %143 : vector<17x1xf32>
    %145 = math.rsqrt %144 : vector<17x1xf32>
    %146 = vector.broadcast %145 : vector<17x1xf32> to vector<17x128xf32>
    %147 = arith.mulf %142, %146 : vector<17x128xf32>
    %148 = vector.broadcast %128 : vector<1x128xf32> to vector<17x128xf32>
    %149 = arith.mulf %147, %148 : vector<17x128xf32>
    %150 = vector.broadcast %129 : vector<1x128xf32> to vector<17x128xf32>
    %151 = arith.addf %149, %150 : vector<17x128xf32>
    %152 = arith.truncf %151 : vector<17x128xf32> to vector<17x128xbf16>
    %c0_53 = arith.constant 0 : index
    %c0_54 = arith.constant 0 : index
    %153 = vector.load %arg9[%c0_53, %c0_54] : memref<128x256xbf16, #tpu.memory_space<vmem>>, vector<128x256xbf16>
    %cst_55 = arith.constant dense<0.000000e+00> : vector<17x256xf32>
    %154 = tpu.matmul %152, %153, %cst_55 {dimension_numbers = #tpu.dot_dimension_numbers<[1], [0], [0], [1], [0, 0, 1, 1], [], []>} : vector<17x128xbf16>, vector<128x256xbf16>, vector<17x256xf32> -> vector<17x256xf32>
    %c0_56 = arith.constant 0 : index
    %c0_57 = arith.constant 0 : index
    %155 = vector.load %arg10[%c0_56, %c0_57] : memref<1x256xf32, #tpu.memory_space<vmem>>, vector<1x256xf32>
    %156 = vector.broadcast %155 : vector<1x256xf32> to vector<17x256xf32>
    %157 = arith.addf %154, %156 : vector<17x256xf32>
    %cst_58 = arith.constant 5.000000e-01 : f32
    %158 = vector.broadcast %cst_58 : f32 to vector<17x256xf32>
    %159 = arith.mulf %158, %157 : vector<17x256xf32>
    %cst_59 = arith.constant 4.471500e-02 : f32
    %160 = vector.broadcast %cst_59 : f32 to vector<17x256xf32>
    %161 = arith.mulf %160, %157 : vector<17x256xf32>
    %162 = arith.mulf %161, %157 : vector<17x256xf32>
    %163 = arith.mulf %162, %157 : vector<17x256xf32>
    %164 = arith.addf %157, %163 : vector<17x256xf32>
    %cst_60 = arith.constant 0.797884583 : f32
    %165 = vector.broadcast %cst_60 : f32 to vector<17x256xf32>
    %166 = arith.mulf %165, %164 : vector<17x256xf32>
    %167 = math.tanh %166 : vector<17x256xf32>
    %cst_61 = arith.constant 1.000000e+00 : f32
    %168 = vector.broadcast %cst_61 : f32 to vector<17x256xf32>
    %169 = arith.addf %168, %167 : vector<17x256xf32>
    %170 = arith.mulf %159, %169 : vector<17x256xf32>
    %171 = arith.truncf %170 : vector<17x256xf32> to vector<17x256xbf16>
    %c0_62 = arith.constant 0 : index
    %c0_63 = arith.constant 0 : index
    %172 = vector.load %arg11[%c0_62, %c0_63] : memref<256x128xbf16, #tpu.memory_space<vmem>>, vector<256x128xbf16>
    %cst_64 = arith.constant dense<0.000000e+00> : vector<17x128xf32>
    %173 = tpu.matmul %171, %172, %cst_64 {dimension_numbers = #tpu.dot_dimension_numbers<[1], [0], [0], [1], [0, 0, 1, 1], [], []>} : vector<17x256xbf16>, vector<256x128xbf16>, vector<17x128xf32> -> vector<17x128xf32>
    %c0_65 = arith.constant 0 : index
    %c0_66 = arith.constant 0 : index
    %174 = vector.load %arg12[%c0_65, %c0_66] : memref<1x128xf32, #tpu.memory_space<vmem>>, vector<1x128xf32>
    %175 = vector.broadcast %174 : vector<1x128xf32> to vector<17x128xf32>
    %176 = arith.addf %173, %175 : vector<17x128xf32>
    %177 = arith.addf %127, %176 : vector<17x128xf32>
    %c0_67 = arith.constant 0 : index
    %c0_68 = arith.constant 0 : index
    %c0_69 = arith.constant 0 : index
    %178 = vector.load %arg13[%c0_67, %c0_68, %c0_69] : memref<1x17x128xf32, #tpu.memory_space<vmem>>, vector<1x17x128xf32>
    %179 = vector.shape_cast %178 : vector<1x17x128xf32> to vector<17x128xf32>
    %180 = vector.shape_cast %177 : vector<17x128xf32> to vector<1x17x128xf32>
    tpu.vector_store %arg13[%c0_67, %c0_68, %c0_69], %180 {strides = array<i32>} : memref<1x17x128xf32, #tpu.memory_space<vmem>>, vector<1x17x128xf32>,
    return
  }
  func.func @transform_0(%arg0: i32) -> (i32, i32, i32) {
    %c0_i32 = arith.constant 0 : i32
    %c0_i32_0 = arith.constant 0 : i32
    %c0_i32_1 = arith.constant 0 : i32
    return %arg0, %c0_i32, %c0_i32_0 : i32, i32, i32
  }
  func.func @transform_1(%arg0: i32) -> (i32, i32) {
    %c0_i32 = arith.constant 0 : i32
    %c0_i32_0 = arith.constant 0 : i32
    %c0_i32_1 = arith.constant 0 : i32
    return %c0_i32, %c0_i32_0 : i32, i32
  }
  func.func @transform_2(%arg0: i32) -> (i32, i32) {
    %c0_i32 = arith.constant 0 : i32
    %c0_i32_0 = arith.constant 0 : i32
    %c0_i32_1 = arith.constant 0 : i32
    return %c0_i32, %c0_i32_0 : i32, i32
  }
  func.func @transform_3(%arg0: i32) -> (i32, i32) {
    %c0_i32 = arith.constant 0 : i32
    %c0_i32_0 = arith.constant 0 : i32
    %c0_i32_1 = arith.constant 0 : i32
    return %c0_i32, %c0_i32_0 : i32, i32
  }
  func.func @transform_4(%arg0: i32) -> (i32, i32, i32) {
    %c0_i32 = arith.constant 0 : i32
    %c0_i32_0 = arith.constant 0 : i32
    %c0_i32_1 = arith.constant 0 : i32
    %c0_i32_2 = arith.constant 0 : i32
    return %c0_i32, %c0_i32_0, %c0_i32_1 : i32, i32, i32
  }
  func.func @transform_5(%arg0: i32) -> (i32, i32) {
    %c0_i32 = arith.constant 0 : i32
    %c0_i32_0 = arith.constant 0 : i32
    %c0_i32_1 = arith.constant 0 : i32
    return %c0_i32, %c0_i32_0 : i32, i32
  }
  func.func @transform_6(%arg0: i32) -> (i32, i32) {
    %c0_i32 = arith.constant 0 : i32
    %c0_i32_0 = arith.constant 0 : i32
    %c0_i32_1 = arith.constant 0 : i32
    return %c0_i32, %c0_i32_0 : i32, i32
  }
  func.func @transform_7(%arg0: i32) -> (i32, i32) {
    %c0_i32 = arith.constant 0 : i32
    %c0_i32_0 = arith.constant 0 : i32
    %c0_i32_1 = arith.constant 0 : i32
    return %c0_i32, %c0_i32_0 : i32, i32
  }
  func.func @transform_8(%arg0: i32) -> (i32, i32) {
    %c0_i32 = arith.constant 0 : i32
    %c0_i32_0 = arith.constant 0 : i32
    %c0_i32_1 = arith.constant 0 : i32
    return %c0_i32, %c0_i32_0 : i32, i32
  }
  func.func @transform_9(%arg0: i32) -> (i32, i32) {
    %c0_i32 = arith.constant 0 : i32
    %c0_i32_0 = arith.constant 0 : i32
    %c0_i32_1 = arith.constant 0 : i32
    return %c0_i32, %c0_i32_0 : i32, i32
  }
  func.func @transform_10(%arg0: i32) -> (i32, i32) {
    %c0_i32 = arith.constant 0 : i32
    %c0_i32_0 = arith.constant 0 : i32
    %c0_i32_1 = arith.constant 0 : i32
    return %c0_i32, %c0_i32_0 : i32, i32
  }
  func.func @transform_11(%arg0: i32) -> (i32, i32) {
    %c0_i32 = arith.constant 0 : i32
    %c0_i32_0 = arith.constant 0 : i32
    %c0_i32_1 = arith.constant 0 : i32
    return %c0_i32, %c0_i32_0 : i32, i32
  }
  func.func @transform_12(%arg0: i32) -> (i32, i32, i32) {
    %c0_i32 = arith.constant 0 : i32
    %c0_i32_0 = arith.constant 0 : i32
    %c0_i32_1 = arith.constant 0 : i32
    return %arg0, %c0_i32, %c0_i32_0 : i32, i32, i32
  }
}

module attributes {stable_mosaic.version = 11 : i64} {
  func.func @_patch_embed_kernel(%arg0: i32, %arg1: memref<1x16x48xf32, #tpu.memory_space<vmem>>, %arg2: memref<1x48xf32, #tpu.memory_space<vmem>>, %arg3: memref<1x48xf32, #tpu.memory_space<vmem>>, %arg4: memref<48x128xbf16, #tpu.memory_space<vmem>>, %arg5: memref<1x128xf32, #tpu.memory_space<vmem>>, %arg6: memref<1x128xf32, #tpu.memory_space<vmem>>, %arg7: memref<1x128xf32, #tpu.memory_space<vmem>>, %arg8: memref<1x16x128xf32, #tpu.memory_space<vmem>>, %arg9: memref<1x1x128xf32, #tpu.memory_space<vmem>>, %arg10: memref<1x17x128xf32, #tpu.memory_space<vmem>>) attributes {dimension_semantics = [#tpu.dimension_semantics<parallel>], iteration_bounds = array<i64: 2>, scalar_prefetch = 0 : i64, scratch_operands = 0 : i64, tpu.core_type = #tpu.core_type<tc>, window_params = [{transform_indices = @transform_0, window_bounds = array<i64: 1, 16, 48>}, {pipeline_mode = #tpu.pipeline_mode<synchronous>, transform_indices = @transform_1, window_bounds = array<i64: 1, 48>}, {pipeline_mode = #tpu.pipeline_mode<synchronous>, transform_indices = @transform_2, window_bounds = array<i64: 1, 48>}, {pipeline_mode = #tpu.pipeline_mode<synchronous>, transform_indices = @transform_3, window_bounds = array<i64: 48, 128>}, {pipeline_mode = #tpu.pipeline_mode<synchronous>, transform_indices = @transform_4, window_bounds = array<i64: 1, 128>}, {pipeline_mode = #tpu.pipeline_mode<synchronous>, transform_indices = @transform_5, window_bounds = array<i64: 1, 128>}, {pipeline_mode = #tpu.pipeline_mode<synchronous>, transform_indices = @transform_6, window_bounds = array<i64: 1, 128>}, {pipeline_mode = #tpu.pipeline_mode<synchronous>, transform_indices = @transform_7, window_bounds = array<i64: 1, 16, 128>}, {pipeline_mode = #tpu.pipeline_mode<synchronous>, transform_indices = @transform_8, window_bounds = array<i64: 1, 1, 128>}, {transform_indices = @transform_9, window_bounds = array<i64: 1, 17, 128>}]} {
    %c0 = arith.constant 0 : index
    %c0_0 = arith.constant 0 : index
    %c0_1 = arith.constant 0 : index
    %0 = vector.load %arg1[%c0, %c0_0, %c0_1] : memref<1x16x48xf32, #tpu.memory_space<vmem>>, vector<1x16x48xf32>
    %1 = vector.shape_cast %0 : vector<1x16x48xf32> to vector<16x48xf32>
    %c0_2 = arith.constant 0 : index
    %c0_3 = arith.constant 0 : index
    %2 = vector.load %arg2[%c0_2, %c0_3] : memref<1x48xf32, #tpu.memory_space<vmem>>, vector<1x48xf32>
    %c0_4 = arith.constant 0 : index
    %c0_5 = arith.constant 0 : index
    %3 = vector.load %arg3[%c0_4, %c0_5] : memref<1x48xf32, #tpu.memory_space<vmem>>, vector<1x48xf32>
    %cst = arith.constant dense<0.000000e+00> : vector<16xf32>
    %4 = vector.multi_reduction <add>, %1, %cst [1] : vector<16x48xf32> to vector<16xf32>
    %5 = vector.shape_cast %4 : vector<16xf32> to vector<16x1xf32>
    %cst_6 = arith.constant 4.800000e+01 : f32
    %6 = vector.broadcast %cst_6 : f32 to vector<16x1xf32>
    %7 = arith.divf %5, %6 : vector<16x1xf32>
    %8 = vector.broadcast %7 : vector<16x1xf32> to vector<16x48xf32>
    %9 = arith.subf %1, %8 : vector<16x48xf32>
    %10 = arith.mulf %9, %9 : vector<16x48xf32>
    %cst_7 = arith.constant dense<0.000000e+00> : vector<16xf32>
    %11 = vector.multi_reduction <add>, %10, %cst_7 [1] : vector<16x48xf32> to vector<16xf32>
    %12 = vector.shape_cast %11 : vector<16xf32> to vector<16x1xf32>
    %cst_8 = arith.constant 4.800000e+01 : f32
    %13 = vector.broadcast %cst_8 : f32 to vector<16x1xf32>
    %14 = arith.divf %12, %13 : vector<16x1xf32>
    %15 = vector.broadcast %7 : vector<16x1xf32> to vector<16x48xf32>
    %16 = arith.subf %1, %15 : vector<16x48xf32>
    %cst_9 = arith.constant 9.99999974E-6 : f32
    %17 = vector.broadcast %cst_9 : f32 to vector<16x1xf32>
    %18 = arith.addf %14, %17 : vector<16x1xf32>
    %19 = math.rsqrt %18 : vector<16x1xf32>
    %20 = vector.broadcast %19 : vector<16x1xf32> to vector<16x48xf32>
    %21 = arith.mulf %16, %20 : vector<16x48xf32>
    %22 = vector.broadcast %2 : vector<1x48xf32> to vector<16x48xf32>
    %23 = arith.mulf %21, %22 : vector<16x48xf32>
    %24 = vector.broadcast %3 : vector<1x48xf32> to vector<16x48xf32>
    %25 = arith.addf %23, %24 : vector<16x48xf32>
    %26 = arith.truncf %25 : vector<16x48xf32> to vector<16x48xbf16>
    %c0_10 = arith.constant 0 : index
    %c0_11 = arith.constant 0 : index
    %27 = vector.load %arg4[%c0_10, %c0_11] : memref<48x128xbf16, #tpu.memory_space<vmem>>, vector<48x128xbf16>
    %cst_12 = arith.constant dense<0.000000e+00> : vector<16x128xf32>
    %28 = tpu.matmul %26, %27, %cst_12 {dimension_numbers = #tpu.dot_dimension_numbers<[1], [0], [0], [1], [0, 0, 1, 1], [], []>} : vector<16x48xbf16>, vector<48x128xbf16>, vector<16x128xf32> -> vector<16x128xf32>
    %c0_13 = arith.constant 0 : index
    %c0_14 = arith.constant 0 : index
    %29 = vector.load %arg5[%c0_13, %c0_14] : memref<1x128xf32, #tpu.memory_space<vmem>>, vector<1x128xf32>
    %30 = vector.broadcast %29 : vector<1x128xf32> to vector<16x128xf32>
    %31 = arith.addf %28, %30 : vector<16x128xf32>
    %c0_15 = arith.constant 0 : index
    %c0_16 = arith.constant 0 : index
    %32 = vector.load %arg6[%c0_15, %c0_16] : memref<1x128xf32, #tpu.memory_space<vmem>>, vector<1x128xf32>
    %c0_17 = arith.constant 0 : index
    %c0_18 = arith.constant 0 : index
    %33 = vector.load %arg7[%c0_17, %c0_18] : memref<1x128xf32, #tpu.memory_space<vmem>>, vector<1x128xf32>
    %cst_19 = arith.constant dense<0.000000e+00> : vector<16xf32>
    %34 = vector.multi_reduction <add>, %31, %cst_19 [1] : vector<16x128xf32> to vector<16xf32>
    %35 = vector.shape_cast %34 : vector<16xf32> to vector<16x1xf32>
    %cst_20 = arith.constant 1.280000e+02 : f32
    %36 = vector.broadcast %cst_20 : f32 to vector<16x1xf32>
    %37 = arith.divf %35, %36 : vector<16x1xf32>
    %38 = vector.broadcast %37 : vector<16x1xf32> to vector<16x128xf32>
    %39 = arith.subf %31, %38 : vector<16x128xf32>
    %40 = arith.mulf %39, %39 : vector<16x128xf32>
    %cst_21 = arith.constant dense<0.000000e+00> : vector<16xf32>
    %41 = vector.multi_reduction <add>, %40, %cst_21 [1] : vector<16x128xf32> to vector<16xf32>
    %42 = vector.shape_cast %41 : vector<16xf32> to vector<16x1xf32>
    %cst_22 = arith.constant 1.280000e+02 : f32
    %43 = vector.broadcast %cst_22 : f32 to vector<16x1xf32>
    %44 = arith.divf %42, %43 : vector<16x1xf32>
    %45 = vector.broadcast %37 : vector<16x1xf32> to vector<16x128xf32>
    %46 = arith.subf %31, %45 : vector<16x128xf32>
    %cst_23 = arith.constant 9.99999974E-6 : f32
    %47 = vector.broadcast %cst_23 : f32 to vector<16x1xf32>
    %48 = arith.addf %44, %47 : vector<16x1xf32>
    %49 = math.rsqrt %48 : vector<16x1xf32>
    %50 = vector.broadcast %49 : vector<16x1xf32> to vector<16x128xf32>
    %51 = arith.mulf %46, %50 : vector<16x128xf32>
    %52 = vector.broadcast %32 : vector<1x128xf32> to vector<16x128xf32>
    %53 = arith.mulf %51, %52 : vector<16x128xf32>
    %54 = vector.broadcast %33 : vector<1x128xf32> to vector<16x128xf32>
    %55 = arith.addf %53, %54 : vector<16x128xf32>
    %c0_24 = arith.constant 0 : index
    %c0_25 = arith.constant 0 : index
    %c0_26 = arith.constant 0 : index
    %56 = vector.load %arg9[%c0_24, %c0_25, %c0_26] : memref<1x1x128xf32, #tpu.memory_space<vmem>>, vector<1x1x128xf32>
    %57 = vector.shape_cast %56 : vector<1x1x128xf32> to vector<1x128xf32>
    %c0_27 = arith.constant 0 : index
    %c0_28 = arith.constant 0 : index
    %c0_29 = arith.constant 0 : index
    %58 = vector.load %arg8[%c0_27, %c0_28, %c0_29] : memref<1x16x128xf32, #tpu.memory_space<vmem>>, vector<1x16x128xf32>
    %59 = vector.shape_cast %58 : vector<1x16x128xf32> to vector<16x128xf32>
    %60 = arith.addf %55, %59 : vector<16x128xf32>
    %61 = tpu.concatenate %57, %60 in 0 : vector<1x128xf32>, vector<16x128xf32> -> vector<17x128xf32>
    %c0_30 = arith.constant 0 : index
    %c0_31 = arith.constant 0 : index
    %c0_32 = arith.constant 0 : index
    %62 = vector.load %arg10[%c0_30, %c0_31, %c0_32] : memref<1x17x128xf32, #tpu.memory_space<vmem>>, vector<1x17x128xf32>
    %63 = vector.shape_cast %62 : vector<1x17x128xf32> to vector<17x128xf32>
    %64 = vector.shape_cast %61 : vector<17x128xf32> to vector<1x17x128xf32>
    tpu.vector_store %arg10[%c0_30, %c0_31, %c0_32], %64 {strides = array<i32>} : memref<1x17x128xf32, #tpu.memory_space<vmem>>, vector<1x17x128xf32>,
    return
  }
  func.func @transform_0(%arg0: i32) -> (i32, i32, i32) {
    %c0_i32 = arith.constant 0 : i32
    %c0_i32_0 = arith.constant 0 : i32
    %c0_i32_1 = arith.constant 0 : i32
    return %arg0, %c0_i32, %c0_i32_0 : i32, i32, i32
  }
  func.func @transform_1(%arg0: i32) -> (i32, i32) {
    %c0_i32 = arith.constant 0 : i32
    %c0_i32_0 = arith.constant 0 : i32
    %c0_i32_1 = arith.constant 0 : i32
    return %c0_i32, %c0_i32_0 : i32, i32
  }
  func.func @transform_2(%arg0: i32) -> (i32, i32) {
    %c0_i32 = arith.constant 0 : i32
    %c0_i32_0 = arith.constant 0 : i32
    %c0_i32_1 = arith.constant 0 : i32
    return %c0_i32, %c0_i32_0 : i32, i32
  }
  func.func @transform_3(%arg0: i32) -> (i32, i32) {
    %c0_i32 = arith.constant 0 : i32
    %c0_i32_0 = arith.constant 0 : i32
    %c0_i32_1 = arith.constant 0 : i32
    return %c0_i32, %c0_i32_0 : i32, i32
  }
  func.func @transform_4(%arg0: i32) -> (i32, i32) {
    %c0_i32 = arith.constant 0 : i32
    %c0_i32_0 = arith.constant 0 : i32
    %c0_i32_1 = arith.constant 0 : i32
    return %c0_i32, %c0_i32_0 : i32, i32
  }
  func.func @transform_5(%arg0: i32) -> (i32, i32) {
    %c0_i32 = arith.constant 0 : i32
    %c0_i32_0 = arith.constant 0 : i32
    %c0_i32_1 = arith.constant 0 : i32
    return %c0_i32, %c0_i32_0 : i32, i32
  }
  func.func @transform_6(%arg0: i32) -> (i32, i32) {
    %c0_i32 = arith.constant 0 : i32
    %c0_i32_0 = arith.constant 0 : i32
    %c0_i32_1 = arith.constant 0 : i32
    return %c0_i32, %c0_i32_0 : i32, i32
  }
  func.func @transform_7(%arg0: i32) -> (i32, i32, i32) {
    %c0_i32 = arith.constant 0 : i32
    %c0_i32_0 = arith.constant 0 : i32
    %c0_i32_1 = arith.constant 0 : i32
    %c0_i32_2 = arith.constant 0 : i32
    return %c0_i32, %c0_i32_0, %c0_i32_1 : i32, i32, i32
  }
  func.func @transform_8(%arg0: i32) -> (i32, i32, i32) {
    %c0_i32 = arith.constant 0 : i32
    %c0_i32_0 = arith.constant 0 : i32
    %c0_i32_1 = arith.constant 0 : i32
    %c0_i32_2 = arith.constant 0 : i32
    return %c0_i32, %c0_i32_0, %c0_i32_1 : i32, i32, i32
  }
  func.func @transform_9(%arg0: i32) -> (i32, i32, i32) {
    %c0_i32 = arith.constant 0 : i32
    %c0_i32_0 = arith.constant 0 : i32
    %c0_i32_1 = arith.constant 0 : i32
    return %arg0, %c0_i32, %c0_i32_0 : i32, i32, i32
  }
}

</mosaic_0001>

<llo_original>
// kernel: vitnet_forward.4
$region0: #{vitnet_forward.4}
  #allocation0 [shape = 'u32[]', space=smem, size = 0x4, offset = 0x4, fixed_abs, tag = 'smem constant byte address 0x4 - core index']
  #allocation1 [shape = 'u32[72,128]{1,0:T(1,128)}', space=vmem, size = 0x9000, scoped, tag = 'internal scratch']
  %s0 = inlined_call_operand.vmem [shape: f32[2,16,48], index: 0, kind: input, shape index: {}]
  %s1 = inlined_call_operand.vmem [shape: f32[1,48], index: 1, kind: input, shape index: {}]
  %s2 = inlined_call_operand.vmem [shape: f32[1,48], index: 2, kind: input, shape index: {}]
  %s3 = inlined_call_operand.vmem [shape: bf16[48,128], index: 3, kind: input, shape index: {}]
  %s4 = inlined_call_operand.vmem [shape: f32[1,128], index: 4, kind: input, shape index: {}]
  %s5 = inlined_call_operand.vmem [shape: f32[1,128], index: 5, kind: input, shape index: {}]
  %s6 = inlined_call_operand.vmem [shape: f32[1,128], index: 6, kind: input, shape index: {}]
  %s7 = inlined_call_operand.vmem [shape: f32[1,16,128], index: 7, kind: input, shape index: {}]
  %s8 = inlined_call_operand.vmem [shape: f32[1,1,128], index: 8, kind: input, shape index: {}]
  %s9 = inlined_call_operand.vmem [shape: f32[2,17,128], index: 9, kind: output, shape index: {}]
  %s10 = sld [smem:[#allocation0]]
  $region69: #{vitnet_forward.4} parent=0
    _
  %s12 = ssub.s32 1, %s10
  %s13 = scalar_select 0, %s12, %s10
  loop: start=0, step=1, limit=4
  $region2: #{vitnet_forward.4} parent=0 // loop_pre_header
    _
  $region3: #{vitnet_forward.4} parent=0 // loop_header
    %s15 = sphi 0, %s19
    %p16 = scmp.ge.s32.totalorder %s15, 4
    %s25 = sphi 0, %s27
    %s28 = sphi 0, %s25
    %s29 = sphi 0, %s28
    %s45 = sphi 0, %s29
    %s49 = sphi 0, %s49
    %s51 = sphi 0, %s49
    %s52 = sphi 0, %s51
    %s66 = sphi 0, %s52
    %s70 = sphi 0, %s70
    %s72 = sphi 0, %s70
    %s73 = sphi 0, %s72
    %s87 = sphi 0, %s73
    %s91 = sphi 0, %s91
    %s93 = sphi 0, %s91
    %s94 = sphi 0, %s93
    %s108 = sphi 0, %s94
    %s112 = sphi 0, %s112
    %s114 = sphi 0, %s112
    %s115 = sphi 0, %s114
    %s129 = sphi 0, %s115
    %s133 = sphi 0, %s133
    %s135 = sphi 0, %s133
    %s136 = sphi 0, %s135
    %s150 = sphi 0, %s136
    %s154 = sphi 0, %s154
    %s156 = sphi 0, %s154
    %s157 = sphi 0, %s156
    %s171 = sphi 0, %s157
    %s175 = sphi 0, %s175
    %s177 = sphi 0, %s175
    %s178 = sphi 0, %s177
    %s192 = sphi 0, %s178
    %s196 = sphi 0, %s196
    %s198 = sphi 0, %s196
    %s199 = sphi 0, %s198
    %s213 = sphi 0, %s199
    %s219 = sphi 0, %s221
    %s222 = sphi 0, %s219
    %s223 = sphi 0, %s222
    %s239 = sphi 0, %s223
  $region4: #{vitnet_forward.4} parent=0 // loop_header_branch
    %18 = sbr.rel (%p16) target = $region8
  $region5: #{vitnet_forward.4} parent=0 // loop_body
    %s20 = ssub.s32 %s15, 1
    %s21 = ssub.s32 %s15, 2
    %s22 = sadd.s32 %s15, 1
    %s23 = ssub.s32 %s15, %s22
    %p24 = scmp.eq.s32.totalorder %s23, 0
    %s26 = sadd.s32 %s25, 1
    %s27 = scalar_select %p24, %s25, %s26
    %p30 = pneg %p24
    %p31 = scmp.eq.s32.totalorder %s15, 1
    %p32 = por %p30, %p31
    %p33 = scmp.ne.s32.totalorder %s25, %s28
    %p34 = scmp.eq.s32.totalorder %s15, 0
    %p35 = por %p33, %p34
    %p36 = scmp.ne.s32.totalorder %s25, %s28
    %p37 = scmp.eq.s32.totalorder %s20, 1
    %p38 = por %p36, %p37
    %p39 = scmp.ne.s32.totalorder %s28, %s29
    %p40 = scmp.eq.s32.totalorder %s20, 0
    %p41 = por %p39, %p40
    %p42 = scmp.ne.s32.totalorder %s28, %s29
    %p43 = scmp.eq.s32.totalorder %s21, 1
    %p44 = por %p42, %p43
    %p46 = scmp.ne.s32.totalorder %s29, %s45
    %p47 = scmp.eq.s32.totalorder %s21, 0
    %p48 = por %p46, %p47
    %s50 = sadd.s32 %s49, 1
    %p53 = scmp.eq.s32.totalorder %s15, 1
    %p54 = scmp.ne.s32.totalorder %s49, %s51
    %p55 = scmp.eq.s32.totalorder %s15, 0
    %p56 = por %p54, %p55
    %p57 = scmp.ne.s32.totalorder %s49, %s51
    %p58 = scmp.eq.s32.totalorder %s20, 1
    %p59 = por %p57, %p58
    %p60 = scmp.ne.s32.totalorder %s51, %s52
    %p61 = scmp.eq.s32.totalorder %s20, 0
    %p62 = por %p60, %p61
    %p63 = scmp.ne.s32.totalorder %s51, %s52
    %p64 = scmp.eq.s32.totalorder %s21, 1
    %p65 = por %p63, %p64
    %p67 = scmp.ne.s32.totalorder %s52, %s66
    %p68 = scmp.eq.s32.totalorder %s21, 0
    %p69 = por %p67, %p68
    %s71 = sadd.s32 %s70, 1
    %p74 = scmp.eq.s32.totalorder %s15, 1
    %p75 = scmp.ne.s32.totalorder %s70, %s72
    %p76 = scmp.eq.s32.totalorder %s15, 0
    %p77 = por %p75, %p76
    %p78 = scmp.ne.s32.totalorder %s70, %s72
    %p79 = scmp.eq.s32.totalorder %s20, 1
    %p80 = por %p78, %p79
    %p81 = scmp.ne.s32.totalorder %s72, %s73
    %p82 = scmp.eq.s32.totalorder %s20, 0
    %p83 = por %p81, %p82
    %p84 = scmp.ne.s32.totalorder %s72, %s73
    %p85 = scmp.eq.s32.totalorder %s21, 1
    %p86 = por %p84, %p85
    %p88 = scmp.ne.s32.totalorder %s73, %s87
    %p89 = scmp.eq.s32.totalorder %s21, 0
    %p90 = por %p88, %p89
    %s92 = sadd.s32 %s91, 1
    %p95 = scmp.eq.s32.totalorder %s15, 1
    %p96 = scmp.ne.s32.totalorder %s91, %s93
    %p97 = scmp.eq.s32.totalorder %s15, 0
    %p98 = por %p96, %p97
    %p99 = scmp.ne.s32.totalorder %s91, %s93
    %p100 = scmp.eq.s32.totalorder %s20, 1
    %p101 = por %p99, %p100
    %p102 = scmp.ne.s32.totalorder %s93, %s94
    %p103 = scmp.eq.s32.totalorder %s20, 0
    %p104 = por %p102, %p103
    %p105 = scmp.ne.s32.totalorder %s93, %s94
    %p106 = scmp.eq.s32.totalorder %s21, 1
    %p107 = por %p105, %p106
    %p109 = scmp.ne.s32.totalorder %s94, %s108
    %p110 = scmp.eq.s32.totalorder %s21, 0
    %p111 = por %p109, %p110
    %s113 = sadd.s32 %s112, 1
    %p116 = scmp.eq.s32.totalorder %s15, 1
    %p117 = scmp.ne.s32.totalorder %s112, %s114
    %p118 = scmp.eq.s32.totalorder %s15, 0
    %p119 = por %p117, %p118
    %p120 = scmp.ne.s32.totalorder %s112, %s114
    %p121 = scmp.eq.s32.totalorder %s20, 1
    %p122 = por %p120, %p121
    %p123 = scmp.ne.s32.totalorder %s114, %s115
    %p124 = scmp.eq.s32.totalorder %s20, 0
    %p125 = por %p123, %p124
    %p126 = scmp.ne.s32.totalorder %s114, %s115
    %p127 = scmp.eq.s32.totalorder %s21, 1
    %p128 = por %p126, %p127
    %p130 = scmp.ne.s32.totalorder %s115, %s129
    %p131 = scmp.eq.s32.totalorder %s21, 0
    %p132 = por %p130, %p131
    %s134 = sadd.s32 %s133, 1
    %p137 = scmp.eq.s32.totalorder %s15, 1
    %p138 = scmp.ne.s32.totalorder %s133, %s135
    %p139 = scmp.eq.s32.totalorder %s15, 0
    %p140 = por %p138, %p139
    %p141 = scmp.ne.s32.totalorder %s133, %s135
    %p142 = scmp.eq.s32.totalorder %s20, 1
    %p143 = por %p141, %p142
    %p144 = scmp.ne.s32.totalorder %s135, %s136
    %p145 = scmp.eq.s32.totalorder %s20, 0
    %p146 = por %p144, %p145
    %p147 = scmp.ne.s32.totalorder %s135, %s136
    %p148 = scmp.eq.s32.totalorder %s21, 1
    %p149 = por %p147, %p148
    %p151 = scmp.ne.s32.totalorder %s136, %s150
    %p152 = scmp.eq.s32.totalorder %s21, 0
    %p153 = por %p151, %p152
    %s155 = sadd.s32 %s154, 1
    %p158 = scmp.eq.s32.totalorder %s15, 1
    %p159 = scmp.ne.s32.totalorder %s154, %s156
    %p160 = scmp.eq.s32.totalorder %s15, 0
    %p161 = por %p159, %p160
    %p162 = scmp.ne.s32.totalorder %s154, %s156
    %p163 = scmp.eq.s32.totalorder %s20, 1
    %p164 = por %p162, %p163
    %p165 = scmp.ne.s32.totalorder %s156, %s157
    %p166 = scmp.eq.s32.totalorder %s20, 0
    %p167 = por %p165, %p166
    %p168 = scmp.ne.s32.totalorder %s156, %s157
    %p169 = scmp.eq.s32.totalorder %s21, 1
    %p170 = por %p168, %p169
    %p172 = scmp.ne.s32.totalorder %s157, %s171
    %p173 = scmp.eq.s32.totalorder %s21, 0
    %p174 = por %p172, %p173
    %s176 = sadd.s32 %s175, 1
    %p179 = scmp.eq.s32.totalorder %s15, 1
    %p180 = scmp.ne.s32.totalorder %s175, %s177
    %p181 = scmp.eq.s32.totalorder %s15, 0
    %p182 = por %p180, %p181
    %p183 = scmp.ne.s32.totalorder %s175, %s177
    %p184 = scmp.eq.s32.totalorder %s20, 1
    %p185 = por %p183, %p184
    %p186 = scmp.ne.s32.totalorder %s177, %s178
    %p187 = scmp.eq.s32.totalorder %s20, 0
    %p188 = por %p186, %p187
    %p189 = scmp.ne.s32.totalorder %s177, %s178
    %p190 = scmp.eq.s32.totalorder %s21, 1
    %p191 = por %p189, %p190
    %p193 = scmp.ne.s32.totalorder %s178, %s192
    %p194 = scmp.eq.s32.totalorder %s21, 0
    %p195 = por %p193, %p194
    %s197 = sadd.s32 %s196, 1
    %p200 = scmp.eq.s32.totalorder %s15, 1
    %p201 = scmp.ne.s32.totalorder %s196, %s198
    %p202 = scmp.eq.s32.totalorder %s15, 0
    %p203 = por %p201, %p202
    %p204 = scmp.ne.s32.totalorder %s196, %s198
    %p205 = scmp.eq.s32.totalorder %s20, 1
    %p206 = por %p204, %p205
    %p207 = scmp.ne.s32.totalorder %s198, %s199
    %p208 = scmp.eq.s32.totalorder %s20, 0
    %p209 = por %p207, %p208
    %p210 = scmp.ne.s32.totalorder %s198, %s199
    %p211 = scmp.eq.s32.totalorder %s21, 1
    %p212 = por %p210, %p211
    %p214 = scmp.ne.s32.totalorder %s199, %s213
    %p215 = scmp.eq.s32.totalorder %s21, 0
    %p216 = por %p214, %p215
    %s217 = ssub.s32 %s15, %s22
    %p218 = scmp.eq.s32.totalorder %s217, 0
    %s220 = sadd.s32 %s219, 1
    %s221 = scalar_select %p218, %s219, %s220
    %p224 = pneg %p218
    %p225 = scmp.eq.s32.totalorder %s15, 1
    %p226 = por %p224, %p225
    %p227 = scmp.ne.s32.totalorder %s219, %s222
    %p228 = scmp.eq.s32.totalorder %s15, 0
    %p229 = por %p227, %p228
    %p230 = scmp.ne.s32.totalorder %s219, %s222
    %p231 = scmp.eq.s32.totalorder %s20, 1
    %p232 = por %p230, %p231
    %p233 = scmp.ne.s32.totalorder %s222, %s223
    %p234 = scmp.eq.s32.totalorder %s20, 0
    %p235 = por %p233, %p234
    %p236 = scmp.ne.s32.totalorder %s222, %s223
    %p237 = scmp.eq.s32.totalorder %s21, 1
    %p238 = por %p236, %p237
    %p240 = scmp.ne.s32.totalorder %s223, %s239
    %p241 = scmp.eq.s32.totalorder %s21, 0
    %p242 = por %p240, %p241
    %p243 = scmp.le.s32.totalorder 1, %s15
    %p244 = scmp.lt.s32.totalorder %s15, 3
    %p245 = pnand %p243, %p244
    %p246 = pneg %p245
    // Predicated region
    $region9: #{vitnet_forward.4} parent=5 // pred_check
      _
    $region10: #{vitnet_forward.4} parent=5 // pred_check_branch
      %248 = sbr.rel (%p245) target = $region12
    $region11: #{vitnet_forward.4} parent=5 // pred_region
      %s249 = ssub.s32 %s15, 1
      // Predicated region
      $region13: #{vitnet_forward.4} parent=11 // pred_check
        %p250 = pneg %p62
      $region14: #{vitnet_forward.4} parent=11 // pred_check_branch
        %252 = sbr.rel (%p250) target = $region16
      $region15: #{vitnet_forward.4} parent=11 // pred_region
        _
      $region16: #{vitnet_forward.4} parent=11 // pred_fallthru
        _
      // Predicated region
      $region17: #{vitnet_forward.4} parent=11 // pred_check
        %p253 = pneg %p83
      $region18: #{vitnet_forward.4} parent=11 // pred_check_branch
        %255 = sbr.rel (%p253) target = $region20
      $region19: #{vitnet_forward.4} parent=11 // pred_region
        _
      $region20: #{vitnet_forward.4} parent=11 // pred_fallthru
        _
      // Predicated region
      $region21: #{vitnet_forward.4} parent=11 // pred_check
        %p256 = pneg %p104
      $region22: #{vitnet_forward.4} parent=11 // pred_check_branch
        %258 = sbr.rel (%p256) target = $region24
      $region23: #{vitnet_forward.4} parent=11 // pred_region
        _
      $region24: #{vitnet_forward.4} parent=11 // pred_fallthru
        _
      // Predicated region
      $region25: #{vitnet_forward.4} parent=11 // pred_check
        %p259 = pneg %p125
      $region26: #{vitnet_forward.4} parent=11 // pred_check_branch
        %261 = sbr.rel (%p259) target = $region28
      $region27: #{vitnet_forward.4} parent=11 // pred_region
        _
      $region28: #{vitnet_forward.4} parent=11 // pred_fallthru
        _
      // Predicated region
      $region29: #{vitnet_forward.4} parent=11 // pred_check
        %p262 = pneg %p146
      $region30: #{vitnet_forward.4} parent=11 // pred_check_branch
        %264 = sbr.rel (%p262) target = $region32
      $region31: #{vitnet_forward.4} parent=11 // pred_region
        _
      $region32: #{vitnet_forward.4} parent=11 // pred_fallthru
        _
      // Predicated region
      $region33: #{vitnet_forward.4} parent=11 // pred_check
        %p265 = pneg %p167
      $region34: #{vitnet_forward.4} parent=11 // pred_check_branch
        %267 = sbr.rel (%p265) target = $region36
      $region35: #{vitnet_forward.4} parent=11 // pred_region
        _
      $region36: #{vitnet_forward.4} parent=11 // pred_fallthru
        _
      // Predicated region
      $region37: #{vitnet_forward.4} parent=11 // pred_check
        %p268 = pneg %p188
      $region38: #{vitnet_forward.4} parent=11 // pred_check_branch
        %270 = sbr.rel (%p268) target = $region40
      $region39: #{vitnet_forward.4} parent=11 // pred_region
        _
      $region40: #{vitnet_forward.4} parent=11 // pred_fallthru
        _
      // Predicated region
      $region41: #{vitnet_forward.4} parent=11 // pred_check
        %p271 = pneg %p209
      $region42: #{vitnet_forward.4} parent=11 // pred_check_branch
        %273 = sbr.rel (%p271) target = $region44
      $region43: #{vitnet_forward.4} parent=11 // pred_region
        _
      $region44: #{vitnet_forward.4} parent=11 // pred_fallthru
        _
    $region12: #{vitnet_forward.4} parent=5 // pred_fallthru
      _
    %p274 = scmp.lt.s32.totalorder %s15, 2
    // Predicated region
    $region45: #{vitnet_forward.4} parent=5 // pred_check
      %p275 = pneg %p274
    $region46: #{vitnet_forward.4} parent=5 // pred_check_branch
      %277 = sbr.rel (%p275) target = $region48
    $region47: #{vitnet_forward.4} parent=5 // pred_region
      // Predicated region
      $region49: #{vitnet_forward.4} parent=47 // pred_check
        %p278 = pneg %p35
      $region50: #{vitnet_forward.4} parent=47 // pred_check_branch
        %280 = sbr.rel (%p278) target = $region52
      $region51: #{vitnet_forward.4} parent=47 // pred_region
        %p281 = scmp.lt.s32.totalorder %s15, 1
        %s282 = scalar_select %p281, %s15, 1
        %s283 = smul.addr %s282, 2
        %s284 = smul.addr %s283, 8
        %s285 = scalar_lea.vmem %s0, %s284
      $region52: #{vitnet_forward.4} parent=47 // pred_fallthru
        _
    $region48: #{vitnet_forward.4} parent=5 // pred_fallthru
      _
    %p286 = scmp.le.s32.totalorder 1, %s15
    %p287 = scmp.lt.s32.totalorder %s15, 3
    %p288 = pnand %p286, %p287
    %p289 = pneg %p288
    // Predicated region
    $region53: #{vitnet_forward.4} parent=5 // pred_check
      _
    $region54: #{vitnet_forward.4} parent=5 // pred_check_branch
      %291 = sbr.rel (%p288) target = $region56
    $region55: #{vitnet_forward.4} parent=5 // pred_region
      %s292 = ssub.s32 %s15, 1
      %p293 = scmp.lt.s32.totalorder %s20, 1
      %s294 = scalar_select %p293, %s20, 1
      %s295 = smul.addr %s294, 2
      %s296 = smul.addr %s295, 8
      %s297 = scalar_lea.vmem %s0, %s296
      %p298 = pneg %p41
      %p299 = pneg %p38
      %p300 = pneg %p62
      %p301 = pneg %p59
      %p302 = pneg %p83
      %p303 = pneg %p80
      %p304 = pneg %p104
      %p305 = pneg %p101
      %p306 = pneg %p125
      %p307 = pneg %p122
      %p308 = pneg %p146
      %p309 = pneg %p143
      %p310 = pneg %p167
      %p311 = pneg %p164
      %p312 = pneg %p188
      %p313 = pneg %p185
      %p314 = pneg %p209
      %p315 = pneg %p206
      %p316 = pneg %p235
      %p317 = pneg %p232
      %p318 = scmp.lt.s32.totalorder %s20, 1
      %s319 = scalar_select %p318, %s20, 1
      %s320 = smul.addr %s319, 3
      %s321 = smul.addr %s320, 8
      %s322 = scalar_lea.vmem %s9, %s321
      %p323 = scmp.lt.s32.totalorder %s20, 1
      %s324 = scalar_select %p323, %s20, 1
      %s325 = smul.addr %s324, 2
      %s326 = smul.addr %s325, 8
      %s327 = scalar_lea.vmem %s0, %s326
      %p328 = scmp.lt.s32.totalorder %s20, 1
      %s329 = scalar_select %p328, %s20, 1
      %s330 = smul.addr %s329, 3
      %s331 = smul.addr %s330, 8
      %s332 = scalar_lea.vmem %s9, %s331
      %v334 = vld [vmem:[%s327] sm:$0xff]
      %v335 = vld [vmem:[%s327 + $0x8] sm:$0xff]
      %v336 = vld [vmem:[%s1] sm:$0x1]
      %v337 = vld [vmem:[%s2] sm:$0x1]
      %vm338 = vcmask 392192
      %v339 = vsel %vm338, %v334, 0.0
      %340 = vadd.xlane.f32.xlu0 %v339
      %v341 = vpop.xlane.xlu0 %340
      %v342 = vsel %vm338, %v335, 0.0
      %343 = vadd.xlane.f32.xlu0 %v342
      %v344 = vpop.xlane.xlu0 %343
      %v345 = vrcp.pop 48.0
      %v346 = vmul.f32 48.0, %v345
      %v347 = vsub.f32 1.0, %v346
      %v348 = vmul.f32 %v345, %v347
      %v349 = vadd.f32 %v345, %v348
      %vm350 = vweird.f32 %v345
      %v351 = vsel %vm350, %v345, %v349
      %v352 = vmul.f32 %v341, %v351
      %v353 = vmul.f32 %v344, %v351
      %v354 = vsub.f32 %v334, %v352
      %v355 = vsub.f32 %v335, %v353
      %v356 = vmul.f32 %v354, %v354
      %v357 = vmul.f32 %v355, %v355
      %v358 = vsel %vm338, %v356, 0.0
      %359 = vadd.xlane.f32.xlu0 %v358
      %v360 = vpop.xlane.xlu0 %359
      %v361 = vsel %vm338, %v357, 0.0
      %362 = vadd.xlane.f32.xlu0 %v361
      %v363 = vpop.xlane.xlu0 %362
      %v364 = vmul.f32 %v360, %v351
      %v365 = vmul.f32 %v363, %v351
      %v366 = vadd.f32 %v364, 1e-05
      %v367 = vadd.f32 %v365, 1e-05
      %v368 = vrsqrt.pop %v366
      %v369 = vmul.f32 %v368, %v366
      %v370 = vmul.f32 %v369, %v368
      %v371 = vmul.f32 0.5, %v370
      %v372 = vsub.f32 1.5, %v371
      %v373 = vmul.f32 %v368, %v372
      %vm374 = vweird.f32 %v366
      %vm375 = vweird.f32 %v368
      %vm376 = vmor %vm374, %vm375
      %v377 = vsel %vm376, %v368, %v373
      %v378 = vrsqrt.pop %v367
      %v379 = vmul.f32 %v378, %v367
      %v380 = vmul.f32 %v379, %v378
      %v381 = vmul.f32 0.5, %v380
      %v382 = vsub.f32 1.5, %v381
      %v383 = vmul.f32 %v378, %v382
      %vm384 = vweird.f32 %v367
      %vm385 = vweird.f32 %v378
      %vm386 = vmor %vm384, %vm385
      %v387 = vsel %vm386, %v378, %v383
      %v388 = vmul.f32 %v354, %v377
      %v389 = vmul.f32 %v355, %v387
      %v391 = vperm.slane %v336, 0
      %v393 = vmul.f32 %v388, %v391
      %v394 = vmul.f32 %v389, %v391
      %v396 = vperm.slane %v337, 0
      %v398 = vadd.f32 %v393, %v396
      %v399 = vadd.f32 %v394, %v396
      %v400 = vpack.c.bf16 %v399, %v398
      %v401 = vld [vmem:[%s3] sm:$0xf]
      %v402 = vld [vmem:[%s3 + $0x4] sm:$0xf]
      %v403 = vld [vmem:[%s3 + $0x8] sm:$0xf]
      %v404 = vld [vmem:[%s3 + $0xc] sm:$0xf]
      %v405 = vld [vmem:[%s3 + $0x10] sm:$0xf]
      %v406 = vld [vmem:[%s3 + $0x14] sm:$0xf]
      %v407 = vld [vmem:[%s4] sm:$0x1]
      %v409 = vperm.slane %v407, 0
      %v417 = vunpack.c.l.b16 %v401
      %v418 = vunpack.c.l.b16 %v402
      %v419 = vunpack.c.l.b16 %v403
      %v420 = vunpack.c.l.b16 %v404
      %v421 = vunpack.c.l.b16 %v405
      %v422 = vunpack.c.l.b16 %v406
      %v423 = vpack.c.b16 %v418, %v417
      %v424 = vpack.c.b16 %v420, %v419
      %v425 = vpack.c.b16 %v422, %v421
      %v430 = vsel %vm338, %v400, 0
      %432 = vmatpush.bf16.msra.mxu0 0
      %433 = vmatpush.bf16.msra.mxu0 0
      %434 = vmatpush.bf16.msra.mxu0 0
      %435 = vmatpush.bf16.msra.mxu0 0
      %436 = vmatpush.bf16.msra.mxu0 0
      %437 = vmatpush.bf16.msra.mxu0 %v425
      %438 = vmatpush.bf16.msra.mxu0 %v424
      %439 = vmatpush.bf16.msra.mxu0 %v423
      %440 = vmatmul.bf16.gmra.mxu0 %v430
      %v441 = vpop.f32.mrf.mxu0
      %v442 = vadd.f32 %v409, %v441
      %v443 = vpop.f32.mrf.mxu0
      %v444 = vadd.f32 %v409, %v443
      %445 = vdwg.mxu0
      %v446 = vld [vmem:[%s5] sm:$0x1]
      %v447 = vld [vmem:[%s6] sm:$0x1]
      %448 = vadd.xlane.f32.xlu0 %v442
      %v449 = vpop.xlane.xlu0 %448
      %450 = vadd.xlane.f32.xlu0 %v444
      %v451 = vpop.xlane.xlu0 %450
      %v452 = vrcp.pop 128.0
      %v453 = vmul.f32 128.0, %v452
      %v454 = vsub.f32 1.0, %v453
      %v455 = vmul.f32 %v452, %v454
      %v456 = vadd.f32 %v452, %v455
      %vm457 = vweird.f32 %v452
      %v458 = vsel %vm457, %v452, %v456
      %v459 = vmul.f32 %v449, %v458
      %v460 = vmul.f32 %v451, %v458
      %v461 = vsub.f32 %v442, %v459
      %v462 = vsub.f32 %v444, %v460
      %v463 = vmul.f32 %v461, %v461
      %v464 = vmul.f32 %v462, %v462
      %465 = vadd.xlane.f32.xlu0 %v463
      %v466 = vpop.xlane.xlu0 %465
      %467 = vadd.xlane.f32.xlu0 %v464
      %v468 = vpop.xlane.xlu0 %467
      %v469 = vmul.f32 %v466, %v458
      %v470 = vmul.f32 %v468, %v458
      %v471 = vadd.f32 %v469, 1e-05
      %v472 = vadd.f32 %v470, 1e-05
      %v473 = vrsqrt.pop %v471
      %v474 = vmul.f32 %v473, %v471
      %v475 = vmul.f32 %v474, %v473
      %v476 = vmul.f32 0.5, %v475
      %v477 = vsub.f32 1.5, %v476
      %v478 = vmul.f32 %v473, %v477
      %vm479 = vweird.f32 %v471
      %vm480 = vweird.f32 %v473
      %vm481 = vmor %vm479, %vm480
      %v482 = vsel %vm481, %v473, %v478
      %v483 = vrsqrt.pop %v472
      %v484 = vmul.f32 %v483, %v472
      %v485 = vmul.f32 %v484, %v483
      %v486 = vmul.f32 0.5, %v485
      %v487 = vsub.f32 1.5, %v486
      %v488 = vmul.f32 %v483, %v487
      %vm489 = vweird.f32 %v472
      %vm490 = vweird.f32 %v483
      %vm491 = vmor %vm489, %vm490
      %v492 = vsel %vm491, %v483, %v488
      %v493 = vmul.f32 %v461, %v482
      %v494 = vmul.f32 %v462, %v492
      %v496 = vperm.slane %v446, 0
      %v498 = vmul.f32 %v493, %v496
      %v499 = vmul.f32 %v494, %v496
      %v501 = vperm.slane %v447, 0
      %v503 = vadd.f32 %v498, %v501
      %v504 = vadd.f32 %v499, %v501
      %v505 = vld [vmem:[%s8] sm:$0x1]
      %v506 = vld [vmem:[%s7] sm:$0xff]
      %v507 = vld [vmem:[%s7 + $0x8] sm:$0xff]
      %v508 = vadd.f32 %v503, %v506
      %v509 = vadd.f32 %v504, %v507
      %vm512 = vcmask 1040384
      %v513 = vrot.slane %v508, 7
      %v514 = vrot.slane %v509, 7
      %v515 = vsel %vm512, %v513, %v514
      %v519 = vsel %vm512, %v505, %v513
      %520 = vst [vmem:[%s332] sm:$0xff] %v519
      %521 = vst [vmem:[%s332 + $0x8] sm:$0xff] %v515
      %522 = vst [vmem:[%s332 + $0x10] sm:$0x1] %v514
      %p523 = scmp.lt.s32.totalorder %s20, 1
      %s524 = scalar_select %p523, %s20, 1
      %s525 = smul.addr %s524, 3
      %s526 = smul.addr %s525, 8
      %s527 = scalar_lea.vmem %s9, %s526
      // Predicated region
      $region57: #{vitnet_forward.4} parent=55 // pred_check
        %p528 = pneg %p232
      $region58: #{vitnet_forward.4} parent=55 // pred_check_branch
        %530 = sbr.rel (%p528) target = $region60
      $region59: #{vitnet_forward.4} parent=55 // pred_region
        _
      $region60: #{vitnet_forward.4} parent=55 // pred_fallthru
        _
    $region56: #{vitnet_forward.4} parent=5 // pred_fallthru
      _
    %p531 = scmp.le.s32.totalorder 2, %s15
    // Predicated region
    $region61: #{vitnet_forward.4} parent=5 // pred_check
      %p532 = pneg %p531
    $region62: #{vitnet_forward.4} parent=5 // pred_check_branch
      %534 = sbr.rel (%p532) target = $region64
    $region63: #{vitnet_forward.4} parent=5 // pred_region
      %s535 = ssub.s32 %s15, 2
      // Predicated region
      $region65: #{vitnet_forward.4} parent=63 // pred_check
        %p536 = pneg %p238
      $region66: #{vitnet_forward.4} parent=63 // pred_check_branch
        %538 = sbr.rel (%p536) target = $region68
      $region67: #{vitnet_forward.4} parent=63 // pred_region
        %p539 = scmp.lt.s32.totalorder %s21, 1
        %s540 = scalar_select %p539, %s21, 1
        %s541 = smul.addr %s540, 3
        %s542 = smul.addr %s541, 8
        %s543 = scalar_lea.vmem %s9, %s542
      $region68: #{vitnet_forward.4} parent=63 // pred_fallthru
        _
    $region64: #{vitnet_forward.4} parent=5 // pred_fallthru
      _
  $region6: #{vitnet_forward.4} parent=0 // loop_footer
    %s19 = sadd.s32 1, %s15
  $region7: #{vitnet_forward.4} parent=0 // loop_footer_branch
    %14 = sbr.rel target = $region3
  $region8: #{vitnet_forward.4} parent=0 // loop_exit
    _

// kernel: vitnet_forward.7
$region0: #{vitnet_forward.7}
  #allocation0 [shape = 'u32[]', space=smem, size = 0x4, offset = 0x4, fixed_abs, tag = 'smem constant byte address 0x4 - core index']
  #allocation1 [shape = 'u32[72,128]{1,0:T(1,128)}', space=vmem, size = 0x9000, scoped, tag = 'internal scratch']
  %s0 = inlined_call_operand.vmem [shape: f32[2,128], index: 0, kind: input, shape index: {}]
  %s1 = inlined_call_operand.vmem [shape: f32[1,128], index: 1, kind: input, shape index: {}]
  %s2 = inlined_call_operand.vmem [shape: f32[1,128], index: 2, kind: input, shape index: {}]
  %s3 = inlined_call_operand.vmem [shape: bf16[128,128], index: 3, kind: input, shape index: {}]
  %s4 = inlined_call_operand.vmem [shape: f32[1,128], index: 4, kind: input, shape index: {}]
  %s5 = inlined_call_operand.hbm [shape: f32[2,128], index: 5, kind: output, shape index: {}]
  %s6 = sld [smem:[#allocation0]]
  $region30: #{vitnet_forward.7} parent=0
    _
  %s8 = ssub.s32 1, %s6
  %s9 = scalar_select 0, %s8, %s6
  $region1: #{vitnet_forward.7} parent=0
    #allocation2 [shape = 'u8[1024]{0}', space=vmem, size = 0x400, scoped, tag = 'output window, operand 0, single buffered']
    #allocation3 [shape = 's32[1]{0}', space=sflag, size = 0x4, scoped, tag = 'scoped memory for vitnet_forward.7']
    %10 = vsyncpa [#allocation3], 0
    // Predicated region
    $region2: #{vitnet_forward.7} parent=1 // pred_check
      _
    $region3: #{vitnet_forward.7} parent=1 // pred_check_branch
      %12 = sbr.rel (0) target = $region5
    $region4: #{vitnet_forward.7} parent=1 // pred_region
      _
    $region5: #{vitnet_forward.7} parent=1 // pred_fallthru
      _
    // Predicated region
    $region6: #{vitnet_forward.7} parent=1 // pred_check
      _
    $region7: #{vitnet_forward.7} parent=1 // pred_check_branch
      %14 = sbr.rel (0) target = $region9
    $region8: #{vitnet_forward.7} parent=1 // pred_region
      _
    $region9: #{vitnet_forward.7} parent=1 // pred_fallthru
      _
    // Predicated region
    $region10: #{vitnet_forward.7} parent=1 // pred_check
      _
    $region11: #{vitnet_forward.7} parent=1 // pred_check_branch
      %16 = sbr.rel (0) target = $region13
    $region12: #{vitnet_forward.7} parent=1 // pred_region
      _
    $region13: #{vitnet_forward.7} parent=1 // pred_fallthru
      _
    // Predicated region
    $region14: #{vitnet_forward.7} parent=1 // pred_check
      _
    $region15: #{vitnet_forward.7} parent=1 // pred_check_branch
      %18 = sbr.rel (0) target = $region17
    $region16: #{vitnet_forward.7} parent=1 // pred_region
      _
    $region17: #{vitnet_forward.7} parent=1 // pred_fallthru
      _
    // Predicated region
    $region18: #{vitnet_forward.7} parent=1 // pred_check
      _
    $region19: #{vitnet_forward.7} parent=1 // pred_check_branch
      %20 = sbr.rel (0) target = $region21
    $region20: #{vitnet_forward.7} parent=1 // pred_region
      _
    $region21: #{vitnet_forward.7} parent=1 // pred_fallthru
      _
    %v21 = vld [vmem:[%s0] sm:$0x3]
    %v22 = vld [vmem:[%s1] sm:$0x1]
    %v23 = vld [vmem:[%s2] sm:$0x1]
    %vm24 = vcmask 1041408
    %v25 = vsel %vm24, %v21, 0.0
    %26 = vadd.xlane.f32.xlu0 %v25
    %v27 = vpop.xlane.xlu0 %26
    %v28 = vrcp.pop 128.0
    %v29 = vmul.f32 128.0, %v28
    %v30 = vsub.f32 1.0, %v29
    %v31 = vmul.f32 %v28, %v30
    %v32 = vadd.f32 %v28, %v31
    %vm33 = vweird.f32 %v28
    %v34 = vsel %vm33, %v28, %v32
    %v35 = vmul.f32 %v27, %v34
    %v36 = vsub.f32 %v21, %v35
    %v37 = vmul.f32 %v36, %v36
    %v38 = vsel %vm24, %v37, 0.0
    %39 = vadd.xlane.f32.xlu0 %v38
    %v40 = vpop.xlane.xlu0 %39
    %v41 = vmul.f32 %v40, %v34
    %v42 = vadd.f32 %v41, 1e-05
    %v43 = vrsqrt.pop %v42
    %v44 = vmul.f32 %v43, %v42
    %v45 = vmul.f32 %v44, %v43
    %v46 = vmul.f32 0.5, %v45
    %v47 = vsub.f32 1.5, %v46
    %v48 = vmul.f32 %v43, %v47
    %vm49 = vweird.f32 %v42
    %vm50 = vweird.f32 %v43
    %vm51 = vmor %vm49, %vm50
    %v52 = vsel %vm51, %v43, %v48
    %v53 = vmul.f32 %v36, %v52
    %v55 = vperm.slane %v22, 0
    %v57 = vmul.f32 %v53, %v55
    %v59 = vperm.slane %v23, 0
    %v61 = vadd.f32 %v57, %v59
    %v62 = vpack.c.bf16 %v61, %v61
    %v63 = vld [vmem:[%s3] sm:$0xf]
    %v64 = vld [vmem:[%s3 + $0x4] sm:$0xf]
    %v65 = vld [vmem:[%s3 + $0x8] sm:$0xf]
    %v66 = vld [vmem:[%s3 + $0xc] sm:$0xf]
    %v67 = vld [vmem:[%s3 + $0x10] sm:$0xf]
    %v68 = vld [vmem:[%s3 + $0x14] sm:$0xf]
    %v69 = vld [vmem:[%s3 + $0x18] sm:$0xf]
    %v70 = vld [vmem:[%s3 + $0x1c] sm:$0xf]
    %v71 = vld [vmem:[%s3 + $0x20] sm:$0xf]
    %v72 = vld [vmem:[%s3 + $0x24] sm:$0xf]
    %v73 = vld [vmem:[%s3 + $0x28] sm:$0xf]
    %v74 = vld [vmem:[%s3 + $0x2c] sm:$0xf]
    %v75 = vld [vmem:[%s3 + $0x30] sm:$0xf]
    %v76 = vld [vmem:[%s3 + $0x34] sm:$0xf]
    %v77 = vld [vmem:[%s3 + $0x38] sm:$0xf]
    %v78 = vld [vmem:[%s3 + $0x3c] sm:$0xf]
    %v79 = vld [vmem:[%s4] sm:$0x1]
    %v81 = vperm.slane %v79, 0
    %v99 = vunpack.c.l.b16 %v63
    %v100 = vunpack.c.l.b16 %v64
    %v101 = vunpack.c.l.b16 %v65
    %v102 = vunpack.c.l.b16 %v66
    %v103 = vunpack.c.l.b16 %v67
    %v104 = vunpack.c.l.b16 %v68
    %v105 = vunpack.c.l.b16 %v69
    %v106 = vunpack.c.l.b16 %v70
    %v107 = vunpack.c.l.b16 %v71
    %v108 = vunpack.c.l.b16 %v72
    %v109 = vunpack.c.l.b16 %v73
    %v110 = vunpack.c.l.b16 %v74
    %v111 = vunpack.c.l.b16 %v75
    %v112 = vunpack.c.l.b16 %v76
    %v113 = vunpack.c.l.b16 %v77
    %v114 = vunpack.c.l.b16 %v78
    %v115 = vpack.c.b16 %v100, %v99
    %v116 = vpack.c.b16 %v102, %v101
    %v117 = vpack.c.b16 %v104, %v103
    %v118 = vpack.c.b16 %v106, %v105
    %v119 = vpack.c.b16 %v108, %v107
    %v120 = vpack.c.b16 %v110, %v109
    %v121 = vpack.c.b16 %v112, %v111
    %v122 = vpack.c.b16 %v114, %v113
    %131 = vmatpush.bf16.msra.mxu0 %v122
    %132 = vmatpush.bf16.msra.mxu0 %v121
    %133 = vmatpush.bf16.msra.mxu0 %v120
    %134 = vmatpush.bf16.msra.mxu0 %v119
    %135 = vmatpush.bf16.msra.mxu0 %v118
    %136 = vmatpush.bf16.msra.mxu0 %v117
    %137 = vmatpush.bf16.msra.mxu0 %v116
    %138 = vmatpush.bf16.msra.mxu0 %v115
    %139 = vmatmul.bf16.gmra.mxu0 %v62
    %v140 = vpop.f32.mrf.mxu0
    %v141 = vadd.f32 %v81, %v140
    %v142 = vpop.f32.mrf.mxu0
    %143 = vdwg.mxu0
    %v144 = vmul.f32 %v141, 0.5
    %v145 = vtanh.pop %v144
    %v146 = vadd.f32 %v145, 1.0
    %v147 = vmul.f32 %v146, 156.0
    %148 = vst [vmem:[#allocation2] sm:$0x3] %v147
    // Predicated region
    $region22: #{vitnet_forward.7} parent=1 // pred_check
      _
    $region23: #{vitnet_forward.7} parent=1 // pred_check_branch
      %150 = sbr.rel (0) target = $region25
    $region24: #{vitnet_forward.7} parent=1 // pred_region
      %152 = vsyncadd [#allocation3], 0
      %s154 = sshll.u32 [#allocation2], 4
      %s155 = int_to_ptr.vmem [resolvable:$true] %s154
      %s156 = sshll.u32 %s5, 4
      %s157 = int_to_ptr.hbm [resolvable:$true] %s156
      %159 = dma.vmem_to_hbm [thread:$0]  %s155, 32, %s157, [#allocation3]
    $region25: #{vitnet_forward.7} parent=1 // pred_fallthru
      _
    // Predicated region
    $region26: #{vitnet_forward.7} parent=1 // pred_check
      _
    $region27: #{vitnet_forward.7} parent=1 // pred_check_branch
      %161 = sbr.rel (0) target = $region29
    $region28: #{vitnet_forward.7} parent=1 // pred_region
      %163 = dma.done [#allocation3], 32
    $region29: #{vitnet_forward.7} parent=1 // pred_fallthru
      _
    %164 = vsyncpa [#allocation3], 1

// kernel: vitnet_forward.5
$region0: #{vitnet_forward.5}
  #allocation0 [shape = 'u32[]', space=smem, size = 0x4, offset = 0x4, fixed_abs, tag = 'smem constant byte address 0x4 - core index']
  #allocation1 [shape = 'u32[72,128]{1,0:T(1,128)}', space=vmem, size = 0x9000, scoped, tag = 'internal scratch']
  %s0 = inlined_call_operand.vmem [shape: f32[2,17,128], index: 0, kind: input, shape index: {}, may-alias: {0,12}]
  %s1 = inlined_call_operand.vmem [shape: f32[1,128], index: 1, kind: input, shape index: {}]
  %s2 = inlined_call_operand.vmem [shape: f32[1,128], index: 2, kind: input, shape index: {}]
  %s3 = inlined_call_operand.vmem [shape: bf16[128,384], index: 3, kind: input, shape index: {}]
  %s4 = inlined_call_operand.vmem [shape: bf16[4,32,128], index: 4, kind: input, shape index: {}]
  %s5 = inlined_call_operand.vmem [shape: f32[1,128], index: 5, kind: input, shape index: {}]
  %s6 = inlined_call_operand.vmem [shape: f32[1,128], index: 6, kind: input, shape index: {}]
  %s7 = inlined_call_operand.vmem [shape: f32[1,128], index: 7, kind: input, shape index: {}]
  %s8 = inlined_call_operand.vmem [shape: bf16[128,256], index: 8, kind: input, shape index: {}]
  %s9 = inlined_call_operand.vmem [shape: f32[1,256], index: 9, kind: input, shape index: {}]
  %s10 = inlined_call_operand.vmem [shape: bf16[256,128], index: 10, kind: input, shape index: {}]
  %s11 = inlined_call_operand.vmem [shape: f32[1,128], index: 11, kind: input, shape index: {}]
  %s12 = inlined_call_operand.vmem [shape: f32[2,17,128], index: 12, kind: output, shape index: {}, may-alias: {0,12}]
  %s13 = sld [smem:[#allocation0]]
  $region81: #{vitnet_forward.5} parent=0
    _
  %s15 = ssub.s32 1, %s13
  %s16 = scalar_select 0, %s15, %s13
  loop: start=0, step=1, limit=4
  $region2: #{vitnet_forward.5} parent=0 // loop_pre_header
    _
  $region3: #{vitnet_forward.5} parent=0 // loop_header
    %s18 = sphi 0, %s22
    %p19 = scmp.ge.s32.totalorder %s18, 4
    %s28 = sphi 0, %s30
    %s31 = sphi 0, %s28
    %s32 = sphi 0, %s31
    %s48 = sphi 0, %s32
    %s52 = sphi 0, %s52
    %s54 = sphi 0, %s52
    %s55 = sphi 0, %s54
    %s69 = sphi 0, %s55
    %s73 = sphi 0, %s73
    %s75 = sphi 0, %s73
    %s76 = sphi 0, %s75
    %s90 = sphi 0, %s76
    %s94 = sphi 0, %s94
    %s96 = sphi 0, %s94
    %s97 = sphi 0, %s96
    %s111 = sphi 0, %s97
    %s115 = sphi 0, %s115
    %s117 = sphi 0, %s115
    %s118 = sphi 0, %s117
    %s132 = sphi 0, %s118
    %s136 = sphi 0, %s136
    %s138 = sphi 0, %s136
    %s139 = sphi 0, %s138
    %s153 = sphi 0, %s139
    %s157 = sphi 0, %s157
    %s159 = sphi 0, %s157
    %s160 = sphi 0, %s159
    %s174 = sphi 0, %s160
    %s178 = sphi 0, %s178
    %s180 = sphi 0, %s178
    %s181 = sphi 0, %s180
    %s195 = sphi 0, %s181
    %s199 = sphi 0, %s199
    %s201 = sphi 0, %s199
    %s202 = sphi 0, %s201
    %s216 = sphi 0, %s202
    %s220 = sphi 0, %s220
    %s222 = sphi 0, %s220
    %s223 = sphi 0, %s222
    %s237 = sphi 0, %s223
    %s241 = sphi 0, %s241
    %s243 = sphi 0, %s241
    %s244 = sphi 0, %s243
    %s258 = sphi 0, %s244
    %s262 = sphi 0, %s262
    %s264 = sphi 0, %s262
    %s265 = sphi 0, %s264
    %s279 = sphi 0, %s265
    %s285 = sphi 0, %s287
    %s288 = sphi 0, %s285
    %s289 = sphi 0, %s288
    %s305 = sphi 0, %s289
  $region4: #{vitnet_forward.5} parent=0 // loop_header_branch
    %21 = sbr.rel (%p19) target = $region8
  $region5: #{vitnet_forward.5} parent=0 // loop_body
    %s23 = ssub.s32 %s18, 1
    %s24 = ssub.s32 %s18, 2
    %s25 = sadd.s32 %s18, 1
    %s26 = ssub.s32 %s18, %s25
    %p27 = scmp.eq.s32.totalorder %s26, 0
    %s29 = sadd.s32 %s28, 1
    %s30 = scalar_select %p27, %s28, %s29
    %p33 = pneg %p27
    %p34 = scmp.eq.s32.totalorder %s18, 1
    %p35 = por %p33, %p34
    %p36 = scmp.ne.s32.totalorder %s28, %s31
    %p37 = scmp.eq.s32.totalorder %s18, 0
    %p38 = por %p36, %p37
    %p39 = scmp.ne.s32.totalorder %s28, %s31
    %p40 = scmp.eq.s32.totalorder %s23, 1
    %p41 = por %p39, %p40
    %p42 = scmp.ne.s32.totalorder %s31, %s32
    %p43 = scmp.eq.s32.totalorder %s23, 0
    %p44 = por %p42, %p43
    %p45 = scmp.ne.s32.totalorder %s31, %s32
    %p46 = scmp.eq.s32.totalorder %s24, 1
    %p47 = por %p45, %p46
    %p49 = scmp.ne.s32.totalorder %s32, %s48
    %p50 = scmp.eq.s32.totalorder %s24, 0
    %p51 = por %p49, %p50
    %s53 = sadd.s32 %s52, 1
    %p56 = scmp.eq.s32.totalorder %s18, 1
    %p57 = scmp.ne.s32.totalorder %s52, %s54
    %p58 = scmp.eq.s32.totalorder %s18, 0
    %p59 = por %p57, %p58
    %p60 = scmp.ne.s32.totalorder %s52, %s54
    %p61 = scmp.eq.s32.totalorder %s23, 1
    %p62 = por %p60, %p61
    %p63 = scmp.ne.s32.totalorder %s54, %s55
    %p64 = scmp.eq.s32.totalorder %s23, 0
    %p65 = por %p63, %p64
    %p66 = scmp.ne.s32.totalorder %s54, %s55
    %p67 = scmp.eq.s32.totalorder %s24, 1
    %p68 = por %p66, %p67
    %p70 = scmp.ne.s32.totalorder %s55, %s69
    %p71 = scmp.eq.s32.totalorder %s24, 0
    %p72 = por %p70, %p71
    %s74 = sadd.s32 %s73, 1
    %p77 = scmp.eq.s32.totalorder %s18, 1
    %p78 = scmp.ne.s32.totalorder %s73, %s75
    %p79 = scmp.eq.s32.totalorder %s18, 0
    %p80 = por %p78, %p79
    %p81 = scmp.ne.s32.totalorder %s73, %s75
    %p82 = scmp.eq.s32.totalorder %s23, 1
    %p83 = por %p81, %p82
    %p84 = scmp.ne.s32.totalorder %s75, %s76
    %p85 = scmp.eq.s32.totalorder %s23, 0
    %p86 = por %p84, %p85
    %p87 = scmp.ne.s32.totalorder %s75, %s76
    %p88 = scmp.eq.s32.totalorder %s24, 1
    %p89 = por %p87, %p88
    %p91 = scmp.ne.s32.totalorder %s76, %s90
    %p92 = scmp.eq.s32.totalorder %s24, 0
    %p93 = por %p91, %p92
    %s95 = sadd.s32 %s94, 1
    %p98 = scmp.eq.s32.totalorder %s18, 1
    %p99 = scmp.ne.s32.totalorder %s94, %s96
    %p100 = scmp.eq.s32.totalorder %s18, 0
    %p101 = por %p99, %p100
    %p102 = scmp.ne.s32.totalorder %s94, %s96
    %p103 = scmp.eq.s32.totalorder %s23, 1
    %p104 = por %p102, %p103
    %p105 = scmp.ne.s32.totalorder %s96, %s97
    %p106 = scmp.eq.s32.totalorder %s23, 0
    %p107 = por %p105, %p106
    %p108 = scmp.ne.s32.totalorder %s96, %s97
    %p109 = scmp.eq.s32.totalorder %s24, 1
    %p110 = por %p108, %p109
    %p112 = scmp.ne.s32.totalorder %s97, %s111
    %p113 = scmp.eq.s32.totalorder %s24, 0
    %p114 = por %p112, %p113
    %s116 = sadd.s32 %s115, 1
    %p119 = scmp.eq.s32.totalorder %s18, 1
    %p120 = scmp.ne.s32.totalorder %s115, %s117
    %p121 = scmp.eq.s32.totalorder %s18, 0
    %p122 = por %p120, %p121
    %p123 = scmp.ne.s32.totalorder %s115, %s117
    %p124 = scmp.eq.s32.totalorder %s23, 1
    %p125 = por %p123, %p124
    %p126 = scmp.ne.s32.totalorder %s117, %s118
    %p127 = scmp.eq.s32.totalorder %s23, 0
    %p128 = por %p126, %p127
    %p129 = scmp.ne.s32.totalorder %s117, %s118
    %p130 = scmp.eq.s32.totalorder %s24, 1
    %p131 = por %p129, %p130
    %p133 = scmp.ne.s32.totalorder %s118, %s132
    %p134 = scmp.eq.s32.totalorder %s24, 0
    %p135 = por %p133, %p134
    %s137 = sadd.s32 %s136, 1
    %p140 = scmp.eq.s32.totalorder %s18, 1
    %p141 = scmp.ne.s32.totalorder %s136, %s138
    %p142 = scmp.eq.s32.totalorder %s18, 0
    %p143 = por %p141, %p142
    %p144 = scmp.ne.s32.totalorder %s136, %s138
    %p145 = scmp.eq.s32.totalorder %s23, 1
    %p146 = por %p144, %p145
    %p147 = scmp.ne.s32.totalorder %s138, %s139
    %p148 = scmp.eq.s32.totalorder %s23, 0
    %p149 = por %p147, %p148
    %p150 = scmp.ne.s32.totalorder %s138, %s139
    %p151 = scmp.eq.s32.totalorder %s24, 1
    %p152 = por %p150, %p151
    %p154 = scmp.ne.s32.totalorder %s139, %s153
    %p155 = scmp.eq.s32.totalorder %s24, 0
    %p156 = por %p154, %p155
    %s158 = sadd.s32 %s157, 1
    %p161 = scmp.eq.s32.totalorder %s18, 1
    %p162 = scmp.ne.s32.totalorder %s157, %s159
    %p163 = scmp.eq.s32.totalorder %s18, 0
    %p164 = por %p162, %p163
    %p165 = scmp.ne.s32.totalorder %s157, %s159
    %p166 = scmp.eq.s32.totalorder %s23, 1
    %p167 = por %p165, %p166
    %p168 = scmp.ne.s32.totalorder %s159, %s160
    %p169 = scmp.eq.s32.totalorder %s23, 0
    %p170 = por %p168, %p169
    %p171 = scmp.ne.s32.totalorder %s159, %s160
    %p172 = scmp.eq.s32.totalorder %s24, 1
    %p173 = por %p171, %p172
    %p175 = scmp.ne.s32.totalorder %s160, %s174
    %p176 = scmp.eq.s32.totalorder %s24, 0
    %p177 = por %p175, %p176
    %s179 = sadd.s32 %s178, 1
    %p182 = scmp.eq.s32.totalorder %s18, 1
    %p183 = scmp.ne.s32.totalorder %s178, %s180
    %p184 = scmp.eq.s32.totalorder %s18, 0
    %p185 = por %p183, %p184
    %p186 = scmp.ne.s32.totalorder %s178, %s180
    %p187 = scmp.eq.s32.totalorder %s23, 1
    %p188 = por %p186, %p187
    %p189 = scmp.ne.s32.totalorder %s180, %s181
    %p190 = scmp.eq.s32.totalorder %s23, 0
    %p191 = por %p189, %p190
    %p192 = scmp.ne.s32.totalorder %s180, %s181
    %p193 = scmp.eq.s32.totalorder %s24, 1
    %p194 = por %p192, %p193
    %p196 = scmp.ne.s32.totalorder %s181, %s195
    %p197 = scmp.eq.s32.totalorder %s24, 0
    %p198 = por %p196, %p197
    %s200 = sadd.s32 %s199, 1
    %p203 = scmp.eq.s32.totalorder %s18, 1
    %p204 = scmp.ne.s32.totalorder %s199, %s201
    %p205 = scmp.eq.s32.totalorder %s18, 0
    %p206 = por %p204, %p205
    %p207 = scmp.ne.s32.totalorder %s199, %s201
    %p208 = scmp.eq.s32.totalorder %s23, 1
    %p209 = por %p207, %p208
    %p210 = scmp.ne.s32.totalorder %s201, %s202
    %p211 = scmp.eq.s32.totalorder %s23, 0
    %p212 = por %p210, %p211
    %p213 = scmp.ne.s32.totalorder %s201, %s202
    %p214 = scmp.eq.s32.totalorder %s24, 1
    %p215 = por %p213, %p214
    %p217 = scmp.ne.s32.totalorder %s202, %s216
    %p218 = scmp.eq.s32.totalorder %s24, 0
    %p219 = por %p217, %p218
    %s221 = sadd.s32 %s220, 1
    %p224 = scmp.eq.s32.totalorder %s18, 1
    %p225 = scmp.ne.s32.totalorder %s220, %s222
    %p226 = scmp.eq.s32.totalorder %s18, 0
    %p227 = por %p225, %p226
    %p228 = scmp.ne.s32.totalorder %s220, %s222
    %p229 = scmp.eq.s32.totalorder %s23, 1
    %p230 = por %p228, %p229
    %p231 = scmp.ne.s32.totalorder %s222, %s223
    %p232 = scmp.eq.s32.totalorder %s23, 0
    %p233 = por %p231, %p232
    %p234 = scmp.ne.s32.totalorder %s222, %s223
    %p235 = scmp.eq.s32.totalorder %s24, 1
    %p236 = por %p234, %p235
    %p238 = scmp.ne.s32.totalorder %s223, %s237
    %p239 = scmp.eq.s32.totalorder %s24, 0
    %p240 = por %p238, %p239
    %s242 = sadd.s32 %s241, 1
    %p245 = scmp.eq.s32.totalorder %s18, 1
    %p246 = scmp.ne.s32.totalorder %s241, %s243
    %p247 = scmp.eq.s32.totalorder %s18, 0
    %p248 = por %p246, %p247
    %p249 = scmp.ne.s32.totalorder %s241, %s243
    %p250 = scmp.eq.s32.totalorder %s23, 1
    %p251 = por %p249, %p250
    %p252 = scmp.ne.s32.totalorder %s243, %s244
    %p253 = scmp.eq.s32.totalorder %s23, 0
    %p254 = por %p252, %p253
    %p255 = scmp.ne.s32.totalorder %s243, %s244
    %p256 = scmp.eq.s32.totalorder %s24, 1
    %p257 = por %p255, %p256
    %p259 = scmp.ne.s32.totalorder %s244, %s258
    %p260 = scmp.eq.s32.totalorder %s24, 0
    %p261 = por %p259, %p260
    %s263 = sadd.s32 %s262, 1
    %p266 = scmp.eq.s32.totalorder %s18, 1
    %p267 = scmp.ne.s32.totalorder %s262, %s264
    %p268 = scmp.eq.s32.totalorder %s18, 0
    %p269 = por %p267, %p268
    %p270 = scmp.ne.s32.totalorder %s262, %s264
    %p271 = scmp.eq.s32.totalorder %s23, 1
    %p272 = por %p270, %p271
    %p273 = scmp.ne.s32.totalorder %s264, %s265
    %p274 = scmp.eq.s32.totalorder %s23, 0
    %p275 = por %p273, %p274
    %p276 = scmp.ne.s32.totalorder %s264, %s265
    %p277 = scmp.eq.s32.totalorder %s24, 1
    %p278 = por %p276, %p277
    %p280 = scmp.ne.s32.totalorder %s265, %s279
    %p281 = scmp.eq.s32.totalorder %s24, 0
    %p282 = por %p280, %p281
    %s283 = ssub.s32 %s18, %s25
    %p284 = scmp.eq.s32.totalorder %s283, 0
    %s286 = sadd.s32 %s285, 1
    %s287 = scalar_select %p284, %s285, %s286
    %p290 = pneg %p284
    %p291 = scmp.eq.s32.totalorder %s18, 1
    %p292 = por %p290, %p291
    %p293 = scmp.ne.s32.totalorder %s285, %s288
    %p294 = scmp.eq.s32.totalorder %s18, 0
    %p295 = por %p293, %p294
    %p296 = scmp.ne.s32.totalorder %s285, %s288
    %p297 = scmp.eq.s32.totalorder %s23, 1
    %p298 = por %p296, %p297
    %p299 = scmp.ne.s32.totalorder %s288, %s289
    %p300 = scmp.eq.s32.totalorder %s23, 0
    %p301 = por %p299, %p300
    %p302 = scmp.ne.s32.totalorder %s288, %s289
    %p303 = scmp.eq.s32.totalorder %s24, 1
    %p304 = por %p302, %p303
    %p306 = scmp.ne.s32.totalorder %s289, %s305
    %p307 = scmp.eq.s32.totalorder %s24, 0
    %p308 = por %p306, %p307
    %p309 = scmp.le.s32.totalorder 1, %s18
    %p310 = scmp.lt.s32.totalorder %s18, 3
    %p311 = pnand %p309, %p310
    %p312 = pneg %p311
    // Predicated region
    $region9: #{vitnet_forward.5} parent=5 // pred_check
      _
    $region10: #{vitnet_forward.5} parent=5 // pred_check_branch
      %314 = sbr.rel (%p311) target = $region12
    $region11: #{vitnet_forward.5} parent=5 // pred_region
      %s315 = ssub.s32 %s18, 1
      // Predicated region
      $region13: #{vitnet_forward.5} parent=11 // pred_check
        %p316 = pneg %p65
      $region14: #{vitnet_forward.5} parent=11 // pred_check_branch
        %318 = sbr.rel (%p316) target = $region16
      $region15: #{vitnet_forward.5} parent=11 // pred_region
        _
      $region16: #{vitnet_forward.5} parent=11 // pred_fallthru
        _
      // Predicated region
      $region17: #{vitnet_forward.5} parent=11 // pred_check
        %p319 = pneg %p86
      $region18: #{vitnet_forward.5} parent=11 // pred_check_branch
        %321 = sbr.rel (%p319) target = $region20
      $region19: #{vitnet_forward.5} parent=11 // pred_region
        _
      $region20: #{vitnet_forward.5} parent=11 // pred_fallthru
        _
      // Predicated region
      $region21: #{vitnet_forward.5} parent=11 // pred_check
        %p322 = pneg %p107
      $region22: #{vitnet_forward.5} parent=11 // pred_check_branch
        %324 = sbr.rel (%p322) target = $region24
      $region23: #{vitnet_forward.5} parent=11 // pred_region
        _
      $region24: #{vitnet_forward.5} parent=11 // pred_fallthru
        _
      // Predicated region
      $region25: #{vitnet_forward.5} parent=11 // pred_check
        %p325 = pneg %p128
      $region26: #{vitnet_forward.5} parent=11 // pred_check_branch
        %327 = sbr.rel (%p325) target = $region28
      $region27: #{vitnet_forward.5} parent=11 // pred_region
        _
      $region28: #{vitnet_forward.5} parent=11 // pred_fallthru
        _
      // Predicated region
      $region29: #{vitnet_forward.5} parent=11 // pred_check
        %p328 = pneg %p149
      $region30: #{vitnet_forward.5} parent=11 // pred_check_branch
        %330 = sbr.rel (%p328) target = $region32
      $region31: #{vitnet_forward.5} parent=11 // pred_region
        _
      $region32: #{vitnet_forward.5} parent=11 // pred_fallthru
        _
      // Predicated region
      $region33: #{vitnet_forward.5} parent=11 // pred_check
        %p331 = pneg %p170
      $region34: #{vitnet_forward.5} parent=11 // pred_check_branch
        %333 = sbr.rel (%p331) target = $region36
      $region35: #{vitnet_forward.5} parent=11 // pred_region
        _
      $region36: #{vitnet_forward.5} parent=11 // pred_fallthru
        _
      // Predicated region
      $region37: #{vitnet_forward.5} parent=11 // pred_check
        %p334 = pneg %p191
      $region38: #{vitnet_forward.5} parent=11 // pred_check_branch
        %336 = sbr.rel (%p334) target = $region40
      $region39: #{vitnet_forward.5} parent=11 // pred_region
        _
      $region40: #{vitnet_forward.5} parent=11 // pred_fallthru
        _
      // Predicated region
      $region41: #{vitnet_forward.5} parent=11 // pred_check
        %p337 = pneg %p212
      $region42: #{vitnet_forward.5} parent=11 // pred_check_branch
        %339 = sbr.rel (%p337) target = $region44
      $region43: #{vitnet_forward.5} parent=11 // pred_region
        _
      $region44: #{vitnet_forward.5} parent=11 // pred_fallthru
        _
      // Predicated region
      $region45: #{vitnet_forward.5} parent=11 // pred_check
        %p340 = pneg %p233
      $region46: #{vitnet_forward.5} parent=11 // pred_check_branch
        %342 = sbr.rel (%p340) target = $region48
      $region47: #{vitnet_forward.5} parent=11 // pred_region
        _
      $region48: #{vitnet_forward.5} parent=11 // pred_fallthru
        _
      // Predicated region
      $region49: #{vitnet_forward.5} parent=11 // pred_check
        %p343 = pneg %p254
      $region50: #{vitnet_forward.5} parent=11 // pred_check_branch
        %345 = sbr.rel (%p343) target = $region52
      $region51: #{vitnet_forward.5} parent=11 // pred_region
        _
      $region52: #{vitnet_forward.5} parent=11 // pred_fallthru
        _
      // Predicated region
      $region53: #{vitnet_forward.5} parent=11 // pred_check
        %p346 = pneg %p275
      $region54: #{vitnet_forward.5} parent=11 // pred_check_branch
        %348 = sbr.rel (%p346) target = $region56
      $region55: #{vitnet_forward.5} parent=11 // pred_region
        _
      $region56: #{vitnet_forward.5} parent=11 // pred_fallthru
        _
    $region12: #{vitnet_forward.5} parent=5 // pred_fallthru
      _
    %p349 = scmp.lt.s32.totalorder %s18, 2
    // Predicated region
    $region57: #{vitnet_forward.5} parent=5 // pred_check
      %p350 = pneg %p349
    $region58: #{vitnet_forward.5} parent=5 // pred_check_branch
      %352 = sbr.rel (%p350) target = $region60
    $region59: #{vitnet_forward.5} parent=5 // pred_region
      // Predicated region
      $region61: #{vitnet_forward.5} parent=59 // pred_check
        %p353 = pneg %p38
      $region62: #{vitnet_forward.5} parent=59 // pred_check_branch
        %355 = sbr.rel (%p353) target = $region64
      $region63: #{vitnet_forward.5} parent=59 // pred_region
        %p356 = scmp.lt.s32.totalorder %s18, 1
        %s357 = scalar_select %p356, %s18, 1
        %s358 = smul.addr %s357, 3
        %s359 = smul.addr %s358, 8
        %s360 = scalar_lea.vmem %s0, %s359
      $region64: #{vitnet_forward.5} parent=59 // pred_fallthru
        _
    $region60: #{vitnet_forward.5} parent=5 // pred_fallthru
      _
    %p361 = scmp.le.s32.totalorder 1, %s18
    %p362 = scmp.lt.s32.totalorder %s18, 3
    %p363 = pnand %p361, %p362
    %p364 = pneg %p363
    // Predicated region
    $region65: #{vitnet_forward.5} parent=5 // pred_check
      _
    $region66: #{vitnet_forward.5} parent=5 // pred_check_branch
      %366 = sbr.rel (%p363) target = $region68
    $region67: #{vitnet_forward.5} parent=5 // pred_region
      %s367 = ssub.s32 %s18, 1
      %p368 = scmp.lt.s32.totalorder %s23, 1
      %s369 = scalar_select %p368, %s23, 1
      %s370 = smul.addr %s369, 3
      %s371 = smul.addr %s370, 8
      %s372 = scalar_lea.vmem %s0, %s371
      %p373 = pneg %p44
      %p374 = pneg %p41
      %p375 = pneg %p65
      %p376 = pneg %p62
      %p377 = pneg %p86
      %p378 = pneg %p83
      %p379 = pneg %p107
      %p380 = pneg %p104
      %p381 = pneg %p128
      %p382 = pneg %p125
      %p383 = pneg %p149
      %p384 = pneg %p146
      %p385 = pneg %p170
      %p386 = pneg %p167
      %p387 = pneg %p191
      %p388 = pneg %p188
      %p389 = pneg %p212
      %p390 = pneg %p209
      %p391 = pneg %p233
      %p392 = pneg %p230
      %p393 = pneg %p254
      %p394 = pneg %p251
      %p395 = pneg %p275
      %p396 = pneg %p272
      %p397 = pneg %p301
      %p398 = pneg %p298
      %p399 = scmp.lt.s32.totalorder %s23, 1
      %s400 = scalar_select %p399, %s23, 1
      %s401 = smul.addr %s400, 3
      %s402 = smul.addr %s401, 8
      %s403 = scalar_lea.vmem %s12, %s402
      %p404 = scmp.lt.s32.totalorder %s23, 1
      %s405 = scalar_select %p404, %s23, 1
      %s406 = smul.addr %s405, 3
      %s407 = smul.addr %s406, 8
      %s408 = scalar_lea.vmem %s0, %s407
      %p409 = scmp.lt.s32.totalorder %s23, 1
      %s410 = scalar_select %p409, %s23, 1
      %s411 = smul.addr %s410, 3
      %s412 = smul.addr %s411, 8
      %s413 = scalar_lea.vmem %s12, %s412
      %v415 = vld [vmem:[%s408] sm:$0xff]
      %v416 = vld [vmem:[%s408 + $0x8] sm:$0xff]
      %v417 = vld [vmem:[%s408 + $0x10] sm:$0x1]
      %v418 = vld [vmem:[%s1] sm:$0x1]
      %v419 = vld [vmem:[%s2] sm:$0x1]
      %420 = vadd.xlane.f32.xlu0 %v415
      %v421 = vpop.xlane.xlu0 %420
      %422 = vadd.xlane.f32.xlu0 %v416
      %v423 = vpop.xlane.xlu0 %422
      %vm424 = vcmask 1040384
      %v425 = vsel %vm424, %v417, 0.0
      %426 = vadd.xlane.f32.xlu0 %v425
      %v427 = vpop.xlane.xlu0 %426
      %v428 = vrcp.pop 128.0
      %v429 = vmul.f32 128.0, %v428
      %v430 = vsub.f32 1.0, %v429
      %v431 = vmul.f32 %v428, %v430
      %v432 = vadd.f32 %v428, %v431
      %vm433 = vweird.f32 %v428
      %v434 = vsel %vm433, %v428, %v432
      %v435 = vmul.f32 %v421, %v434
      %v436 = vmul.f32 %v423, %v434
      %v437 = vmul.f32 %v427, %v434
      %v438 = vsub.f32 %v415, %v435
      %v439 = vsub.f32 %v416, %v436
      %v440 = vsub.f32 %v417, %v437
      %v441 = vmul.f32 %v438, %v438
      %v442 = vmul.f32 %v439, %v439
      %v443 = vmul.f32 %v440, %v440
      %444 = vadd.xlane.f32.xlu0 %v441
      %v445 = vpop.xlane.xlu0 %444
      %446 = vadd.xlane.f32.xlu0 %v442
      %v447 = vpop.xlane.xlu0 %446
      %v448 = vsel %vm424, %v443, 0.0
      %449 = vadd.xlane.f32.xlu0 %v448
      %v450 = vpop.xlane.xlu0 %449
      %v451 = vmul.f32 %v445, %v434
      %v452 = vmul.f32 %v447, %v434
      %v453 = vmul.f32 %v450, %v434
      %v454 = vadd.f32 %v451, 1e-05
      %v455 = vadd.f32 %v452, 1e-05
      %v456 = vadd.f32 %v453, 1e-05
      %v457 = vrsqrt.pop %v454
      %v458 = vmul.f32 %v457, %v454
      %v459 = vmul.f32 %v458, %v457
      %v460 = vmul.f32 0.5, %v459
      %v461 = vsub.f32 1.5, %v460
      %v462 = vmul.f32 %v457, %v461
      %vm463 = vweird.f32 %v454
      %vm464 = vweird.f32 %v457
      %vm465 = vmor %vm463, %vm464
      %v466 = vsel %vm465, %v457, %v462
      %v467 = vrsqrt.pop %v455
      %v468 = vmul.f32 %v467, %v455
      %v469 = vmul.f32 %v468, %v467
      %v470 = vmul.f32 0.5, %v469
      %v471 = vsub.f32 1.5, %v470
      %v472 = vmul.f32 %v467, %v471
      %vm473 = vweird.f32 %v455
      %vm474 = vweird.f32 %v467
      %vm475 = vmor %vm473, %vm474
      %v476 = vsel %vm475, %v467, %v472
      %v477 = vrsqrt.pop %v456
      %v478 = vmul.f32 %v477, %v456
      %v479 = vmul.f32 %v478, %v477
      %v480 = vmul.f32 0.5, %v479
      %v481 = vsub.f32 1.5, %v480
      %v482 = vmul.f32 %v477, %v481
      %vm483 = vweird.f32 %v456
      %vm484 = vweird.f32 %v477
      %vm485 = vmor %vm483, %vm484
      %v486 = vsel %vm485, %v477, %v482
      %v487 = vmul.f32 %v438, %v466
      %v488 = vmul.f32 %v439, %v476
      %v489 = vmul.f32 %v440, %v486
      %v491 = vperm.slane %v418, 0
      %v493 = vmul.f32 %v487, %v491
      %v494 = vmul.f32 %v488, %v491
      %v495 = vmul.f32 %v489, %v491
      %v497 = vperm.slane %v419, 0
      %v499 = vadd.f32 %v493, %v497
      %v500 = vadd.f32 %v494, %v497
      %v501 = vadd.f32 %v495, %v497
      %v502 = vpack.c.bf16 %v500, %v499
      %v503 = vpack.c.bf16 %v501, %v501
      %v504 = vld [vmem:[%s3] sm:$0xff]
      %v505 = vld [vmem:[%s3 + $0x8] sm:$0xf]
      %v506 = vld [vmem:[%s3 + $0xc] sm:$0xff]
      %v507 = vld [vmem:[%s3 + $0x14] sm:$0xf]
      %v508 = vld [vmem:[%s3 + $0x18] sm:$0xff]
      %v509 = vld [vmem:[%s3 + $0x20] sm:$0xf]
      %v510 = vld [vmem:[%s3 + $0x24] sm:$0xff]
      %v511 = vld [vmem:[%s3 + $0x2c] sm:$0xf]
      %v512 = vld [vmem:[%s3 + $0x30] sm:$0xff]
      %v513 = vld [vmem:[%s3 + $0x38] sm:$0xf]
      %v514 = vld [vmem:[%s3 + $0x3c] sm:$0xff]
      %v515 = vld [vmem:[%s3 + $0x44] sm:$0xf]
      %v516 = vld [vmem:[%s3 + $0x48] sm:$0xff]
      %v517 = vld [vmem:[%s3 + $0x50] sm:$0xf]
      %v518 = vld [vmem:[%s3 + $0x54] sm:$0xff]
      %v519 = vld [vmem:[%s3 + $0x5c] sm:$0xf]
      %v520 = vld [vmem:[%s3 + $0x60] sm:$0xff]
      %v521 = vld [vmem:[%s3 + $0x68] sm:$0xf]
      %v522 = vld [vmem:[%s3 + $0x6c] sm:$0xff]
      %v523 = vld [vmem:[%s3 + $0x74] sm:$0xf]
      %v524 = vld [vmem:[%s3 + $0x78] sm:$0xff]
      %v525 = vld [vmem:[%s3 + $0x80] sm:$0xf]
      %v526 = vld [vmem:[%s3 + $0x84] sm:$0xff]
      %v527 = vld [vmem:[%s3 + $0x8c] sm:$0xf]
      %v528 = vld [vmem:[%s3 + $0x90] sm:$0xff]
      %v529 = vld [vmem:[%s3 + $0x98] sm:$0xf]
      %v530 = vld [vmem:[%s3 + $0x9c] sm:$0xff]
      %v531 = vld [vmem:[%s3 + $0xa4] sm:$0xf]
      %v532 = vld [vmem:[%s3 + $0xa8] sm:$0xff]
      %v533 = vld [vmem:[%s3 + $0xb0] sm:$0xf]
      %v534 = vld [vmem:[%s3 + $0xb4] sm:$0xff]
      %v535 = vld [vmem:[%s3 + $0xbc] sm:$0xf]
      %v568 = vunpack.c.l.b16 %v504
      %v569 = vunpack.c.h.b16 %v504
      %v570 = vunpack.c.l.b16 %v505
      %v571 = vunpack.c.l.b16 %v506
      %v572 = vunpack.c.h.b16 %v506
      %v573 = vunpack.c.l.b16 %v507
      %v574 = vunpack.c.l.b16 %v508
      %v575 = vunpack.c.h.b16 %v508
      %v576 = vunpack.c.l.b16 %v509
      %v577 = vunpack.c.l.b16 %v510
      %v578 = vunpack.c.h.b16 %v510
      %v579 = vunpack.c.l.b16 %v511
      %v580 = vunpack.c.l.b16 %v512
      %v581 = vunpack.c.h.b16 %v512
      %v582 = vunpack.c.l.b16 %v513
      %v583 = vunpack.c.l.b16 %v514
      %v584 = vunpack.c.h.b16 %v514
      %v585 = vunpack.c.l.b16 %v515
      %v586 = vunpack.c.l.b16 %v516
      %v587 = vunpack.c.h.b16 %v516
      %v588 = vunpack.c.l.b16 %v517
      %v589 = vunpack.c.l.b16 %v518
      %v590 = vunpack.c.h.b16 %v518
      %v591 = vunpack.c.l.b16 %v519
      %v592 = vunpack.c.l.b16 %v520
      %v593 = vunpack.c.h.b16 %v520
      %v594 = vunpack.c.l.b16 %v521
      %v595 = vunpack.c.l.b16 %v522
      %v596 = vunpack.c.h.b16 %v522
      %v597 = vunpack.c.l.b16 %v523
      %v598 = vunpack.c.l.b16 %v524
      %v599 = vunpack.c.h.b16 %v524
      %v600 = vunpack.c.l.b16 %v525
      %v601 = vunpack.c.l.b16 %v526
      %v602 = vunpack.c.h.b16 %v526
      %v603 = vunpack.c.l.b16 %v527
      %v604 = vunpack.c.l.b16 %v528
      %v605 = vunpack.c.h.b16 %v528
      %v606 = vunpack.c.l.b16 %v529
      %v607 = vunpack.c.l.b16 %v530
      %v608 = vunpack.c.h.b16 %v530
      %v609 = vunpack.c.l.b16 %v531
      %v610 = vunpack.c.l.b16 %v532
      %v611 = vunpack.c.h.b16 %v532
      %v612 = vunpack.c.l.b16 %v533
      %v613 = vunpack.c.l.b16 %v534
      %v614 = vunpack.c.h.b16 %v534
      %v615 = vunpack.c.l.b16 %v535
      %v616 = vpack.c.b16 %v571, %v568
      %v617 = vpack.c.b16 %v572, %v569
      %v618 = vpack.c.b16 %v573, %v570
      %v619 = vpack.c.b16 %v577, %v574
      %v620 = vpack.c.b16 %v578, %v575
      %v621 = vpack.c.b16 %v579, %v576
      %v622 = vpack.c.b16 %v583, %v580
      %v623 = vpack.c.b16 %v584, %v581
      %v624 = vpack.c.b16 %v585, %v582
      %v625 = vpack.c.b16 %v589, %v586
      %v626 = vpack.c.b16 %v590, %v587
      %v627 = vpack.c.b16 %v591, %v588
      %v628 = vpack.c.b16 %v595, %v592
      %v629 = vpack.c.b16 %v596, %v593
      %v630 = vpack.c.b16 %v597, %v594
      %v631 = vpack.c.b16 %v601, %v598
      %v632 = vpack.c.b16 %v602, %v599
      %v633 = vpack.c.b16 %v603, %v600
      %v634 = vpack.c.b16 %v607, %v604
      %v635 = vpack.c.b16 %v608, %v605
      %v636 = vpack.c.b16 %v609, %v606
      %v637 = vpack.c.b16 %v613, %v610
      %v638 = vpack.c.b16 %v614, %v611
      %v639 = vpack.c.b16 %v615, %v612
      %664 = vmatpush.bf16.msra.mxu0 %v637
      %665 = vmatpush.bf16.msra.mxu0 %v634
      %666 = vmatpush.bf16.msra.mxu0 %v631
      %667 = vmatpush.bf16.msra.mxu0 %v628
      %668 = vmatpush.bf16.msra.mxu0 %v625
      %669 = vmatpush.bf16.msra.mxu0 %v622
      %670 = vmatpush.bf16.msra.mxu0 %v619
      %671 = vmatpush.bf16.msra.mxu0 %v616
      %672 = vmatmul.bf16.gmra.mxu0 %v502
      %v673 = vpop.f32.mrf.mxu0
      %v674 = vadd.f32 0.0, %v673
      %v675 = vpop.f32.mrf.mxu0
      %v676 = vadd.f32 0.0, %v675
      %677 = vmatmul.bf16.gmra.mxu0 %v503
      %v678 = vpop.f32.mrf.mxu0
      %v679 = vadd.f32 0.0, %v678
      %v680 = vpop.f32.mrf.mxu0
      %681 = vdwg.mxu0
      %682 = vmatpush.bf16.msra.mxu0 %v638
      %683 = vmatpush.bf16.msra.mxu0 %v635
      %684 = vmatpush.bf16.msra.mxu0 %v632
      %685 = vmatpush.bf16.msra.mxu0 %v629
      %686 = vmatpush.bf16.msra.mxu0 %v626
      %687 = vmatpush.bf16.msra.mxu0 %v623
      %688 = vmatpush.bf16.msra.mxu0 %v620
      %689 = vmatpush.bf16.msra.mxu0 %v617
      %690 = vmatmul.bf16.gmra.mxu0 %v502
      %v691 = vpop.f32.mrf.mxu0
      %v692 = vadd.f32 0.0, %v691
      %v693 = vpop.f32.mrf.mxu0
      %v694 = vadd.f32 0.0, %v693
      %695 = vmatmul.bf16.gmra.mxu0 %v503
      %v696 = vpop.f32.mrf.mxu0
      %v697 = vadd.f32 0.0, %v696
      %v698 = vpop.f32.mrf.mxu0
      %699 = vdwg.mxu0
      %700 = vmatpush.bf16.msra.mxu0 %v639
      %701 = vmatpush.bf16.msra.mxu0 %v636
      %702 = vmatpush.bf16.msra.mxu0 %v633
      %703 = vmatpush.bf16.msra.mxu0 %v630
      %704 = vmatpush.bf16.msra.mxu0 %v627
      %705 = vmatpush.bf16.msra.mxu0 %v624
      %706 = vmatpush.bf16.msra.mxu0 %v621
      %707 = vmatpush.bf16.msra.mxu0 %v618
      %708 = vmatmul.bf16.gmra.mxu0 %v502
      %v709 = vpop.f32.mrf.mxu0
      %v710 = vadd.f32 0.0, %v709
      %v711 = vpop.f32.mrf.mxu0
      %v712 = vadd.f32 0.0, %v711
      %713 = vmatmul.bf16.gmra.mxu0 %v503
      %v714 = vpop.f32.mrf.mxu0
      %v715 = vadd.f32 0.0, %v714
      %v716 = vpop.f32.mrf.mxu0
      %717 = vdwg.mxu0
      %v718 = vld [vmem:[%s5] sm:$0x1]
      %v720 = vperm.slane %v718, 0
      %v722 = vadd.f32 %v415, %v720
      %v723 = vadd.f32 %v416, %v720
      %v724 = vadd.f32 %v417, %v720
      %v725 = vpack.c.bf16 %v676, %v674
      %v726 = vpack.c.bf16 %v679, %v679
      %v727 = vpack.c.bf16 %v694, %v692
      %v728 = vpack.c.bf16 %v697, %v697
      %vm729 = vcmask 261120
      %v731 = vsel %vm729, %v725, 0
      %v734 = vsel %vm729, %v726, 0
      %v737 = vsel %vm729, %v727, 0
      %v740 = vsel %vm729, %v728, 0
      %742 = vmatpush.bf16.xpose.msra.mxu0 0
      %743 = vmatpush.bf16.xpose.msra.mxu0 0
      %744 = vmatpush.bf16.xpose.msra.mxu0 0
      %745 = vmatpush.bf16.xpose.msra.mxu0 0
      %746 = vmatpush.bf16.xpose.msra.mxu0 0
      %747 = vmatpush.bf16.xpose.msra.mxu0 0
      %748 = vmatpush.bf16.xpose.msra.mxu0 %v740
      %749 = vmatpush.bf16.xpose.msra.mxu0 %v737
      %750 = vmatmul.bf16.gmra.mxu0 %v731
      %v751 = vpop.f32.mrf.mxu0
      %v752 = vadd.f32 0.0, %v751
      %v753 = vpop.f32.mrf.mxu0
      %v754 = vadd.f32 0.0, %v753
      %755 = vmatmul.bf16.gmra.mxu0 %v734
      %v756 = vpop.f32.mrf.mxu0
      %v757 = vadd.f32 0.0, %v756
      %v758 = vpop.f32.mrf.mxu0
      %759 = vdwg.mxu0
      %vm760 = vcmask 138240
      %v761 = vsel %vm760, %v752, -inf
      %762 = vmax.xlane.f32.xlu0 %v761
      %v763 = vpop.xlane.xlu0 %762
      %v764 = vsel %vm760, %v754, -inf
      %765 = vmax.xlane.f32.xlu0 %v764
      %v766 = vpop.xlane.xlu0 %765
      %vm767 = vcmask 131072
      %v768 = vsel %vm767, %v757, -inf
      %769 = vmax.xlane.f32.xlu0 %v768
      %v770 = vpop.xlane.xlu0 %769
      %v771 = vsub.f32 %v752, %v763
      %v772 = vsub.f32 %v754, %v766
      %v773 = vsub.f32 %v757, %v770
      %v774 = vmul.f32 %v771, 1.442695
      %v775 = vpow.pop %v774
      %v776 = vmul.f32 %v772, 1.442695
      %v777 = vpow.pop %v776
      %v778 = vmul.f32 %v773, 1.442695
      %v779 = vpow.pop %v778
      %v780 = vsel %vm760, %v775, 0.0
      %781 = vadd.xlane.f32.xlu0 %v780
      %v782 = vpop.xlane.xlu0 %781
      %v783 = vsel %vm760, %v777, 0.0
      %784 = vadd.xlane.f32.xlu0 %v783
      %v785 = vpop.xlane.xlu0 %784
      %v786 = vsel %vm767, %v779, 0.0
      %787 = vadd.xlane.f32.xlu0 %v786
      %v788 = vpop.xlane.xlu0 %787
      %v789 = vrcp.pop %v782
      %v790 = vrcp.pop %v785
      %v791 = vrcp.pop %v788
      %v792 = vmul.f32 %v775, %v789
      %v793 = vmul.f32 %v777, %v790
      %v794 = vmul.f32 %v779, %v791
      %v795 = vpack.c.bf16 %v712, %v710
      %v796 = vpack.c.bf16 %v715, %v715
      %v797 = vld [vmem:[%s4] sm:$0xf]
      %v798 = vld [vmem:[%s4 + $0x4] sm:$0xf]
      %v799 = vld [vmem:[%s4 + $0x8] sm:$0xf]
      %v800 = vld [vmem:[%s4 + $0xc] sm:$0xf]
      %v805 = vunpack.c.l.b16 %v797
      %v806 = vunpack.c.l.b16 %v798
      %v807 = vunpack.c.l.b16 %v799
      %v808 = vunpack.c.l.b16 %v800
      %v809 = vpack.c.b16 %v806, %v805
      %v810 = vpack.c.b16 %v808, %v807
      %v814 = vsel %vm729, %v795, 0
      %v817 = vsel %vm729, %v796, 0
      %819 = vmatpush.bf16.msra.mxu0 0
      %820 = vmatpush.bf16.msra.mxu0 0
      %821 = vmatpush.bf16.msra.mxu0 0
      %822 = vmatpush.bf16.msra.mxu0 0
      %823 = vmatpush.bf16.msra.mxu0 0
      %824 = vmatpush.bf16.msra.mxu0 0
      %825 = vmatpush.bf16.msra.mxu0 %v810
      %826 = vmatpush.bf16.msra.mxu0 %v809
      %827 = vmatmul.bf16.gmra.mxu0 %v814
      %v828 = vpop.f32.mrf.mxu0
      %v829 = vadd.f32 0.0, %v828
      %v830 = vpop.f32.mrf.mxu0
      %v831 = vadd.f32 0.0, %v830
      %832 = vmatmul.bf16.gmra.mxu0 %v817
      %v833 = vpop.f32.mrf.mxu0
      %v834 = vadd.f32 0.0, %v833
      %v835 = vpop.f32.mrf.mxu0
      %836 = vdwg.mxu0
      %v837 = vpack.c.bf16 %v793, %v792
      %v838 = vpack.c.bf16 %v794, %v794
      %v839 = vpack.c.bf16 %v831, %v829
      %v840 = vpack.c.bf16 %v834, %v834
      %v842 = vsel %vm760, %v837, 0
      %v845 = vsel %vm760, %v838, 0
      %v847 = vsel 0, 4294967295, 65535
      %v848 = vsel %vm424, %v847, 0
      %v850 = vand.u32 %v840, %v848
      %852 = vmatpush.bf16.msra.mxu0 0
      %853 = vmatpush.bf16.msra.mxu0 0
      %854 = vmatpush.bf16.msra.mxu0 0
      %855 = vmatpush.bf16.msra.mxu0 0
      %856 = vmatpush.bf16.msra.mxu0 0
      %857 = vmatpush.bf16.msra.mxu0 0
      %858 = vmatpush.bf16.msra.mxu0 %v850
      %859 = vmatpush.bf16.msra.mxu0 %v839
      %860 = vmatmul.bf16.gmra.mxu0 %v842
      %v861 = vpop.f32.mrf.mxu0
      %v862 = vadd.f32 0.0, %v861
      %v863 = vpop.f32.mrf.mxu0
      %v864 = vadd.f32 0.0, %v863
      %865 = vmatmul.bf16.gmra.mxu0 %v845
      %v866 = vpop.f32.mrf.mxu0
      %v867 = vadd.f32 0.0, %v866
      %v868 = vpop.f32.mrf.mxu0
      %869 = vdwg.mxu0
      %v870 = vadd.f32 %v722, %v862
      %v871 = vadd.f32 %v723, %v864
      %v872 = vadd.f32 %v724, %v867
      %875 = vrot.lane.b32.xlu0 %v725, 96
      %v876 = vpop.permute.xlu0 %875
      %877 = vrot.lane.b32.xlu0 %v726, 96
      %v878 = vpop.permute.xlu0 %877
      %881 = vrot.lane.b32.xlu0 %v727, 96
      %v882 = vpop.permute.xlu0 %881
      %883 = vrot.lane.b32.xlu0 %v728, 96
      %v884 = vpop.permute.xlu0 %883
      %v886 = vsel %vm729, %v876, 0
      %v889 = vsel %vm729, %v878, 0
      %v892 = vsel %vm729, %v882, 0
      %v895 = vsel %vm729, %v884, 0
      %897 = vmatpush.bf16.xpose.msra.mxu0 0
      %898 = vmatpush.bf16.xpose.msra.mxu0 0
      %899 = vmatpush.bf16.xpose.msra.mxu0 0
      %900 = vmatpush.bf16.xpose.msra.mxu0 0
      %901 = vmatpush.bf16.xpose.msra.mxu0 0
      %902 = vmatpush.bf16.xpose.msra.mxu0 0
      %903 = vmatpush.bf16.xpose.msra.mxu0 %v895
      %904 = vmatpush.bf16.xpose.msra.mxu0 %v892
      %905 = vmatmul.bf16.gmra.mxu0 %v886
      %v906 = vpop.f32.mrf.mxu0
      %v907 = vadd.f32 0.0, %v906
      %v908 = vpop.f32.mrf.mxu0
      %v909 = vadd.f32 0.0, %v908
      %910 = vmatmul.bf16.gmra.mxu0 %v889
      %v911 = vpop.f32.mrf.mxu0
      %v912 = vadd.f32 0.0, %v911
      %v913 = vpop.f32.mrf.mxu0
      %914 = vdwg.mxu0
      %v915 = vsel %vm760, %v907, -inf
      %916 = vmax.xlane.f32.xlu0 %v915
      %v917 = vpop.xlane.xlu0 %916
      %v918 = vsel %vm760, %v909, -inf
      %919 = vmax.xlane.f32.xlu0 %v918
      %v920 = vpop.xlane.xlu0 %919
      %v921 = vsel %vm767, %v912, -inf
      %922 = vmax.xlane.f32.xlu0 %v921
      %v923 = vpop.xlane.xlu0 %922
      %v924 = vsub.f32 %v907, %v917
      %v925 = vsub.f32 %v909, %v920
      %v926 = vsub.f32 %v912, %v923
      %v927 = vmul.f32 %v924, 1.442695
      %v928 = vpow.pop %v927
      %v929 = vmul.f32 %v925, 1.442695
      %v930 = vpow.pop %v929
      %v931 = vmul.f32 %v926, 1.442695
      %v932 = vpow.pop %v931
      %v933 = vsel %vm760, %v928, 0.0
      %934 = vadd.xlane.f32.xlu0 %v933
      %v935 = vpop.xlane.xlu0 %934
      %v936 = vsel %vm760, %v930, 0.0
      %937 = vadd.xlane.f32.xlu0 %v936
      %v938 = vpop.xlane.xlu0 %937
      %v939 = vsel %vm767, %v932, 0.0
      %940 = vadd.xlane.f32.xlu0 %v939
      %v941 = vpop.xlane.xlu0 %940
      %v942 = vrcp.pop %v935
      %v943 = vrcp.pop %v938
      %v944 = vrcp.pop %v941
      %v945 = vmul.f32 %v928, %v942
      %v946 = vmul.f32 %v930, %v943
      %v947 = vmul.f32 %v932, %v944
      %s948 = scalar_lea.vmem %s4, 16
      %v949 = vld [vmem:[%s948] sm:$0xf]
      %v950 = vld [vmem:[%s948 + $0x4] sm:$0xf]
      %v951 = vld [vmem:[%s948 + $0x8] sm:$0xf]
      %v952 = vld [vmem:[%s948 + $0xc] sm:$0xf]
      %955 = vrot.lane.b32.xlu0 %v795, 96
      %v956 = vpop.permute.xlu0 %955
      %957 = vrot.lane.b32.xlu0 %v796, 96
      %v958 = vpop.permute.xlu0 %957
      %v963 = vunpack.c.l.b16 %v949
      %v964 = vunpack.c.l.b16 %v950
      %v965 = vunpack.c.l.b16 %v951
      %v966 = vunpack.c.l.b16 %v952
      %v967 = vpack.c.b16 %v964, %v963
      %v968 = vpack.c.b16 %v966, %v965
      %v972 = vsel %vm729, %v956, 0
      %v975 = vsel %vm729, %v958, 0
      %977 = vmatpush.bf16.msra.mxu0 0
      %978 = vmatpush.bf16.msra.mxu0 0
      %979 = vmatpush.bf16.msra.mxu0 0
      %980 = vmatpush.bf16.msra.mxu0 0
      %981 = vmatpush.bf16.msra.mxu0 0
      %982 = vmatpush.bf16.msra.mxu0 0
      %983 = vmatpush.bf16.msra.mxu0 %v968
      %984 = vmatpush.bf16.msra.mxu0 %v967
      %985 = vmatmul.bf16.gmra.mxu0 %v972
      %v986 = vpop.f32.mrf.mxu0
      %v987 = vadd.f32 0.0, %v986
      %v988 = vpop.f32.mrf.mxu0
      %v989 = vadd.f32 0.0, %v988
      %990 = vmatmul.bf16.gmra.mxu0 %v975
      %v991 = vpop.f32.mrf.mxu0
      %v992 = vadd.f32 0.0, %v991
      %v993 = vpop.f32.mrf.mxu0
      %994 = vdwg.mxu0
      %v995 = vpack.c.bf16 %v946, %v945
      %v996 = vpack.c.bf16 %v947, %v947
      %v997 = vpack.c.bf16 %v989, %v987
      %v998 = vpack.c.bf16 %v992, %v992
      %v1000 = vsel %vm760, %v995, 0
      %v1003 = vsel %vm760, %v996, 0
      %v1006 = vand.u32 %v998, %v848
      %1008 = vmatpush.bf16.msra.mxu0 0
      %1009 = vmatpush.bf16.msra.mxu0 0
      %1010 = vmatpush.bf16.msra.mxu0 0
      %1011 = vmatpush.bf16.msra.mxu0 0
      %1012 = vmatpush.bf16.msra.mxu0 0
      %1013 = vmatpush.bf16.msra.mxu0 0
      %1014 = vmatpush.bf16.msra.mxu0 %v1006
      %1015 = vmatpush.bf16.msra.mxu0 %v997
      %1016 = vmatmul.bf16.gmra.mxu0 %v1000
      %v1017 = vpop.f32.mrf.mxu0
      %v1018 = vadd.f32 0.0, %v1017
      %v1019 = vpop.f32.mrf.mxu0
      %v1020 = vadd.f32 0.0, %v1019
      %1021 = vmatmul.bf16.gmra.mxu0 %v1003
      %v1022 = vpop.f32.mrf.mxu0
      %v1023 = vadd.f32 0.0, %v1022
      %v1024 = vpop.f32.mrf.mxu0
      %1025 = vdwg.mxu0
      %v1026 = vadd.f32 %v870, %v1018
      %v1027 = vadd.f32 %v871, %v1020
      %v1028 = vadd.f32 %v872, %v1023
      %1029 = vrot.lane.b32.xlu0 %v725, 64
      %v1030 = vpop.permute.xlu0 %1029
      %1031 = vrot.lane.b32.xlu0 %v726, 64
      %v1032 = vpop.permute.xlu0 %1031
      %1033 = vrot.lane.b32.xlu0 %v727, 64
      %v1034 = vpop.permute.xlu0 %1033
      %1035 = vrot.lane.b32.xlu0 %v728, 64
      %v1036 = vpop.permute.xlu0 %1035
      %v1038 = vsel %vm729, %v1030, 0
      %v1041 = vsel %vm729, %v1032, 0
      %v1044 = vsel %vm729, %v1034, 0
      %v1047 = vsel %vm729, %v1036, 0
      %1049 = vmatpush.bf16.xpose.msra.mxu0 0
      %1050 = vmatpush.bf16.xpose.msra.mxu0 0
      %1051 = vmatpush.bf16.xpose.msra.mxu0 0
      %1052 = vmatpush.bf16.xpose.msra.mxu0 0
      %1053 = vmatpush.bf16.xpose.msra.mxu0 0
      %1054 = vmatpush.bf16.xpose.msra.mxu0 0
      %1055 = vmatpush.bf16.xpose.msra.mxu0 %v1047
      %1056 = vmatpush.bf16.xpose.msra.mxu0 %v1044
      %1057 = vmatmul.bf16.gmra.mxu0 %v1038
      %v1058 = vpop.f32.mrf.mxu0
      %v1059 = vadd.f32 0.0, %v1058
      %v1060 = vpop.f32.mrf.mxu0
      %v1061 = vadd.f32 0.0, %v1060
      %1062 = vmatmul.bf16.gmra.mxu0 %v1041
      %v1063 = vpop.f32.mrf.mxu0
      %v1064 = vadd.f32 0.0, %v1063
      %v1065 = vpop.f32.mrf.mxu0
      %1066 = vdwg.mxu0
      %v1067 = vsel %vm760, %v1059, -inf
      %1068 = vmax.xlane.f32.xlu0 %v1067
      %v1069 = vpop.xlane.xlu0 %1068
      %v1070 = vsel %vm760, %v1061, -inf
      %1071 = vmax.xlane.f32.xlu0 %v1070
      %v1072 = vpop.xlane.xlu0 %1071
      %v1073 = vsel %vm767, %v1064, -inf
      %1074 = vmax.xlane.f32.xlu0 %v1073
      %v1075 = vpop.xlane.xlu0 %1074
      %v1076 = vsub.f32 %v1059, %v1069
      %v1077 = vsub.f32 %v1061, %v1072
      %v1078 = vsub.f32 %v1064, %v1075
      %v1079 = vmul.f32 %v1076, 1.442695
      %v1080 = vpow.pop %v1079
      %v1081 = vmul.f32 %v1077, 1.442695
      %v1082 = vpow.pop %v1081
      %v1083 = vmul.f32 %v1078, 1.442695
      %v1084 = vpow.pop %v1083
      %v1085 = vsel %vm760, %v1080, 0.0
      %1086 = vadd.xlane.f32.xlu0 %v1085
      %v1087 = vpop.xlane.xlu0 %1086
      %v1088 = vsel %vm760, %v1082, 0.0
      %1089 = vadd.xlane.f32.xlu0 %v1088
      %v1090 = vpop.xlane.xlu0 %1089
      %v1091 = vsel %vm767, %v1084, 0.0
      %1092 = vadd.xlane.f32.xlu0 %v1091
      %v1093 = vpop.xlane.xlu0 %1092
      %v1094 = vrcp.pop %v1087
      %v1095 = vrcp.pop %v1090
      %v1096 = vrcp.pop %v1093
      %v1097 = vmul.f32 %v1080, %v1094
      %v1098 = vmul.f32 %v1082, %v1095
      %v1099 = vmul.f32 %v1084, %v1096
      %s1100 = scalar_lea.vmem %s4, 32
      %v1101 = vld [vmem:[%s1100] sm:$0xf]
      %v1102 = vld [vmem:[%s1100 + $0x4] sm:$0xf]
      %v1103 = vld [vmem:[%s1100 + $0x8] sm:$0xf]
      %v1104 = vld [vmem:[%s1100 + $0xc] sm:$0xf]
      %1105 = vrot.lane.b32.xlu0 %v795, 64
      %v1106 = vpop.permute.xlu0 %1105
      %1107 = vrot.lane.b32.xlu0 %v796, 64
      %v1108 = vpop.permute.xlu0 %1107
      %v1113 = vunpack.c.l.b16 %v1101
      %v1114 = vunpack.c.l.b16 %v1102
      %v1115 = vunpack.c.l.b16 %v1103
      %v1116 = vunpack.c.l.b16 %v1104
      %v1117 = vpack.c.b16 %v1114, %v1113
      %v1118 = vpack.c.b16 %v1116, %v1115
      %v1122 = vsel %vm729, %v1106, 0
      %v1125 = vsel %vm729, %v1108, 0
      %1127 = vmatpush.bf16.msra.mxu0 0
      %1128 = vmatpush.bf16.msra.mxu0 0
      %1129 = vmatpush.bf16.msra.mxu0 0
      %1130 = vmatpush.bf16.msra.mxu0 0
      %1131 = vmatpush.bf16.msra.mxu0 0
      %1132 = vmatpush.bf16.msra.mxu0 0
      %1133 = vmatpush.bf16.msra.mxu0 %v1118
      %1134 = vmatpush.bf16.msra.mxu0 %v1117
      %1135 = vmatmul.bf16.gmra.mxu0 %v1122
      %v1136 = vpop.f32.mrf.mxu0
      %v1137 = vadd.f32 0.0, %v1136
      %v1138 = vpop.f32.mrf.mxu0
      %v1139 = vadd.f32 0.0, %v1138
      %1140 = vmatmul.bf16.gmra.mxu0 %v1125
      %v1141 = vpop.f32.mrf.mxu0
      %v1142 = vadd.f32 0.0, %v1141
      %v1143 = vpop.f32.mrf.mxu0
      %1144 = vdwg.mxu0
      %v1145 = vpack.c.bf16 %v1098, %v1097
      %v1146 = vpack.c.bf16 %v1099, %v1099
      %v1147 = vpack.c.bf16 %v1139, %v1137
      %v1148 = vpack.c.bf16 %v1142, %v1142
      %v1150 = vsel %vm760, %v1145, 0
      %v1153 = vsel %vm760, %v1146, 0
      %v1156 = vand.u32 %v1148, %v848
      %1158 = vmatpush.bf16.msra.mxu0 0
      %1159 = vmatpush.bf16.msra.mxu0 0
      %1160 = vmatpush.bf16.msra.mxu0 0
      %1161 = vmatpush.bf16.msra.mxu0 0
      %1162 = vmatpush.bf16.msra.mxu0 0
      %1163 = vmatpush.bf16.msra.mxu0 0
      %1164 = vmatpush.bf16.msra.mxu0 %v1156
      %1165 = vmatpush.bf16.msra.mxu0 %v1147
      %1166 = vmatmul.bf16.gmra.mxu0 %v1150
      %v1167 = vpop.f32.mrf.mxu0
      %v1168 = vadd.f32 0.0, %v1167
      %v1169 = vpop.f32.mrf.mxu0
      %v1170 = vadd.f32 0.0, %v1169
      %1171 = vmatmul.bf16.gmra.mxu0 %v1153
      %v1172 = vpop.f32.mrf.mxu0
      %v1173 = vadd.f32 0.0, %v1172
      %v1174 = vpop.f32.mrf.mxu0
      %1175 = vdwg.mxu0
      %v1176 = vadd.f32 %v1026, %v1168
      %v1177 = vadd.f32 %v1027, %v1170
      %v1178 = vadd.f32 %v1028, %v1173
      %1179 = vrot.lane.b32.xlu0 %v725, 32
      %v1180 = vpop.permute.xlu0 %1179
      %1181 = vrot.lane.b32.xlu0 %v726, 32
      %v1182 = vpop.permute.xlu0 %1181
      %1183 = vrot.lane.b32.xlu0 %v727, 32
      %v1184 = vpop.permute.xlu0 %1183
      %1185 = vrot.lane.b32.xlu0 %v728, 32
      %v1186 = vpop.permute.xlu0 %1185
      %v1188 = vsel %vm729, %v1180, 0
      %v1191 = vsel %vm729, %v1182, 0
      %v1194 = vsel %vm729, %v1184, 0
      %v1197 = vsel %vm729, %v1186, 0
      %1199 = vmatpush.bf16.xpose.msra.mxu0 0
      %1200 = vmatpush.bf16.xpose.msra.mxu0 0
      %1201 = vmatpush.bf16.xpose.msra.mxu0 0
      %1202 = vmatpush.bf16.xpose.msra.mxu0 0
      %1203 = vmatpush.bf16.xpose.msra.mxu0 0
      %1204 = vmatpush.bf16.xpose.msra.mxu0 0
      %1205 = vmatpush.bf16.xpose.msra.mxu0 %v1197
      %1206 = vmatpush.bf16.xpose.msra.mxu0 %v1194
      %1207 = vmatmul.bf16.gmra.mxu0 %v1188
      %v1208 = vpop.f32.mrf.mxu0
      %v1209 = vadd.f32 0.0, %v1208
      %v1210 = vpop.f32.mrf.mxu0
      %v1211 = vadd.f32 0.0, %v1210
      %1212 = vmatmul.bf16.gmra.mxu0 %v1191
      %v1213 = vpop.f32.mrf.mxu0
      %v1214 = vadd.f32 0.0, %v1213
      %v1215 = vpop.f32.mrf.mxu0
      %1216 = vdwg.mxu0
      %v1217 = vsel %vm760, %v1209, -inf
      %1218 = vmax.xlane.f32.xlu0 %v1217
      %v1219 = vpop.xlane.xlu0 %1218
      %v1220 = vsel %vm760, %v1211, -inf
      %1221 = vmax.xlane.f32.xlu0 %v1220
      %v1222 = vpop.xlane.xlu0 %1221
      %v1223 = vsel %vm767, %v1214, -inf
      %1224 = vmax.xlane.f32.xlu0 %v1223
      %v1225 = vpop.xlane.xlu0 %1224
      %v1226 = vsub.f32 %v1209, %v1219
      %v1227 = vsub.f32 %v1211, %v1222
      %v1228 = vsub.f32 %v1214, %v1225
      %v1229 = vmul.f32 %v1226, 1.442695
      %v1230 = vpow.pop %v1229
      %v1231 = vmul.f32 %v1227, 1.442695
      %v1232 = vpow.pop %v1231
      %v1233 = vmul.f32 %v1228, 1.442695
      %v1234 = vpow.pop %v1233
      %v1235 = vsel %vm760, %v1230, 0.0
      %1236 = vadd.xlane.f32.xlu0 %v1235
      %v1237 = vpop.xlane.xlu0 %1236
      %v1238 = vsel %vm760, %v1232, 0.0
      %1239 = vadd.xlane.f32.xlu0 %v1238
      %v1240 = vpop.xlane.xlu0 %1239
      %v1241 = vsel %vm767, %v1234, 0.0
      %1242 = vadd.xlane.f32.xlu0 %v1241
      %v1243 = vpop.xlane.xlu0 %1242
      %v1244 = vrcp.pop %v1237
      %v1245 = vrcp.pop %v1240
      %v1246 = vrcp.pop %v1243
      %v1247 = vmul.f32 %v1230, %v1244
      %v1248 = vmul.f32 %v1232, %v1245
      %v1249 = vmul.f32 %v1234, %v1246
      %s1250 = scalar_lea.vmem %s4, 48
      %v1251 = vld [vmem:[%s1250] sm:$0xf]
      %v1252 = vld [vmem:[%s1250 + $0x4] sm:$0xf]
      %v1253 = vld [vmem:[%s1250 + $0x8] sm:$0xf]
      %v1254 = vld [vmem:[%s1250 + $0xc] sm:$0xf]
      %1255 = vrot.lane.b32.xlu0 %v795, 32
      %v1256 = vpop.permute.xlu0 %1255
      %1257 = vrot.lane.b32.xlu0 %v796, 32
      %v1258 = vpop.permute.xlu0 %1257
      %v1263 = vunpack.c.l.b16 %v1251
      %v1264 = vunpack.c.l.b16 %v1252
      %v1265 = vunpack.c.l.b16 %v1253
      %v1266 = vunpack.c.l.b16 %v1254
      %v1267 = vpack.c.b16 %v1264, %v1263
      %v1268 = vpack.c.b16 %v1266, %v1265
      %v1272 = vsel %vm729, %v1256, 0
      %v1275 = vsel %vm729, %v1258, 0
      %1277 = vmatpush.bf16.msra.mxu0 0
      %1278 = vmatpush.bf16.msra.mxu0 0
      %1279 = vmatpush.bf16.msra.mxu0 0
      %1280 = vmatpush.bf16.msra.mxu0 0
      %1281 = vmatpush.bf16.msra.mxu0 0
      %1282 = vmatpush.bf16.msra.mxu0 0
      %1283 = vmatpush.bf16.msra.mxu0 %v1268
      %1284 = vmatpush.bf16.msra.mxu0 %v1267
      %1285 = vmatmul.bf16.gmra.mxu0 %v1272
      %v1286 = vpop.f32.mrf.mxu0
      %v1287 = vadd.f32 0.0, %v1286
      %v1288 = vpop.f32.mrf.mxu0
      %v1289 = vadd.f32 0.0, %v1288
      %1290 = vmatmul.bf16.gmra.mxu0 %v1275
      %v1291 = vpop.f32.mrf.mxu0
      %v1292 = vadd.f32 0.0, %v1291
      %v1293 = vpop.f32.mrf.mxu0
      %1294 = vdwg.mxu0
      %v1295 = vpack.c.bf16 %v1248, %v1247
      %v1296 = vpack.c.bf16 %v1249, %v1249
      %v1297 = vpack.c.bf16 %v1289, %v1287
      %v1298 = vpack.c.bf16 %v1292, %v1292
      %v1300 = vsel %vm760, %v1295, 0
      %v1303 = vsel %vm760, %v1296, 0
      %v1306 = vand.u32 %v1298, %v848
      %1308 = vmatpush.bf16.msra.mxu0 0
      %1309 = vmatpush.bf16.msra.mxu0 0
      %1310 = vmatpush.bf16.msra.mxu0 0
      %1311 = vmatpush.bf16.msra.mxu0 0
      %1312 = vmatpush.bf16.msra.mxu0 0
      %1313 = vmatpush.bf16.msra.mxu0 0
      %1314 = vmatpush.bf16.msra.mxu0 %v1306
      %1315 = vmatpush.bf16.msra.mxu0 %v1297
      %1316 = vmatmul.bf16.gmra.mxu0 %v1300
      %v1317 = vpop.f32.mrf.mxu0
      %v1318 = vadd.f32 0.0, %v1317
      %v1319 = vpop.f32.mrf.mxu0
      %v1320 = vadd.f32 0.0, %v1319
      %1321 = vmatmul.bf16.gmra.mxu0 %v1303
      %v1322 = vpop.f32.mrf.mxu0
      %v1323 = vadd.f32 0.0, %v1322
      %v1324 = vpop.f32.mrf.mxu0
      %1325 = vdwg.mxu0
      %v1326 = vadd.f32 %v1176, %v1318
      %v1327 = vadd.f32 %v1177, %v1320
      %v1328 = vadd.f32 %v1178, %v1323
      %v1329 = vld [vmem:[%s6] sm:$0x1]
      %v1330 = vld [vmem:[%s7] sm:$0x1]
      %1331 = vadd.xlane.f32.xlu0 %v1326
      %v1332 = vpop.xlane.xlu0 %1331
      %1333 = vadd.xlane.f32.xlu0 %v1327
      %v1334 = vpop.xlane.xlu0 %1333
      %v1335 = vsel %vm424, %v1328, 0.0
      %1336 = vadd.xlane.f32.xlu0 %v1335
      %v1337 = vpop.xlane.xlu0 %1336
      %v1338 = vmul.f32 %v1332, %v434
      %v1339 = vmul.f32 %v1334, %v434
      %v1340 = vmul.f32 %v1337, %v434
      %v1341 = vsub.f32 %v1326, %v1338
      %v1342 = vsub.f32 %v1327, %v1339
      %v1343 = vsub.f32 %v1328, %v1340
      %v1344 = vmul.f32 %v1341, %v1341
      %v1345 = vmul.f32 %v1342, %v1342
      %v1346 = vmul.f32 %v1343, %v1343
      %1347 = vadd.xlane.f32.xlu0 %v1344
      %v1348 = vpop.xlane.xlu0 %1347
      %1349 = vadd.xlane.f32.xlu0 %v1345
      %v1350 = vpop.xlane.xlu0 %1349
      %v1351 = vsel %vm424, %v1346, 0.0
      %1352 = vadd.xlane.f32.xlu0 %v1351
      %v1353 = vpop.xlane.xlu0 %1352
      %v1354 = vmul.f32 %v1348, %v434
      %v1355 = vmul.f32 %v1350, %v434
      %v1356 = vmul.f32 %v1353, %v434
      %v1357 = vadd.f32 %v1354, 1e-05
      %v1358 = vadd.f32 %v1355, 1e-05
      %v1359 = vadd.f32 %v1356, 1e-05
      %v1360 = vrsqrt.pop %v1357
      %v1361 = vmul.f32 %v1360, %v1357
      %v1362 = vmul.f32 %v1361, %v1360
      %v1363 = vmul.f32 0.5, %v1362
      %v1364 = vsub.f32 1.5, %v1363
      %v1365 = vmul.f32 %v1360, %v1364
      %vm1366 = vweird.f32 %v1357
      %vm1367 = vweird.f32 %v1360
      %vm1368 = vmor %vm1366, %vm1367
      %v1369 = vsel %vm1368, %v1360, %v1365
      %v1370 = vrsqrt.pop %v1358
      %v1371 = vmul.f32 %v1370, %v1358
      %v1372 = vmul.f32 %v1371, %v1370
      %v1373 = vmul.f32 0.5, %v1372
      %v1374 = vsub.f32 1.5, %v1373
      %v1375 = vmul.f32 %v1370, %v1374
      %vm1376 = vweird.f32 %v1358
      %vm1377 = vweird.f32 %v1370
      %vm1378 = vmor %vm1376, %vm1377
      %v1379 = vsel %vm1378, %v1370, %v1375
      %v1380 = vrsqrt.pop %v1359
      %v1381 = vmul.f32 %v1380, %v1359
      %v1382 = vmul.f32 %v1381, %v1380
      %v1383 = vmul.f32 0.5, %v1382
      %v1384 = vsub.f32 1.5, %v1383
      %v1385 = vmul.f32 %v1380, %v1384
      %vm1386 = vweird.f32 %v1359
      %vm1387 = vweird.f32 %v1380
      %vm1388 = vmor %vm1386, %vm1387
      %v1389 = vsel %vm1388, %v1380, %v1385
      %v1390 = vmul.f32 %v1341, %v1369
      %v1391 = vmul.f32 %v1342, %v1379
      %v1392 = vmul.f32 %v1343, %v1389
      %v1394 = vperm.slane %v1329, 0
      %v1396 = vmul.f32 %v1390, %v1394
      %v1397 = vmul.f32 %v1391, %v1394
      %v1398 = vmul.f32 %v1392, %v1394
      %v1400 = vperm.slane %v1330, 0
      %v1402 = vadd.f32 %v1396, %v1400
      %v1403 = vadd.f32 %v1397, %v1400
      %v1404 = vadd.f32 %v1398, %v1400
      %v1405 = vpack.c.bf16 %v1403, %v1402
      %v1406 = vpack.c.bf16 %v1404, %v1404
      %v1407 = vld [vmem:[%s8] sm:$0xff]
      %v1408 = vld [vmem:[%s8 + $0x8] sm:$0xff]
      %v1409 = vld [vmem:[%s8 + $0x10] sm:$0xff]
      %v1410 = vld [vmem:[%s8 + $0x18] sm:$0xff]
      %v1411 = vld [vmem:[%s8 + $0x20] sm:$0xff]
      %v1412 = vld [vmem:[%s8 + $0x28] sm:$0xff]
      %v1413 = vld [vmem:[%s8 + $0x30] sm:$0xff]
      %v1414 = vld [vmem:[%s8 + $0x38] sm:$0xff]
      %v1415 = vld [vmem:[%s8 + $0x40] sm:$0xff]
      %v1416 = vld [vmem:[%s8 + $0x48] sm:$0xff]
      %v1417 = vld [vmem:[%s8 + $0x50] sm:$0xff]
      %v1418 = vld [vmem:[%s8 + $0x58] sm:$0xff]
      %v1419 = vld [vmem:[%s8 + $0x60] sm:$0xff]
      %v1420 = vld [vmem:[%s8 + $0x68] sm:$0xff]
      %v1421 = vld [vmem:[%s8 + $0x70] sm:$0xff]
      %v1422 = vld [vmem:[%s8 + $0x78] sm:$0xff]
      %v1423 = vld [vmem:[%s9] sm:$0x3]
      %v1425 = vperm.slane %v1423, 0
      %v1426 = vperm.slane %v1423, 1
      %v1445 = vunpack.c.l.b16 %v1407
      %v1446 = vunpack.c.h.b16 %v1407
      %v1447 = vunpack.c.l.b16 %v1408
      %v1448 = vunpack.c.h.b16 %v1408
      %v1449 = vunpack.c.l.b16 %v1409
      %v1450 = vunpack.c.h.b16 %v1409
      %v1451 = vunpack.c.l.b16 %v1410
      %v1452 = vunpack.c.h.b16 %v1410
      %v1453 = vunpack.c.l.b16 %v1411
      %v1454 = vunpack.c.h.b16 %v1411
      %v1455 = vunpack.c.l.b16 %v1412
      %v1456 = vunpack.c.h.b16 %v1412
      %v1457 = vunpack.c.l.b16 %v1413
      %v1458 = vunpack.c.h.b16 %v1413
      %v1459 = vunpack.c.l.b16 %v1414
      %v1460 = vunpack.c.h.b16 %v1414
      %v1461 = vunpack.c.l.b16 %v1415
      %v1462 = vunpack.c.h.b16 %v1415
      %v1463 = vunpack.c.l.b16 %v1416
      %v1464 = vunpack.c.h.b16 %v1416
      %v1465 = vunpack.c.l.b16 %v1417
      %v1466 = vunpack.c.h.b16 %v1417
      %v1467 = vunpack.c.l.b16 %v1418
      %v1468 = vunpack.c.h.b16 %v1418
      %v1469 = vunpack.c.l.b16 %v1419
      %v1470 = vunpack.c.h.b16 %v1419
      %v1471 = vunpack.c.l.b16 %v1420
      %v1472 = vunpack.c.h.b16 %v1420
      %v1473 = vunpack.c.l.b16 %v1421
      %v1474 = vunpack.c.h.b16 %v1421
      %v1475 = vunpack.c.l.b16 %v1422
      %v1476 = vunpack.c.h.b16 %v1422
      %v1477 = vpack.c.b16 %v1447, %v1445
      %v1478 = vpack.c.b16 %v1448, %v1446
      %v1479 = vpack.c.b16 %v1451, %v1449
      %v1480 = vpack.c.b16 %v1452, %v1450
      %v1481 = vpack.c.b16 %v1455, %v1453
      %v1482 = vpack.c.b16 %v1456, %v1454
      %v1483 = vpack.c.b16 %v1459, %v1457
      %v1484 = vpack.c.b16 %v1460, %v1458
      %v1485 = vpack.c.b16 %v1463, %v1461
      %v1486 = vpack.c.b16 %v1464, %v1462
      %v1487 = vpack.c.b16 %v1467, %v1465
      %v1488 = vpack.c.b16 %v1468, %v1466
      %v1489 = vpack.c.b16 %v1471, %v1469
      %v1490 = vpack.c.b16 %v1472, %v1470
      %v1491 = vpack.c.b16 %v1475, %v1473
      %v1492 = vpack.c.b16 %v1476, %v1474
      %1509 = vmatpush.bf16.msra.mxu0 %v1491
      %1510 = vmatpush.bf16.msra.mxu0 %v1489
      %1511 = vmatpush.bf16.msra.mxu0 %v1487
      %1512 = vmatpush.bf16.msra.mxu0 %v1485
      %1513 = vmatpush.bf16.msra.mxu0 %v1483
      %1514 = vmatpush.bf16.msra.mxu0 %v1481
      %1515 = vmatpush.bf16.msra.mxu0 %v1479
      %1516 = vmatpush.bf16.msra.mxu0 %v1477
      %1517 = vmatmul.bf16.gmra.mxu0 %v1405
      %v1518 = vpop.f32.mrf.mxu0
      %v1519 = vadd.f32 %v1425, %v1518
      %v1520 = vpop.f32.mrf.mxu0
      %v1521 = vadd.f32 %v1425, %v1520
      %1522 = vmatmul.bf16.gmra.mxu0 %v1406
      %v1523 = vpop.f32.mrf.mxu0
      %v1524 = vadd.f32 %v1425, %v1523
      %v1525 = vpop.f32.mrf.mxu0
      %1526 = vdwg.mxu0
      %1527 = vmatpush.bf16.msra.mxu0 %v1492
      %1528 = vmatpush.bf16.msra.mxu0 %v1490
      %1529 = vmatpush.bf16.msra.mxu0 %v1488
      %1530 = vmatpush.bf16.msra.mxu0 %v1486
      %1531 = vmatpush.bf16.msra.mxu0 %v1484
      %1532 = vmatpush.bf16.msra.mxu0 %v1482
      %1533 = vmatpush.bf16.msra.mxu0 %v1480
      %1534 = vmatpush.bf16.msra.mxu0 %v1478
      %1535 = vmatmul.bf16.gmra.mxu0 %v1405
      %v1536 = vpop.f32.mrf.mxu0
      %v1537 = vadd.f32 %v1426, %v1536
      %v1538 = vpop.f32.mrf.mxu0
      %v1539 = vadd.f32 %v1426, %v1538
      %1540 = vmatmul.bf16.gmra.mxu0 %v1406
      %v1541 = vpop.f32.mrf.mxu0
      %v1542 = vadd.f32 %v1426, %v1541
      %v1543 = vpop.f32.mrf.mxu0
      %1544 = vdwg.mxu0
      %v1545 = vmul.f32 %v1519, 0.5
      %v1546 = vmul.f32 %v1537, 0.5
      %v1547 = vmul.f32 %v1521, 0.5
      %v1548 = vmul.f32 %v1539, 0.5
      %v1549 = vmul.f32 %v1524, 0.5
      %v1550 = vmul.f32 %v1542, 0.5
      %v1551 = vmul.f32 %v1519, 0.044715
      %v1552 = vmul.f32 %v1537, 0.044715
      %v1553 = vmul.f32 %v1521, 0.044715
      %v1554 = vmul.f32 %v1539, 0.044715
      %v1555 = vmul.f32 %v1524, 0.044715
      %v1556 = vmul.f32 %v1542, 0.044715
      %v1557 = vmul.f32 %v1551, %v1519
      %v1558 = vmul.f32 %v1552, %v1537
      %v1559 = vmul.f32 %v1553, %v1521
      %v1560 = vmul.f32 %v1554, %v1539
      %v1561 = vmul.f32 %v1555, %v1524
      %v1562 = vmul.f32 %v1556, %v1542
      %v1563 = vmul.f32 %v1557, %v1519
      %v1564 = vmul.f32 %v1558, %v1537
      %v1565 = vmul.f32 %v1559, %v1521
      %v1566 = vmul.f32 %v1560, %v1539
      %v1567 = vmul.f32 %v1561, %v1524
      %v1568 = vmul.f32 %v1562, %v1542
      %v1569 = vadd.f32 %v1519, %v1563
      %v1570 = vadd.f32 %v1537, %v1564
      %v1571 = vadd.f32 %v1521, %v1565
      %v1572 = vadd.f32 %v1539, %v1566
      %v1573 = vadd.f32 %v1524, %v1567
      %v1574 = vadd.f32 %v1542, %v1568
      %v1575 = vmul.f32 %v1569, 0.7978846
      %v1576 = vmul.f32 %v1570, 0.7978846
      %v1577 = vmul.f32 %v1571, 0.7978846
      %v1578 = vmul.f32 %v1572, 0.7978846
      %v1579 = vmul.f32 %v1573, 0.7978846
      %v1580 = vmul.f32 %v1574, 0.7978846
      %v1581 = vtanh.pop %v1575
      %v1582 = vtanh.pop %v1576
      %v1583 = vtanh.pop %v1577
      %v1584 = vtanh.pop %v1578
      %v1585 = vtanh.pop %v1579
      %v1586 = vtanh.pop %v1580
      %v1587 = vadd.f32 %v1581, 1.0
      %v1588 = vadd.f32 %v1582, 1.0
      %v1589 = vadd.f32 %v1583, 1.0
      %v1590 = vadd.f32 %v1584, 1.0
      %v1591 = vadd.f32 %v1585, 1.0
      %v1592 = vadd.f32 %v1586, 1.0
      %v1593 = vmul.f32 %v1545, %v1587
      %v1594 = vmul.f32 %v1546, %v1588
      %v1595 = vmul.f32 %v1547, %v1589
      %v1596 = vmul.f32 %v1548, %v1590
      %v1597 = vmul.f32 %v1549, %v1591
      %v1598 = vmul.f32 %v1550, %v1592
      %v1599 = vpack.c.bf16 %v1595, %v1593
      %v1600 = vpack.c.bf16 %v1596, %v1594
      %v1601 = vpack.c.bf16 %v1597, %v1597
      %v1602 = vpack.c.bf16 %v1598, %v1598
      %v1603 = vld [vmem:[%s10] sm:$0xf]
      %v1604 = vld [vmem:[%s10 + $0x4] sm:$0xf]
      %v1605 = vld [vmem:[%s10 + $0x8] sm:$0xf]
      %v1606 = vld [vmem:[%s10 + $0xc] sm:$0xf]
      %v1607 = vld [vmem:[%s10 + $0x10] sm:$0xf]
      %v1608 = vld [vmem:[%s10 + $0x14] sm:$0xf]
      %v1609 = vld [vmem:[%s10 + $0x18] sm:$0xf]
      %v1610 = vld [vmem:[%s10 + $0x1c] sm:$0xf]
      %v1611 = vld [vmem:[%s10 + $0x20] sm:$0xf]
      %v1612 = vld [vmem:[%s10 + $0x24] sm:$0xf]
      %v1613 = vld [vmem:[%s10 + $0x28] sm:$0xf]
      %v1614 = vld [vmem:[%s10 + $0x2c] sm:$0xf]
      %v1615 = vld [vmem:[%s10 + $0x30] sm:$0xf]
      %v1616 = vld [vmem:[%s10 + $0x34] sm:$0xf]
      %v1617 = vld [vmem:[%s10 + $0x38] sm:$0xf]
      %v1618 = vld [vmem:[%s10 + $0x3c] sm:$0xf]
      %v1619 = vld [vmem:[%s10 + $0x40] sm:$0xf]
      %v1620 = vld [vmem:[%s10 + $0x44] sm:$0xf]
      %v1621 = vld [vmem:[%s10 + $0x48] sm:$0xf]
      %v1622 = vld [vmem:[%s10 + $0x4c] sm:$0xf]
      %v1623 = vld [vmem:[%s10 + $0x50] sm:$0xf]
      %v1624 = vld [vmem:[%s10 + $0x54] sm:$0xf]
      %v1625 = vld [vmem:[%s10 + $0x58] sm:$0xf]
      %v1626 = vld [vmem:[%s10 + $0x5c] sm:$0xf]
      %v1627 = vld [vmem:[%s10 + $0x60] sm:$0xf]
      %v1628 = vld [vmem:[%s10 + $0x64] sm:$0xf]
      %v1629 = vld [vmem:[%s10 + $0x68] sm:$0xf]
      %v1630 = vld [vmem:[%s10 + $0x6c] sm:$0xf]
      %v1631 = vld [vmem:[%s10 + $0x70] sm:$0xf]
      %v1632 = vld [vmem:[%s10 + $0x74] sm:$0xf]
      %v1633 = vld [vmem:[%s10 + $0x78] sm:$0xf]
      %v1634 = vld [vmem:[%s10 + $0x7c] sm:$0xf]
      %v1635 = vld [vmem:[%s11] sm:$0x1]
      %v1637 = vperm.slane %v1635, 0
      %v1671 = vunpack.c.l.b16 %v1603
      %v1672 = vunpack.c.l.b16 %v1604
      %v1673 = vunpack.c.l.b16 %v1605
      %v1674 = vunpack.c.l.b16 %v1606
      %v1675 = vunpack.c.l.b16 %v1607
      %v1676 = vunpack.c.l.b16 %v1608
      %v1677 = vunpack.c.l.b16 %v1609
      %v1678 = vunpack.c.l.b16 %v1610
      %v1679 = vunpack.c.l.b16 %v1611
      %v1680 = vunpack.c.l.b16 %v1612
      %v1681 = vunpack.c.l.b16 %v1613
      %v1682 = vunpack.c.l.b16 %v1614
      %v1683 = vunpack.c.l.b16 %v1615
      %v1684 = vunpack.c.l.b16 %v1616
      %v1685 = vunpack.c.l.b16 %v1617
      %v1686 = vunpack.c.l.b16 %v1618
      %v1687 = vunpack.c.l.b16 %v1619
      %v1688 = vunpack.c.l.b16 %v1620
      %v1689 = vunpack.c.l.b16 %v1621
      %v1690 = vunpack.c.l.b16 %v1622
      %v1691 = vunpack.c.l.b16 %v1623
      %v1692 = vunpack.c.l.b16 %v1624
      %v1693 = vunpack.c.l.b16 %v1625
      %v1694 = vunpack.c.l.b16 %v1626
      %v1695 = vunpack.c.l.b16 %v1627
      %v1696 = vunpack.c.l.b16 %v1628
      %v1697 = vunpack.c.l.b16 %v1629
      %v1698 = vunpack.c.l.b16 %v1630
      %v1699 = vunpack.c.l.b16 %v1631
      %v1700 = vunpack.c.l.b16 %v1632
      %v1701 = vunpack.c.l.b16 %v1633
      %v1702 = vunpack.c.l.b16 %v1634
      %v1703 = vpack.c.b16 %v1672, %v1671
      %v1704 = vpack.c.b16 %v1674, %v1673
      %v1705 = vpack.c.b16 %v1676, %v1675
      %v1706 = vpack.c.b16 %v1678, %v1677
      %v1707 = vpack.c.b16 %v1680, %v1679
      %v1708 = vpack.c.b16 %v1682, %v1681
      %v1709 = vpack.c.b16 %v1684, %v1683
      %v1710 = vpack.c.b16 %v1686, %v1685
      %v1711 = vpack.c.b16 %v1688, %v1687
      %v1712 = vpack.c.b16 %v1690, %v1689
      %v1713 = vpack.c.b16 %v1692, %v1691
      %v1714 = vpack.c.b16 %v1694, %v1693
      %v1715 = vpack.c.b16 %v1696, %v1695
      %v1716 = vpack.c.b16 %v1698, %v1697
      %v1717 = vpack.c.b16 %v1700, %v1699
      %v1718 = vpack.c.b16 %v1702, %v1701
      %1735 = vmatpush.bf16.msra.mxu0 %v1710
      %1736 = vmatpush.bf16.msra.mxu0 %v1709
      %1737 = vmatpush.bf16.msra.mxu0 %v1708
      %1738 = vmatpush.bf16.msra.mxu0 %v1707
      %1739 = vmatpush.bf16.msra.mxu0 %v1706
      %1740 = vmatpush.bf16.msra.mxu0 %v1705
      %1741 = vmatpush.bf16.msra.mxu0 %v1704
      %1742 = vmatpush.bf16.msra.mxu0 %v1703
      %1743 = vmatmul.bf16.gmra.mxu0 %v1599
      %v1744 = vpop.f32.mrf.mxu0
      %v1745 = vadd.f32 %v1637, %v1744
      %v1746 = vpop.f32.mrf.mxu0
      %v1747 = vadd.f32 %v1637, %v1746
      %1748 = vmatmul.bf16.gmra.mxu0 %v1601
      %v1749 = vpop.f32.mrf.mxu0
      %v1750 = vadd.f32 %v1637, %v1749
      %v1751 = vpop.f32.mrf.mxu0
      %1752 = vdwg.mxu0
      %1753 = vmatpush.bf16.msra.mxu0 %v1718
      %1754 = vmatpush.bf16.msra.mxu0 %v1717
      %1755 = vmatpush.bf16.msra.mxu0 %v1716
      %1756 = vmatpush.bf16.msra.mxu0 %v1715
      %1757 = vmatpush.bf16.msra.mxu0 %v1714
      %1758 = vmatpush.bf16.msra.mxu0 %v1713
      %1759 = vmatpush.bf16.msra.mxu0 %v1712
      %1760 = vmatpush.bf16.msra.mxu0 %v1711
      %1761 = vmatmul.bf16.gmra.mxu0 %v1600
      %v1762 = vpop.f32.mrf.mxu0
      %v1763 = vadd.f32 %v1745, %v1762
      %v1764 = vpop.f32.mrf.mxu0
      %v1765 = vadd.f32 %v1747, %v1764
      %1766 = vmatmul.bf16.gmra.mxu0 %v1602
      %v1767 = vpop.f32.mrf.mxu0
      %v1768 = vadd.f32 %v1750, %v1767
      %v1769 = vpop.f32.mrf.mxu0
      %1770 = vdwg.mxu0
      %v1771 = vadd.f32 %v1326, %v1763
      %v1772 = vadd.f32 %v1327, %v1765
      %v1773 = vadd.f32 %v1328, %v1768
      %1774 = vst [vmem:[%s413] sm:$0xff] %v1771
      %1775 = vst [vmem:[%s413 + $0x8] sm:$0xff] %v1772
      %1776 = vst [vmem:[%s413 + $0x10] sm:$0x1] %v1773
      %p1777 = scmp.lt.s32.totalorder %s23, 1
      %s1778 = scalar_select %p1777, %s23, 1
      %s1779 = smul.addr %s1778, 3
      %s1780 = smul.addr %s1779, 8
      %s1781 = scalar_lea.vmem %s12, %s1780
      // Predicated region
      $region69: #{vitnet_forward.5} parent=67 // pred_check
        %p1782 = pneg %p298
      $region70: #{vitnet_forward.5} parent=67 // pred_check_branch
        %1784 = sbr.rel (%p1782) target = $region72
      $region71: #{vitnet_forward.5} parent=67 // pred_region
        _
      $region72: #{vitnet_forward.5} parent=67 // pred_fallthru
        _
    $region68: #{vitnet_forward.5} parent=5 // pred_fallthru
      _
    %p1785 = scmp.le.s32.totalorder 2, %s18
    // Predicated region
    $region73: #{vitnet_forward.5} parent=5 // pred_check
      %p1786 = pneg %p1785
    $region74: #{vitnet_forward.5} parent=5 // pred_check_branch
      %1788 = sbr.rel (%p1786) target = $region76
    $region75: #{vitnet_forward.5} parent=5 // pred_region
      %s1789 = ssub.s32 %s18, 2
      // Predicated region
      $region77: #{vitnet_forward.5} parent=75 // pred_check
        %p1790 = pneg %p304
      $region78: #{vitnet_forward.5} parent=75 // pred_check_branch
        %1792 = sbr.rel (%p1790) target = $region80
      $region79: #{vitnet_forward.5} parent=75 // pred_region
        %p1793 = scmp.lt.s32.totalorder %s24, 1
        %s1794 = scalar_select %p1793, %s24, 1
        %s1795 = smul.addr %s1794, 3
        %s1796 = smul.addr %s1795, 8
        %s1797 = scalar_lea.vmem %s12, %s1796
      $region80: #{vitnet_forward.5} parent=75 // pred_fallthru
        _
    $region76: #{vitnet_forward.5} parent=5 // pred_fallthru
      _
  $region6: #{vitnet_forward.5} parent=0 // loop_footer
    %s22 = sadd.s32 1, %s18
  $region7: #{vitnet_forward.5} parent=0 // loop_footer_branch
    %17 = sbr.rel target = $region3
  $region8: #{vitnet_forward.5} parent=0 // loop_exit
    _

</llo_original>
